<compile_context>
chip_gen: v7x
topology: tpu7x:2x2x1
jax: 0.10.0
libtpu: 0.0.40
codegen_flags: <defaults>
</compile_context>

<pallas_src>
import functools

import numpy as np
import jax
import jax.numpy as jnp
from jax.experimental import pallas as pl
from jax.experimental.pallas import tpu as pltpu


def _ceil_to(x, m):
    return (x + m - 1) // m * m


def _col_masks(H, W, dtype):
    """(2, H*W) 0/1 masks: row 0 = valid for kx==0 taps (output x > 0),
    row 1 = valid for kx==2 taps (output x < W-1).  Row (ky) overflow is handled
    by the flat zero halo, so only the two column masks are needed."""
    xx = np.arange(W)[None, :]
    left_ok = np.broadcast_to(xx > 0, (H, W)).reshape(-1)
    right_ok = np.broadcast_to(xx < W - 1, (H, W)).reshape(-1)
    m = np.stack([left_ok, right_ok]).astype(np.float32)
    return jnp.asarray(m, dtype=dtype)


def _pick_vmem_limit():
    """Per-generation VMEM budget: ~78% of per-core VMEM, capped at 110 MiB."""
    cap = 64 * 1024 * 1024
    try:
        cap = int(pltpu.get_tpu_info().vmem_capacity_bytes)
    except Exception:
        pass
    cap = max(cap, 64 * 1024 * 1024)
    return int(min(cap * 0.78, 110 * 1024 * 1024))


def _flow_head_kernel(x_ref, m_ref, w1_ref, b1_ref, w2_ref, b2_ref, o_ref,
                      xp_ref, hid_ref, *, H, W, Cin, pad, chunk):
    """Fused FlowHead for one batch element (lane axis = flattened H*W).

    x_ref  : (1, Cin, H*W)            raw input block (original dtype)
    m_ref  : (2, H*W)                 column masks (compute dtype)
    w1_ref : (3, Chid, 3*Cin_p)       conv1 weights, grouped by kernel row ky
    b1_ref : (Chid, 1)                conv1 bias (f32)
    w2_ref : (9, Cout_p, Chid)        conv2 weights, one (Cout_p, Chid) per tap
    b2_ref : (Cout_p, 1)              conv2 bias (f32)
    o_ref  : (1, Cout_p, H*W)         output
    xp_ref : (Cin_p, pad+H*W+pad)     VMEM scratch: zero-haloed, padded input
    hid_ref: (Chid,  pad+H*W+pad)     VMEM scratch: zero-haloed hidden activation
    """
    HW = H * W
    cdt = xp_ref.dtype
    Cin_p, L = xp_ref.shape
    Chid = hid_ref.shape[0]
    offs = [(ky - 1) * W + (kx - 1) for ky in range(3) for kx in range(3)]

    # ---- refresh zero halos / channel-pad rows (cheap: O(C * pad) stores) ----
    # Done every grid step (not program_id-gated) so it is correct when the
    # "parallel" batch axis is split across TensorCores.
    zx = jnp.zeros((Cin_p, pad), cdt)
    xp_ref[:, :pad] = zx
    xp_ref[:, pad + HW:] = zx
    if Cin < Cin_p:
        # padded channel rows must be zero (stale VMEM could be NaN/Inf)
        xp_ref[Cin:, pad:pad + HW] = jnp.zeros((Cin_p - Cin, HW), cdt)
    zh = jnp.zeros((Chid, pad), cdt)
    hid_ref[:, :pad] = zh
    hid_ref[:, pad + HW:] = zh

    # ---- stage raw input into the haloed scratch (pad + cast happen here) ----
    xp_ref[:Cin, pad:pad + HW] = x_ref[0].astype(cdt)

    spans = [(s, min(chunk, HW - s)) for s in range(0, HW, chunk)]

    def masked_tap(src_ref, s, c, off, kx):
        v = src_ref[:, pad + s + off: pad + s + off + c]
        if kx == 0:                              # reads x-1: invalid at x == 0
            v = v * m_ref[0:1, s:s + c]
        elif kx == 2:                            # reads x+1: invalid at x == W-1
            v = v * m_ref[1:2, s:s + c]
        return v                                 # kx == 1: halo handles rows

    # ---- conv1 + bias + ReLU -> hidden scratch (stays on-chip) --------------
    for s, c in spans:
        h = None
        for ky in range(3):
            col = jnp.concatenate(
                [masked_tap(xp_ref, s, c, offs[ky * 3 + kx], kx)
                 for kx in range(3)], axis=0)                    # (3*Cin_p, c)
            part = jnp.dot(w1_ref[ky], col, preferred_element_type=jnp.float32)
            h = part if h is None else h + part
        h = jnp.maximum(h + b1_ref[...], 0.0)                    # bias+ReLU f32
        hid_ref[:, pad + s:pad + s + c] = h.astype(cdt)

    # ---- conv2: nine accumulated K=Chid matmuls, no (9*Chid, HW) slab -------
    for s, c in spans:
        acc = None
        for t, off in enumerate(offs):
            tap = masked_tap(hid_ref, s, c, off, t % 3)          # (Chid, c)
            part = jnp.dot(w2_ref[t], tap, preferred_element_type=jnp.float32)
            acc = part if acc is None else acc + part
        o_ref[0, :, s:s + c] = (acc + b2_ref[...]).astype(o_ref.dtype)


def flow_head_forward(x_nchw, params, *, compute_dtype=jnp.bfloat16,
                      spatial_chunk=4096):
    """FlowHead.forward: conv2(relu(conv1(x))).  NCHW in, NCHW out."""
    N, Cin, H, W = x_nchw.shape
    HW = H * W
    Chid = params["w1"].shape[-1]
    Cout = params["w2"].shape[-1]
    cdt = compute_dtype

    cpack = 16 if cdt == jnp.bfloat16 else 8       # sublane packing of cdt
    Cin_p = _ceil_to(Cin, cpack)                   # aligned tap-slab boundaries
    Cout_p = _ceil_to(Cout, 8)
    pad = _ceil_to(W + 1, 128)                     # flat halo, valid for any W
    L = HW + 2 * pad
    chunk = max(128, min(spatial_chunk, HW)) if HW >= 128 else HW

    # NCHW -> (N, C, H*W) is a free row-major reshape; no pad/cast pre-pass.
    x_flat = x_nchw.reshape(N, Cin, HW)

    # conv1 weights grouped by kernel row ky: (3, Chid, 3*Cin_p); row order of
    # the contraction axis is kx-major, channel-minor (matches in-kernel concat).
    w1p = jnp.pad(params["w1"], ((0, 0), (0, 0), (0, Cin_p - Cin), (0, 0)))
    w1g = jnp.transpose(w1p.reshape(3, 3 * Cin_p, Chid), (0, 2, 1)).astype(cdt)
    b1c = params["b1"].reshape(Chid, 1).astype(jnp.float32)
    # conv2 weights per tap: (9, Cout_p, Chid)
    w2p = jnp.pad(params["w2"], ((0, 0), (0, 0), (0, 0), (0, Cout_p - Cout)))
    w2g = jnp.transpose(w2p.reshape(9, Chid, Cout_p), (0, 2, 1)).astype(cdt)
    b2c = jnp.pad(params["b2"], (0, Cout_p - Cout)).reshape(Cout_p, 1)
    b2c = b2c.astype(jnp.float32)

    masks = _col_masks(H, W, cdt)                  # (2, HW)

    kernel = functools.partial(_flow_head_kernel, H=H, W=W, Cin=Cin,
                               pad=pad, chunk=chunk)

    def build(single_buffer_invariants):
        inv = {}
        if single_buffer_invariants and hasattr(pl, "Buffered"):
            inv = {"pipeline_mode": pl.Buffered(1)}   # no 2nd buffer for weights
        return pl.pallas_call(
            kernel,
            out_shape=jax.ShapeDtypeStruct((N, Cout_p, HW), x_nchw.dtype),
            grid=(N,),
            in_specs=[
                pl.BlockSpec((1, Cin, HW), lambda n: (n, 0, 0)),
                pl.BlockSpec((2, HW), lambda n: (0, 0), **inv),
                pl.BlockSpec((3, Chid, 3 * Cin_p), lambda n: (0, 0, 0), **inv),
                pl.BlockSpec((Chid, 1), lambda n: (0, 0), **inv),
                pl.BlockSpec((9, Cout_p, Chid), lambda n: (0, 0, 0), **inv),
                pl.BlockSpec((Cout_p, 1), lambda n: (0, 0), **inv),
            ],
            out_specs=pl.BlockSpec((1, Cout_p, HW), lambda n: (n, 0, 0)),
            scratch_shapes=[pltpu.VMEM((Cin_p, L), cdt),
                            pltpu.VMEM((Chid, L), cdt)],
            compiler_params=pltpu.CompilerParams(
                dimension_semantics=("parallel",),
                vmem_limit_bytes=_pick_vmem_limit(),
            ),
        )

    args = (x_flat, masks, w1g, b1c, w2g, b2c)
    try:
        out = build(True)(*args)
    except Exception:
        # Fallback for jax versions where pipeline_mode / Buffered(1) is rejected.
        out = build(False)(*args)

    return out[:, :Cout, :].reshape(N, Cout, H, W)


def init_flow_head_params(key, input_dim, hidden_dim, dtype=jnp.float32):
    """Deterministic synthetic weights, stored HWIO: (3, 3, Cin, Cout)."""
    k1, k2, k3, k4 = jax.random.split(key, 4)
    scale1 = 1.0 / (3 * 3 * input_dim) ** 0.5
    scale2 = 1.0 / (3 * 3 * hidden_dim) ** 0.5
    return {
        "w1": (jax.random.normal(k1, (3, 3, input_dim, hidden_dim)) * scale1).astype(dtype),
        "b1": (jax.random.normal(k2, (hidden_dim,)) * scale1).astype(dtype),
        "w2": (jax.random.normal(k3, (3, 3, hidden_dim, 2)) * scale2).astype(dtype),
        "b2": (jax.random.normal(k4, (2,)) * scale2).astype(dtype),
    }


def flow_head_reference(x_nchw, params):
    """Pure-JAX reference (lax.conv) for correctness checks."""
    def conv(x, w_hwio, b):
        y = jax.lax.conv_general_dilated(
            x, w_hwio, window_strides=(1, 1), padding="SAME",
            dimension_numbers=("NCHW", "HWIO", "NCHW"))
        return y + b[None, :, None, None]

    h = jax.nn.relu(conv(x_nchw, params["w1"], params["b1"]))
    return conv(h, params["w2"], params["b2"])


if __name__ == "__main__":
    # Small shapes consistent with FlowHead(input_dim, hidden_dim), scaled down:
    # batch=2, input_dim=4, hidden_dim=32, spatial 16x16.
    N, Cin, Chid, H, W = 2, 4, 32, 16, 16

    key = jax.random.PRNGKey(0)
    kx, kp = jax.random.split(key)
    x = jax.random.normal(kx, (N, Cin, H, W), dtype=jnp.float32)
    params = init_flow_head_params(kp, input_dim=Cin, hidden_dim=Chid)

    ref = jax.block_until_ready(flow_head_reference(x, params))

    # f32 compute path: tight check against the lax.conv reference.
    out_f32 = jax.block_until_ready(
        flow_head_forward(x, params, compute_dtype=jnp.float32))
    assert out_f32.shape == (N, 2, H, W), out_f32.shape
    assert jnp.allclose(out_f32, ref, atol=1e-4, rtol=1e-4), \
        float(jnp.max(jnp.abs(out_f32 - ref)))

    # bf16 MXU path (preferred on v6e/v7x): looser tolerance vs the f32 reference.
    out_bf16 = jax.block_until_ready(
        flow_head_forward(x, params, compute_dtype=jnp.bfloat16))
    assert out_bf16.shape == (N, 2, H, W), out_bf16.shape
    assert jnp.allclose(out_bf16, ref, atol=5e-2, rtol=5e-2), \
        float(jnp.max(jnp.abs(out_bf16 - ref)))

    print("KERNEL_OK")
</pallas_src>

<mosaic_0001>
module attributes {stable_mosaic.version = 11 : i64} {
  func.func @_flow_head_kernel(%arg0: i32, %arg1: memref<1x4x256xf32, #tpu.memory_space<vmem>>, %arg2: memref<2x256xf32, #tpu.memory_space<vmem>>, %arg3: memref<3x32x24xf32, #tpu.memory_space<vmem>>, %arg4: memref<32x1xf32, #tpu.memory_space<vmem>>, %arg5: memref<9x8x32xf32, #tpu.memory_space<vmem>>, %arg6: memref<8x1xf32, #tpu.memory_space<vmem>>, %arg7: memref<1x8x256xf32, #tpu.memory_space<vmem>>, %arg8: memref<8x512xf32, #tpu.memory_space<vmem>>, %arg9: memref<32x512xf32, #tpu.memory_space<vmem>>) attributes {dimension_semantics = [#tpu.dimension_semantics<parallel>], iteration_bounds = array<i64: 2>, scalar_prefetch = 0 : i64, scratch_operands = 2 : i64, tpu.core_type = #tpu.core_type<tc>, window_params = [{transform_indices = @transform_0, window_bounds = array<i64: 1, 4, 256>}, {pipeline_mode = #tpu.pipeline_mode<synchronous>, transform_indices = @transform_1, window_bounds = array<i64: 2, 256>}, {pipeline_mode = #tpu.pipeline_mode<synchronous>, transform_indices = @transform_2, window_bounds = array<i64: 3, 32, 24>}, {pipeline_mode = #tpu.pipeline_mode<synchronous>, transform_indices = @transform_3, window_bounds = array<i64: 32, 1>}, {pipeline_mode = #tpu.pipeline_mode<synchronous>, transform_indices = @transform_4, window_bounds = array<i64: 9, 8, 32>}, {pipeline_mode = #tpu.pipeline_mode<synchronous>, transform_indices = @transform_5, window_bounds = array<i64: 8, 1>}, {transform_indices = @transform_6, window_bounds = array<i64: 1, 8, 256>}]} {
    %cst = arith.constant 0.000000e+00 : f32
    %0 = vector.broadcast %cst : f32 to vector<8x128xf32>
    %c0 = arith.constant 0 : index
    %c0_0 = arith.constant 0 : index
    %1 = vector.load %arg8[%c0, %c0_0] : memref<8x512xf32, #tpu.memory_space<vmem>>, vector<8x128xf32>
    tpu.vector_store %arg8[%c0, %c0_0], %0 {strides = array<i32>} : memref<8x512xf32, #tpu.memory_space<vmem>>, vector<8x128xf32>,
    %c0_1 = arith.constant 0 : index
    %c384 = arith.constant 384 : index
    %2 = vector.load %arg8[%c0_1, %c384] : memref<8x512xf32, #tpu.memory_space<vmem>>, vector<8x128xf32>
    tpu.vector_store %arg8[%c0_1, %c384], %0 {strides = array<i32>} : memref<8x512xf32, #tpu.memory_space<vmem>>, vector<8x128xf32>,
    %cst_2 = arith.constant 0.000000e+00 : f32
    %3 = vector.broadcast %cst_2 : f32 to vector<4x256xf32>
    %c4 = arith.constant 4 : index
    %c128 = arith.constant 128 : index
    %4 = vector.load %arg8[%c4, %c128] : memref<8x512xf32, #tpu.memory_space<vmem>>, vector<4x256xf32>
    tpu.vector_store %arg8[%c4, %c128], %3 {strides = array<i32>} : memref<8x512xf32, #tpu.memory_space<vmem>>, vector<4x256xf32>,
    %cst_3 = arith.constant 0.000000e+00 : f32
    %5 = vector.broadcast %cst_3 : f32 to vector<32x128xf32>
    %c0_4 = arith.constant 0 : index
    %c0_5 = arith.constant 0 : index
    %6 = vector.load %arg9[%c0_4, %c0_5] : memref<32x512xf32, #tpu.memory_space<vmem>>, vector<32x128xf32>
    tpu.vector_store %arg9[%c0_4, %c0_5], %5 {strides = array<i32>} : memref<32x512xf32, #tpu.memory_space<vmem>>, vector<32x128xf32>,
    %c0_6 = arith.constant 0 : index
    %c384_7 = arith.constant 384 : index
    %7 = vector.load %arg9[%c0_6, %c384_7] : memref<32x512xf32, #tpu.memory_space<vmem>>, vector<32x128xf32>
    tpu.vector_store %arg9[%c0_6, %c384_7], %5 {strides = array<i32>} : memref<32x512xf32, #tpu.memory_space<vmem>>, vector<32x128xf32>,
    %c0_8 = arith.constant 0 : index
    %c0_9 = arith.constant 0 : index
    %c0_10 = arith.constant 0 : index
    %8 = vector.load %arg1[%c0_8, %c0_9, %c0_10] : memref<1x4x256xf32, #tpu.memory_space<vmem>>, vector<1x4x256xf32>
    %9 = vector.shape_cast %8 : vector<1x4x256xf32> to vector<4x256xf32>
    %c0_11 = arith.constant 0 : index
    %c128_12 = arith.constant 128 : index
    %10 = vector.load %arg8[%c0_11, %c128_12] : memref<8x512xf32, #tpu.memory_space<vmem>>, vector<4x256xf32>
    tpu.vector_store %arg8[%c0_11, %c128_12], %9 {strides = array<i32>} : memref<8x512xf32, #tpu.memory_space<vmem>>, vector<4x256xf32>,
    %c0_13 = arith.constant 0 : index
    %c111 = arith.constant 111 : index
    %11 = vector.load %arg8[%c0_13, %c111] : memref<8x512xf32, #tpu.memory_space<vmem>>, vector<8x256xf32>
    %c0_14 = arith.constant 0 : index
    %c0_15 = arith.constant 0 : index
    %12 = vector.load %arg2[%c0_14, %c0_15] : memref<2x256xf32, #tpu.memory_space<vmem>>, vector<1x256xf32>
    %13 = vector.broadcast %12 : vector<1x256xf32> to vector<8x256xf32>
    %14 = arith.mulf %11, %13 : vector<8x256xf32>
    %c0_16 = arith.constant 0 : index
    %c112 = arith.constant 112 : index
    %15 = vector.load %arg8[%c0_16, %c112] : memref<8x512xf32, #tpu.memory_space<vmem>>, vector<8x256xf32>
    %c0_17 = arith.constant 0 : index
    %c113 = arith.constant 113 : index
    %16 = vector.load %arg8[%c0_17, %c113] : memref<8x512xf32, #tpu.memory_space<vmem>>, vector<8x256xf32>
    %c1 = arith.constant 1 : index
    %c0_18 = arith.constant 0 : index
    %17 = vector.load %arg2[%c1, %c0_18] : memref<2x256xf32, #tpu.memory_space<vmem>>, vector<1x256xf32>
    %18 = vector.broadcast %17 : vector<1x256xf32> to vector<8x256xf32>
    %19 = arith.mulf %16, %18 : vector<8x256xf32>
    %20 = tpu.concatenate %14, %15, %19 in 0 : vector<8x256xf32>, vector<8x256xf32>, vector<8x256xf32> -> vector<24x256xf32>
    %c0_19 = arith.constant 0 : index
    %c0_20 = arith.constant 0 : index
    %c0_21 = arith.constant 0 : index
    %21 = vector.load %arg3[%c0_19, %c0_20, %c0_21] : memref<3x32x24xf32, #tpu.memory_space<vmem>>, vector<1x32x24xf32>
    %22 = vector.shape_cast %21 : vector<1x32x24xf32> to vector<32x24xf32>
    %cst_22 = arith.constant dense<0.000000e+00> : vector<32x256xf32>
    %23 = tpu.matmul %22, %20, %cst_22 {dimension_numbers = #tpu.dot_dimension_numbers<[1], [0], [0], [1], [0, 0, 1, 1], [], []>} : vector<32x24xf32>, vector<24x256xf32>, vector<32x256xf32> -> vector<32x256xf32>
    %c0_23 = arith.constant 0 : index
    %c127 = arith.constant 127 : index
    %24 = vector.load %arg8[%c0_23, %c127] : memref<8x512xf32, #tpu.memory_space<vmem>>, vector<8x256xf32>
    %c0_24 = arith.constant 0 : index
    %c0_25 = arith.constant 0 : index
    %25 = vector.load %arg2[%c0_24, %c0_25] : memref<2x256xf32, #tpu.memory_space<vmem>>, vector<1x256xf32>
    %26 = vector.broadcast %25 : vector<1x256xf32> to vector<8x256xf32>
    %27 = arith.mulf %24, %26 : vector<8x256xf32>
    %c0_26 = arith.constant 0 : index
    %c128_27 = arith.constant 128 : index
    %28 = vector.load %arg8[%c0_26, %c128_27] : memref<8x512xf32, #tpu.memory_space<vmem>>, vector<8x256xf32>
    %c0_28 = arith.constant 0 : index
    %c129 = arith.constant 129 : index
    %29 = vector.load %arg8[%c0_28, %c129] : memref<8x512xf32, #tpu.memory_space<vmem>>, vector<8x256xf32>
    %c1_29 = arith.constant 1 : index
    %c0_30 = arith.constant 0 : index
    %30 = vector.load %arg2[%c1_29, %c0_30] : memref<2x256xf32, #tpu.memory_space<vmem>>, vector<1x256xf32>
    %31 = vector.broadcast %30 : vector<1x256xf32> to vector<8x256xf32>
    %32 = arith.mulf %29, %31 : vector<8x256xf32>
    %33 = tpu.concatenate %27, %28, %32 in 0 : vector<8x256xf32>, vector<8x256xf32>, vector<8x256xf32> -> vector<24x256xf32>
    %c1_31 = arith.constant 1 : index
    %c0_32 = arith.constant 0 : index
    %c0_33 = arith.constant 0 : index
    %34 = vector.load %arg3[%c1_31, %c0_32, %c0_33] : memref<3x32x24xf32, #tpu.memory_space<vmem>>, vector<1x32x24xf32>
    %35 = vector.shape_cast %34 : vector<1x32x24xf32> to vector<32x24xf32>
    %cst_34 = arith.constant dense<0.000000e+00> : vector<32x256xf32>
    %36 = tpu.matmul %35, %33, %cst_34 {dimension_numbers = #tpu.dot_dimension_numbers<[1], [0], [0], [1], [0, 0, 1, 1], [], []>} : vector<32x24xf32>, vector<24x256xf32>, vector<32x256xf32> -> vector<32x256xf32>
    %37 = arith.addf %23, %36 : vector<32x256xf32>
    %c0_35 = arith.constant 0 : index
    %c143 = arith.constant 143 : index
    %38 = vector.load %arg8[%c0_35, %c143] : memref<8x512xf32, #tpu.memory_space<vmem>>, vector<8x256xf32>
    %c0_36 = arith.constant 0 : index
    %c0_37 = arith.constant 0 : index
    %39 = vector.load %arg2[%c0_36, %c0_37] : memref<2x256xf32, #tpu.memory_space<vmem>>, vector<1x256xf32>
    %40 = vector.broadcast %39 : vector<1x256xf32> to vector<8x256xf32>
    %41 = arith.mulf %38, %40 : vector<8x256xf32>
    %c0_38 = arith.constant 0 : index
    %c144 = arith.constant 144 : index
    %42 = vector.load %arg8[%c0_38, %c144] : memref<8x512xf32, #tpu.memory_space<vmem>>, vector<8x256xf32>
    %c0_39 = arith.constant 0 : index
    %c145 = arith.constant 145 : index
    %43 = vector.load %arg8[%c0_39, %c145] : memref<8x512xf32, #tpu.memory_space<vmem>>, vector<8x256xf32>
    %c1_40 = arith.constant 1 : index
    %c0_41 = arith.constant 0 : index
    %44 = vector.load %arg2[%c1_40, %c0_41] : memref<2x256xf32, #tpu.memory_space<vmem>>, vector<1x256xf32>
    %45 = vector.broadcast %44 : vector<1x256xf32> to vector<8x256xf32>
    %46 = arith.mulf %43, %45 : vector<8x256xf32>
    %47 = tpu.concatenate %41, %42, %46 in 0 : vector<8x256xf32>, vector<8x256xf32>, vector<8x256xf32> -> vector<24x256xf32>
    %c2 = arith.constant 2 : index
    %c0_42 = arith.constant 0 : index
    %c0_43 = arith.constant 0 : index
    %48 = vector.load %arg3[%c2, %c0_42, %c0_43] : memref<3x32x24xf32, #tpu.memory_space<vmem>>, vector<1x32x24xf32>
    %49 = vector.shape_cast %48 : vector<1x32x24xf32> to vector<32x24xf32>
    %cst_44 = arith.constant dense<0.000000e+00> : vector<32x256xf32>
    %50 = tpu.matmul %49, %47, %cst_44 {dimension_numbers = #tpu.dot_dimension_numbers<[1], [0], [0], [1], [0, 0, 1, 1], [], []>} : vector<32x24xf32>, vector<24x256xf32>, vector<32x256xf32> -> vector<32x256xf32>
    %51 = arith.addf %37, %50 : vector<32x256xf32>
    %c0_45 = arith.constant 0 : index
    %c0_46 = arith.constant 0 : index
    %52 = vector.load %arg4[%c0_45, %c0_46] : memref<32x1xf32, #tpu.memory_space<vmem>>, vector<32x1xf32>
    %53 = vector.broadcast %52 : vector<32x1xf32> to vector<32x256xf32>
    %54 = arith.addf %51, %53 : vector<32x256xf32>
    %cst_47 = arith.constant 0.000000e+00 : f32
    %55 = vector.broadcast %cst_47 : f32 to vector<32x256xf32>
    %56 = arith.maximumf %54, %55 : vector<32x256xf32>
    %c0_48 = arith.constant 0 : index
    %c128_49 = arith.constant 128 : index
    %57 = vector.load %arg9[%c0_48, %c128_49] : memref<32x512xf32, #tpu.memory_space<vmem>>, vector<32x256xf32>
    tpu.vector_store %arg9[%c0_48, %c128_49], %56 {strides = array<i32>} : memref<32x512xf32, #tpu.memory_space<vmem>>, vector<32x256xf32>,
    %c0_50 = arith.constant 0 : index
    %c111_51 = arith.constant 111 : index
    %58 = vector.load %arg9[%c0_50, %c111_51] : memref<32x512xf32, #tpu.memory_space<vmem>>, vector<32x256xf32>
    %c0_52 = arith.constant 0 : index
    %c0_53 = arith.constant 0 : index
    %59 = vector.load %arg2[%c0_52, %c0_53] : memref<2x256xf32, #tpu.memory_space<vmem>>, vector<1x256xf32>
    %60 = vector.broadcast %59 : vector<1x256xf32> to vector<32x256xf32>
    %61 = arith.mulf %58, %60 : vector<32x256xf32>
    %c0_54 = arith.constant 0 : index
    %c0_55 = arith.constant 0 : index
    %c0_56 = arith.constant 0 : index
    %62 = vector.load %arg5[%c0_54, %c0_55, %c0_56] : memref<9x8x32xf32, #tpu.memory_space<vmem>>, vector<1x8x32xf32>
    %63 = vector.shape_cast %62 : vector<1x8x32xf32> to vector<8x32xf32>
    %cst_57 = arith.constant dense<0.000000e+00> : vector<8x256xf32>
    %64 = tpu.matmul %63, %61, %cst_57 {dimension_numbers = #tpu.dot_dimension_numbers<[1], [0], [0], [1], [0, 0, 1, 1], [], []>} : vector<8x32xf32>, vector<32x256xf32>, vector<8x256xf32> -> vector<8x256xf32>
    %c0_58 = arith.constant 0 : index
    %c112_59 = arith.constant 112 : index
    %65 = vector.load %arg9[%c0_58, %c112_59] : memref<32x512xf32, #tpu.memory_space<vmem>>, vector<32x256xf32>
    %c1_60 = arith.constant 1 : index
    %c0_61 = arith.constant 0 : index
    %c0_62 = arith.constant 0 : index
    %66 = vector.load %arg5[%c1_60, %c0_61, %c0_62] : memref<9x8x32xf32, #tpu.memory_space<vmem>>, vector<1x8x32xf32>
    %67 = vector.shape_cast %66 : vector<1x8x32xf32> to vector<8x32xf32>
    %cst_63 = arith.constant dense<0.000000e+00> : vector<8x256xf32>
    %68 = tpu.matmul %67, %65, %cst_63 {dimension_numbers = #tpu.dot_dimension_numbers<[1], [0], [0], [1], [0, 0, 1, 1], [], []>} : vector<8x32xf32>, vector<32x256xf32>, vector<8x256xf32> -> vector<8x256xf32>
    %69 = arith.addf %64, %68 : vector<8x256xf32>
    %c0_64 = arith.constant 0 : index
    %c113_65 = arith.constant 113 : index
    %70 = vector.load %arg9[%c0_64, %c113_65] : memref<32x512xf32, #tpu.memory_space<vmem>>, vector<32x256xf32>
    %c1_66 = arith.constant 1 : index
    %c0_67 = arith.constant 0 : index
    %71 = vector.load %arg2[%c1_66, %c0_67] : memref<2x256xf32, #tpu.memory_space<vmem>>, vector<1x256xf32>
    %72 = vector.broadcast %71 : vector<1x256xf32> to vector<32x256xf32>
    %73 = arith.mulf %70, %72 : vector<32x256xf32>
    %c2_68 = arith.constant 2 : index
    %c0_69 = arith.constant 0 : index
    %c0_70 = arith.constant 0 : index
    %74 = vector.load %arg5[%c2_68, %c0_69, %c0_70] : memref<9x8x32xf32, #tpu.memory_space<vmem>>, vector<1x8x32xf32>
    %75 = vector.shape_cast %74 : vector<1x8x32xf32> to vector<8x32xf32>
    %cst_71 = arith.constant dense<0.000000e+00> : vector<8x256xf32>
    %76 = tpu.matmul %75, %73, %cst_71 {dimension_numbers = #tpu.dot_dimension_numbers<[1], [0], [0], [1], [0, 0, 1, 1], [], []>} : vector<8x32xf32>, vector<32x256xf32>, vector<8x256xf32> -> vector<8x256xf32>
    %77 = arith.addf %69, %76 : vector<8x256xf32>
    %c0_72 = arith.constant 0 : index
    %c127_73 = arith.constant 127 : index
    %78 = vector.load %arg9[%c0_72, %c127_73] : memref<32x512xf32, #tpu.memory_space<vmem>>, vector<32x256xf32>
    %c0_74 = arith.constant 0 : index
    %c0_75 = arith.constant 0 : index
    %79 = vector.load %arg2[%c0_74, %c0_75] : memref<2x256xf32, #tpu.memory_space<vmem>>, vector<1x256xf32>
    %80 = vector.broadcast %79 : vector<1x256xf32> to vector<32x256xf32>
    %81 = arith.mulf %78, %80 : vector<32x256xf32>
    %c3 = arith.constant 3 : index
    %c0_76 = arith.constant 0 : index
    %c0_77 = arith.constant 0 : index
    %82 = vector.load %arg5[%c3, %c0_76, %c0_77] : memref<9x8x32xf32, #tpu.memory_space<vmem>>, vector<1x8x32xf32>
    %83 = vector.shape_cast %82 : vector<1x8x32xf32> to vector<8x32xf32>
    %cst_78 = arith.constant dense<0.000000e+00> : vector<8x256xf32>
    %84 = tpu.matmul %83, %81, %cst_78 {dimension_numbers = #tpu.dot_dimension_numbers<[1], [0], [0], [1], [0, 0, 1, 1], [], []>} : vector<8x32xf32>, vector<32x256xf32>, vector<8x256xf32> -> vector<8x256xf32>
    %85 = arith.addf %77, %84 : vector<8x256xf32>
    %c0_79 = arith.constant 0 : index
    %c128_80 = arith.constant 128 : index
    %86 = vector.load %arg9[%c0_79, %c128_80] : memref<32x512xf32, #tpu.memory_space<vmem>>, vector<32x256xf32>
    %c4_81 = arith.constant 4 : index
    %c0_82 = arith.constant 0 : index
    %c0_83 = arith.constant 0 : index
    %87 = vector.load %arg5[%c4_81, %c0_82, %c0_83] : memref<9x8x32xf32, #tpu.memory_space<vmem>>, vector<1x8x32xf32>
    %88 = vector.shape_cast %87 : vector<1x8x32xf32> to vector<8x32xf32>
    %cst_84 = arith.constant dense<0.000000e+00> : vector<8x256xf32>
    %89 = tpu.matmul %88, %86, %cst_84 {dimension_numbers = #tpu.dot_dimension_numbers<[1], [0], [0], [1], [0, 0, 1, 1], [], []>} : vector<8x32xf32>, vector<32x256xf32>, vector<8x256xf32> -> vector<8x256xf32>
    %90 = arith.addf %85, %89 : vector<8x256xf32>
    %c0_85 = arith.constant 0 : index
    %c129_86 = arith.constant 129 : index
    %91 = vector.load %arg9[%c0_85, %c129_86] : memref<32x512xf32, #tpu.memory_space<vmem>>, vector<32x256xf32>
    %c1_87 = arith.constant 1 : index
    %c0_88 = arith.constant 0 : index
    %92 = vector.load %arg2[%c1_87, %c0_88] : memref<2x256xf32, #tpu.memory_space<vmem>>, vector<1x256xf32>
    %93 = vector.broadcast %92 : vector<1x256xf32> to vector<32x256xf32>
    %94 = arith.mulf %91, %93 : vector<32x256xf32>
    %c5 = arith.constant 5 : index
    %c0_89 = arith.constant 0 : index
    %c0_90 = arith.constant 0 : index
    %95 = vector.load %arg5[%c5, %c0_89, %c0_90] : memref<9x8x32xf32, #tpu.memory_space<vmem>>, vector<1x8x32xf32>
    %96 = vector.shape_cast %95 : vector<1x8x32xf32> to vector<8x32xf32>
    %cst_91 = arith.constant dense<0.000000e+00> : vector<8x256xf32>
    %97 = tpu.matmul %96, %94, %cst_91 {dimension_numbers = #tpu.dot_dimension_numbers<[1], [0], [0], [1], [0, 0, 1, 1], [], []>} : vector<8x32xf32>, vector<32x256xf32>, vector<8x256xf32> -> vector<8x256xf32>
    %98 = arith.addf %90, %97 : vector<8x256xf32>
    %c0_92 = arith.constant 0 : index
    %c143_93 = arith.constant 143 : index
    %99 = vector.load %arg9[%c0_92, %c143_93] : memref<32x512xf32, #tpu.memory_space<vmem>>, vector<32x256xf32>
    %c0_94 = arith.constant 0 : index
    %c0_95 = arith.constant 0 : index
    %100 = vector.load %arg2[%c0_94, %c0_95] : memref<2x256xf32, #tpu.memory_space<vmem>>, vector<1x256xf32>
    %101 = vector.broadcast %100 : vector<1x256xf32> to vector<32x256xf32>
    %102 = arith.mulf %99, %101 : vector<32x256xf32>
    %c6 = arith.constant 6 : index
    %c0_96 = arith.constant 0 : index
    %c0_97 = arith.constant 0 : index
    %103 = vector.load %arg5[%c6, %c0_96, %c0_97] : memref<9x8x32xf32, #tpu.memory_space<vmem>>, vector<1x8x32xf32>
    %104 = vector.shape_cast %103 : vector<1x8x32xf32> to vector<8x32xf32>
    %cst_98 = arith.constant dense<0.000000e+00> : vector<8x256xf32>
    %105 = tpu.matmul %104, %102, %cst_98 {dimension_numbers = #tpu.dot_dimension_numbers<[1], [0], [0], [1], [0, 0, 1, 1], [], []>} : vector<8x32xf32>, vector<32x256xf32>, vector<8x256xf32> -> vector<8x256xf32>
    %106 = arith.addf %98, %105 : vector<8x256xf32>
    %c0_99 = arith.constant 0 : index
    %c144_100 = arith.constant 144 : index
    %107 = vector.load %arg9[%c0_99, %c144_100] : memref<32x512xf32, #tpu.memory_space<vmem>>, vector<32x256xf32>
    %c7 = arith.constant 7 : index
    %c0_101 = arith.constant 0 : index
    %c0_102 = arith.constant 0 : index
    %108 = vector.load %arg5[%c7, %c0_101, %c0_102] : memref<9x8x32xf32, #tpu.memory_space<vmem>>, vector<1x8x32xf32>
    %109 = vector.shape_cast %108 : vector<1x8x32xf32> to vector<8x32xf32>
    %cst_103 = arith.constant dense<0.000000e+00> : vector<8x256xf32>
    %110 = tpu.matmul %109, %107, %cst_103 {dimension_numbers = #tpu.dot_dimension_numbers<[1], [0], [0], [1], [0, 0, 1, 1], [], []>} : vector<8x32xf32>, vector<32x256xf32>, vector<8x256xf32> -> vector<8x256xf32>
    %111 = arith.addf %106, %110 : vector<8x256xf32>
    %c0_104 = arith.constant 0 : index
    %c145_105 = arith.constant 145 : index
    %112 = vector.load %arg9[%c0_104, %c145_105] : memref<32x512xf32, #tpu.memory_space<vmem>>, vector<32x256xf32>
    %c1_106 = arith.constant 1 : index
    %c0_107 = arith.constant 0 : index
    %113 = vector.load %arg2[%c1_106, %c0_107] : memref<2x256xf32, #tpu.memory_space<vmem>>, vector<1x256xf32>
    %114 = vector.broadcast %113 : vector<1x256xf32> to vector<32x256xf32>
    %115 = arith.mulf %112, %114 : vector<32x256xf32>
    %c8 = arith.constant 8 : index
    %c0_108 = arith.constant 0 : index
    %c0_109 = arith.constant 0 : index
    %116 = vector.load %arg5[%c8, %c0_108, %c0_109] : memref<9x8x32xf32, #tpu.memory_space<vmem>>, vector<1x8x32xf32>
    %117 = vector.shape_cast %116 : vector<1x8x32xf32> to vector<8x32xf32>
    %cst_110 = arith.constant dense<0.000000e+00> : vector<8x256xf32>
    %118 = tpu.matmul %117, %115, %cst_110 {dimension_numbers = #tpu.dot_dimension_numbers<[1], [0], [0], [1], [0, 0, 1, 1], [], []>} : vector<8x32xf32>, vector<32x256xf32>, vector<8x256xf32> -> vector<8x256xf32>
    %119 = arith.addf %111, %118 : vector<8x256xf32>
    %c0_111 = arith.constant 0 : index
    %c0_112 = arith.constant 0 : index
    %120 = vector.load %arg6[%c0_111, %c0_112] : memref<8x1xf32, #tpu.memory_space<vmem>>, vector<8x1xf32>
    %121 = vector.broadcast %120 : vector<8x1xf32> to vector<8x256xf32>
    %122 = arith.addf %119, %121 : vector<8x256xf32>
    %c0_113 = arith.constant 0 : index
    %c0_114 = arith.constant 0 : index
    %c0_115 = arith.constant 0 : index
    %123 = vector.load %arg7[%c0_113, %c0_114, %c0_115] : memref<1x8x256xf32, #tpu.memory_space<vmem>>, vector<1x8x256xf32>
    %124 = vector.shape_cast %123 : vector<1x8x256xf32> to vector<8x256xf32>
    %125 = vector.shape_cast %122 : vector<8x256xf32> to vector<1x8x256xf32>
    tpu.vector_store %arg7[%c0_113, %c0_114, %c0_115], %125 {strides = array<i32>} : memref<1x8x256xf32, #tpu.memory_space<vmem>>, vector<1x8x256xf32>,
    return
  }
  func.func @transform_0(%arg0: i32) -> (i32, i32, i32) {
    %c0_i32 = arith.constant 0 : i32
    %c0_i32_0 = arith.constant 0 : i32
    %c0_i32_1 = arith.constant 0 : i32
    return %arg0, %c0_i32, %c0_i32_0 : i32, i32, i32
  }
  func.func @transform_1(%arg0: i32) -> (i32, i32) {
    %c0_i32 = arith.constant 0 : i32
    %c0_i32_0 = arith.constant 0 : i32
    %c0_i32_1 = arith.constant 0 : i32
    return %c0_i32, %c0_i32_0 : i32, i32
  }
  func.func @transform_2(%arg0: i32) -> (i32, i32, i32) {
    %c0_i32 = arith.constant 0 : i32
    %c0_i32_0 = arith.constant 0 : i32
    %c0_i32_1 = arith.constant 0 : i32
    %c0_i32_2 = arith.constant 0 : i32
    return %c0_i32, %c0_i32_0, %c0_i32_1 : i32, i32, i32
  }
  func.func @transform_3(%arg0: i32) -> (i32, i32) {
    %c0_i32 = arith.constant 0 : i32
    %c0_i32_0 = arith.constant 0 : i32
    %c0_i32_1 = arith.constant 0 : i32
    return %c0_i32, %c0_i32_0 : i32, i32
  }
  func.func @transform_4(%arg0: i32) -> (i32, i32, i32) {
    %c0_i32 = arith.constant 0 : i32
    %c0_i32_0 = arith.constant 0 : i32
    %c0_i32_1 = arith.constant 0 : i32
    %c0_i32_2 = arith.constant 0 : i32
    return %c0_i32, %c0_i32_0, %c0_i32_1 : i32, i32, i32
  }
  func.func @transform_5(%arg0: i32) -> (i32, i32) {
    %c0_i32 = arith.constant 0 : i32
    %c0_i32_0 = arith.constant 0 : i32
    %c0_i32_1 = arith.constant 0 : i32
    return %c0_i32, %c0_i32_0 : i32, i32
  }
  func.func @transform_6(%arg0: i32) -> (i32, i32, i32) {
    %c0_i32 = arith.constant 0 : i32
    %c0_i32_0 = arith.constant 0 : i32
    %c0_i32_1 = arith.constant 0 : i32
    return %arg0, %c0_i32, %c0_i32_0 : i32, i32, i32
  }
}

module attributes {stable_mosaic.version = 11 : i64} {
  func.func @_flow_head_kernel(%arg0: i32, %arg1: memref<1x4x256xf32, #tpu.memory_space<vmem>>, %arg2: memref<2x256xf32, #tpu.memory_space<vmem>>, %arg3: memref<3x32x24xf32, #tpu.memory_space<vmem>>, %arg4: memref<32x1xf32, #tpu.memory_space<vmem>>, %arg5: memref<9x8x32xf32, #tpu.memory_space<vmem>>, %arg6: memref<8x1xf32, #tpu.memory_space<vmem>>, %arg7: memref<1x8x256xf32, #tpu.memory_space<vmem>>, %arg8: memref<8x512xf32, #tpu.memory_space<vmem>>, %arg9: memref<32x512xf32, #tpu.memory_space<vmem>>) attributes {dimension_semantics = [#tpu.dimension_semantics<parallel>], iteration_bounds = array<i64: 2>, scalar_prefetch = 0 : i64, scratch_operands = 2 : i64, tpu.core_type = #tpu.core_type<tc>, window_params = [{transform_indices = @transform_0, window_bounds = array<i64: 1, 4, 256>}, {pipeline_mode = #tpu.pipeline_mode<synchronous>, transform_indices = @transform_1, window_bounds = array<i64: 2, 256>}, {pipeline_mode = #tpu.pipeline_mode<synchronous>, transform_indices = @transform_2, window_bounds = array<i64: 3, 32, 24>}, {pipeline_mode = #tpu.pipeline_mode<synchronous>, transform_indices = @transform_3, window_bounds = array<i64: 32, 1>}, {pipeline_mode = #tpu.pipeline_mode<synchronous>, transform_indices = @transform_4, window_bounds = array<i64: 9, 8, 32>}, {pipeline_mode = #tpu.pipeline_mode<synchronous>, transform_indices = @transform_5, window_bounds = array<i64: 8, 1>}, {transform_indices = @transform_6, window_bounds = array<i64: 1, 8, 256>}]} {
    %cst = arith.constant 0.000000e+00 : f32
    %0 = vector.broadcast %cst : f32 to vector<8x128xf32>
    %c0 = arith.constant 0 : index
    %c0_0 = arith.constant 0 : index
    %1 = vector.load %arg8[%c0, %c0_0] : memref<8x512xf32, #tpu.memory_space<vmem>>, vector<8x128xf32>
    tpu.vector_store %arg8[%c0, %c0_0], %0 {strides = array<i32>} : memref<8x512xf32, #tpu.memory_space<vmem>>, vector<8x128xf32>,
    %c0_1 = arith.constant 0 : index
    %c384 = arith.constant 384 : index
    %2 = vector.load %arg8[%c0_1, %c384] : memref<8x512xf32, #tpu.memory_space<vmem>>, vector<8x128xf32>
    tpu.vector_store %arg8[%c0_1, %c384], %0 {strides = array<i32>} : memref<8x512xf32, #tpu.memory_space<vmem>>, vector<8x128xf32>,
    %cst_2 = arith.constant 0.000000e+00 : f32
    %3 = vector.broadcast %cst_2 : f32 to vector<4x256xf32>
    %c4 = arith.constant 4 : index
    %c128 = arith.constant 128 : index
    %4 = vector.load %arg8[%c4, %c128] : memref<8x512xf32, #tpu.memory_space<vmem>>, vector<4x256xf32>
    tpu.vector_store %arg8[%c4, %c128], %3 {strides = array<i32>} : memref<8x512xf32, #tpu.memory_space<vmem>>, vector<4x256xf32>,
    %cst_3 = arith.constant 0.000000e+00 : f32
    %5 = vector.broadcast %cst_3 : f32 to vector<32x128xf32>
    %c0_4 = arith.constant 0 : index
    %c0_5 = arith.constant 0 : index
    %6 = vector.load %arg9[%c0_4, %c0_5] : memref<32x512xf32, #tpu.memory_space<vmem>>, vector<32x128xf32>
    tpu.vector_store %arg9[%c0_4, %c0_5], %5 {strides = array<i32>} : memref<32x512xf32, #tpu.memory_space<vmem>>, vector<32x128xf32>,
    %c0_6 = arith.constant 0 : index
    %c384_7 = arith.constant 384 : index
    %7 = vector.load %arg9[%c0_6, %c384_7] : memref<32x512xf32, #tpu.memory_space<vmem>>, vector<32x128xf32>
    tpu.vector_store %arg9[%c0_6, %c384_7], %5 {strides = array<i32>} : memref<32x512xf32, #tpu.memory_space<vmem>>, vector<32x128xf32>,
    %c0_8 = arith.constant 0 : index
    %c0_9 = arith.constant 0 : index
    %c0_10 = arith.constant 0 : index
    %8 = vector.load %arg1[%c0_8, %c0_9, %c0_10] : memref<1x4x256xf32, #tpu.memory_space<vmem>>, vector<1x4x256xf32>
    %9 = vector.shape_cast %8 : vector<1x4x256xf32> to vector<4x256xf32>
    %c0_11 = arith.constant 0 : index
    %c128_12 = arith.constant 128 : index
    %10 = vector.load %arg8[%c0_11, %c128_12] : memref<8x512xf32, #tpu.memory_space<vmem>>, vector<4x256xf32>
    tpu.vector_store %arg8[%c0_11, %c128_12], %9 {strides = array<i32>} : memref<8x512xf32, #tpu.memory_space<vmem>>, vector<4x256xf32>,
    %c0_13 = arith.constant 0 : index
    %c111 = arith.constant 111 : index
    %11 = vector.load %arg8[%c0_13, %c111] : memref<8x512xf32, #tpu.memory_space<vmem>>, vector<8x256xf32>
    %c0_14 = arith.constant 0 : index
    %c0_15 = arith.constant 0 : index
    %12 = vector.load %arg2[%c0_14, %c0_15] : memref<2x256xf32, #tpu.memory_space<vmem>>, vector<1x256xf32>
    %13 = vector.broadcast %12 : vector<1x256xf32> to vector<8x256xf32>
    %14 = arith.mulf %11, %13 : vector<8x256xf32>
    %c0_16 = arith.constant 0 : index
    %c112 = arith.constant 112 : index
    %15 = vector.load %arg8[%c0_16, %c112] : memref<8x512xf32, #tpu.memory_space<vmem>>, vector<8x256xf32>
    %c0_17 = arith.constant 0 : index
    %c113 = arith.constant 113 : index
    %16 = vector.load %arg8[%c0_17, %c113] : memref<8x512xf32, #tpu.memory_space<vmem>>, vector<8x256xf32>
    %c1 = arith.constant 1 : index
    %c0_18 = arith.constant 0 : index
    %17 = vector.load %arg2[%c1, %c0_18] : memref<2x256xf32, #tpu.memory_space<vmem>>, vector<1x256xf32>
    %18 = vector.broadcast %17 : vector<1x256xf32> to vector<8x256xf32>
    %19 = arith.mulf %16, %18 : vector<8x256xf32>
    %20 = tpu.concatenate %14, %15, %19 in 0 : vector<8x256xf32>, vector<8x256xf32>, vector<8x256xf32> -> vector<24x256xf32>
    %c0_19 = arith.constant 0 : index
    %c0_20 = arith.constant 0 : index
    %c0_21 = arith.constant 0 : index
    %21 = vector.load %arg3[%c0_19, %c0_20, %c0_21] : memref<3x32x24xf32, #tpu.memory_space<vmem>>, vector<1x32x24xf32>
    %22 = vector.shape_cast %21 : vector<1x32x24xf32> to vector<32x24xf32>
    %cst_22 = arith.constant dense<0.000000e+00> : vector<32x256xf32>
    %23 = tpu.matmul %22, %20, %cst_22 {dimension_numbers = #tpu.dot_dimension_numbers<[1], [0], [0], [1], [0, 0, 1, 1], [], []>} : vector<32x24xf32>, vector<24x256xf32>, vector<32x256xf32> -> vector<32x256xf32>
    %c0_23 = arith.constant 0 : index
    %c127 = arith.constant 127 : index
    %24 = vector.load %arg8[%c0_23, %c127] : memref<8x512xf32, #tpu.memory_space<vmem>>, vector<8x256xf32>
    %c0_24 = arith.constant 0 : index
    %c0_25 = arith.constant 0 : index
    %25 = vector.load %arg2[%c0_24, %c0_25] : memref<2x256xf32, #tpu.memory_space<vmem>>, vector<1x256xf32>
    %26 = vector.broadcast %25 : vector<1x256xf32> to vector<8x256xf32>
    %27 = arith.mulf %24, %26 : vector<8x256xf32>
    %c0_26 = arith.constant 0 : index
    %c128_27 = arith.constant 128 : index
    %28 = vector.load %arg8[%c0_26, %c128_27] : memref<8x512xf32, #tpu.memory_space<vmem>>, vector<8x256xf32>
    %c0_28 = arith.constant 0 : index
    %c129 = arith.constant 129 : index
    %29 = vector.load %arg8[%c0_28, %c129] : memref<8x512xf32, #tpu.memory_space<vmem>>, vector<8x256xf32>
    %c1_29 = arith.constant 1 : index
    %c0_30 = arith.constant 0 : index
    %30 = vector.load %arg2[%c1_29, %c0_30] : memref<2x256xf32, #tpu.memory_space<vmem>>, vector<1x256xf32>
    %31 = vector.broadcast %30 : vector<1x256xf32> to vector<8x256xf32>
    %32 = arith.mulf %29, %31 : vector<8x256xf32>
    %33 = tpu.concatenate %27, %28, %32 in 0 : vector<8x256xf32>, vector<8x256xf32>, vector<8x256xf32> -> vector<24x256xf32>
    %c1_31 = arith.constant 1 : index
    %c0_32 = arith.constant 0 : index
    %c0_33 = arith.constant 0 : index
    %34 = vector.load %arg3[%c1_31, %c0_32, %c0_33] : memref<3x32x24xf32, #tpu.memory_space<vmem>>, vector<1x32x24xf32>
    %35 = vector.shape_cast %34 : vector<1x32x24xf32> to vector<32x24xf32>
    %cst_34 = arith.constant dense<0.000000e+00> : vector<32x256xf32>
    %36 = tpu.matmul %35, %33, %cst_34 {dimension_numbers = #tpu.dot_dimension_numbers<[1], [0], [0], [1], [0, 0, 1, 1], [], []>} : vector<32x24xf32>, vector<24x256xf32>, vector<32x256xf32> -> vector<32x256xf32>
    %37 = arith.addf %23, %36 : vector<32x256xf32>
    %c0_35 = arith.constant 0 : index
    %c143 = arith.constant 143 : index
    %38 = vector.load %arg8[%c0_35, %c143] : memref<8x512xf32, #tpu.memory_space<vmem>>, vector<8x256xf32>
    %c0_36 = arith.constant 0 : index
    %c0_37 = arith.constant 0 : index
    %39 = vector.load %arg2[%c0_36, %c0_37] : memref<2x256xf32, #tpu.memory_space<vmem>>, vector<1x256xf32>
    %40 = vector.broadcast %39 : vector<1x256xf32> to vector<8x256xf32>
    %41 = arith.mulf %38, %40 : vector<8x256xf32>
    %c0_38 = arith.constant 0 : index
    %c144 = arith.constant 144 : index
    %42 = vector.load %arg8[%c0_38, %c144] : memref<8x512xf32, #tpu.memory_space<vmem>>, vector<8x256xf32>
    %c0_39 = arith.constant 0 : index
    %c145 = arith.constant 145 : index
    %43 = vector.load %arg8[%c0_39, %c145] : memref<8x512xf32, #tpu.memory_space<vmem>>, vector<8x256xf32>
    %c1_40 = arith.constant 1 : index
    %c0_41 = arith.constant 0 : index
    %44 = vector.load %arg2[%c1_40, %c0_41] : memref<2x256xf32, #tpu.memory_space<vmem>>, vector<1x256xf32>
    %45 = vector.broadcast %44 : vector<1x256xf32> to vector<8x256xf32>
    %46 = arith.mulf %43, %45 : vector<8x256xf32>
    %47 = tpu.concatenate %41, %42, %46 in 0 : vector<8x256xf32>, vector<8x256xf32>, vector<8x256xf32> -> vector<24x256xf32>
    %c2 = arith.constant 2 : index
    %c0_42 = arith.constant 0 : index
    %c0_43 = arith.constant 0 : index
    %48 = vector.load %arg3[%c2, %c0_42, %c0_43] : memref<3x32x24xf32, #tpu.memory_space<vmem>>, vector<1x32x24xf32>
    %49 = vector.shape_cast %48 : vector<1x32x24xf32> to vector<32x24xf32>
    %cst_44 = arith.constant dense<0.000000e+00> : vector<32x256xf32>
    %50 = tpu.matmul %49, %47, %cst_44 {dimension_numbers = #tpu.dot_dimension_numbers<[1], [0], [0], [1], [0, 0, 1, 1], [], []>} : vector<32x24xf32>, vector<24x256xf32>, vector<32x256xf32> -> vector<32x256xf32>
    %51 = arith.addf %37, %50 : vector<32x256xf32>
    %c0_45 = arith.constant 0 : index
    %c0_46 = arith.constant 0 : index
    %52 = vector.load %arg4[%c0_45, %c0_46] : memref<32x1xf32, #tpu.memory_space<vmem>>, vector<32x1xf32>
    %53 = vector.broadcast %52 : vector<32x1xf32> to vector<32x256xf32>
    %54 = arith.addf %51, %53 : vector<32x256xf32>
    %cst_47 = arith.constant 0.000000e+00 : f32
    %55 = vector.broadcast %cst_47 : f32 to vector<32x256xf32>
    %56 = arith.maximumf %54, %55 : vector<32x256xf32>
    %c0_48 = arith.constant 0 : index
    %c128_49 = arith.constant 128 : index
    %57 = vector.load %arg9[%c0_48, %c128_49] : memref<32x512xf32, #tpu.memory_space<vmem>>, vector<32x256xf32>
    tpu.vector_store %arg9[%c0_48, %c128_49], %56 {strides = array<i32>} : memref<32x512xf32, #tpu.memory_space<vmem>>, vector<32x256xf32>,
    %c0_50 = arith.constant 0 : index
    %c111_51 = arith.constant 111 : index
    %58 = vector.load %arg9[%c0_50, %c111_51] : memref<32x512xf32, #tpu.memory_space<vmem>>, vector<32x256xf32>
    %c0_52 = arith.constant 0 : index
    %c0_53 = arith.constant 0 : index
    %59 = vector.load %arg2[%c0_52, %c0_53] : memref<2x256xf32, #tpu.memory_space<vmem>>, vector<1x256xf32>
    %60 = vector.broadcast %59 : vector<1x256xf32> to vector<32x256xf32>
    %61 = arith.mulf %58, %60 : vector<32x256xf32>
    %c0_54 = arith.constant 0 : index
    %c0_55 = arith.constant 0 : index
    %c0_56 = arith.constant 0 : index
    %62 = vector.load %arg5[%c0_54, %c0_55, %c0_56] : memref<9x8x32xf32, #tpu.memory_space<vmem>>, vector<1x8x32xf32>
    %63 = vector.shape_cast %62 : vector<1x8x32xf32> to vector<8x32xf32>
    %cst_57 = arith.constant dense<0.000000e+00> : vector<8x256xf32>
    %64 = tpu.matmul %63, %61, %cst_57 {dimension_numbers = #tpu.dot_dimension_numbers<[1], [0], [0], [1], [0, 0, 1, 1], [], []>} : vector<8x32xf32>, vector<32x256xf32>, vector<8x256xf32> -> vector<8x256xf32>
    %c0_58 = arith.constant 0 : index
    %c112_59 = arith.constant 112 : index
    %65 = vector.load %arg9[%c0_58, %c112_59] : memref<32x512xf32, #tpu.memory_space<vmem>>, vector<32x256xf32>
    %c1_60 = arith.constant 1 : index
    %c0_61 = arith.constant 0 : index
    %c0_62 = arith.constant 0 : index
    %66 = vector.load %arg5[%c1_60, %c0_61, %c0_62] : memref<9x8x32xf32, #tpu.memory_space<vmem>>, vector<1x8x32xf32>
    %67 = vector.shape_cast %66 : vector<1x8x32xf32> to vector<8x32xf32>
    %cst_63 = arith.constant dense<0.000000e+00> : vector<8x256xf32>
    %68 = tpu.matmul %67, %65, %cst_63 {dimension_numbers = #tpu.dot_dimension_numbers<[1], [0], [0], [1], [0, 0, 1, 1], [], []>} : vector<8x32xf32>, vector<32x256xf32>, vector<8x256xf32> -> vector<8x256xf32>
    %69 = arith.addf %64, %68 : vector<8x256xf32>
    %c0_64 = arith.constant 0 : index
    %c113_65 = arith.constant 113 : index
    %70 = vector.load %arg9[%c0_64, %c113_65] : memref<32x512xf32, #tpu.memory_space<vmem>>, vector<32x256xf32>
    %c1_66 = arith.constant 1 : index
    %c0_67 = arith.constant 0 : index
    %71 = vector.load %arg2[%c1_66, %c0_67] : memref<2x256xf32, #tpu.memory_space<vmem>>, vector<1x256xf32>
    %72 = vector.broadcast %71 : vector<1x256xf32> to vector<32x256xf32>
    %73 = arith.mulf %70, %72 : vector<32x256xf32>
    %c2_68 = arith.constant 2 : index
    %c0_69 = arith.constant 0 : index
    %c0_70 = arith.constant 0 : index
    %74 = vector.load %arg5[%c2_68, %c0_69, %c0_70] : memref<9x8x32xf32, #tpu.memory_space<vmem>>, vector<1x8x32xf32>
    %75 = vector.shape_cast %74 : vector<1x8x32xf32> to vector<8x32xf32>
    %cst_71 = arith.constant dense<0.000000e+00> : vector<8x256xf32>
    %76 = tpu.matmul %75, %73, %cst_71 {dimension_numbers = #tpu.dot_dimension_numbers<[1], [0], [0], [1], [0, 0, 1, 1], [], []>} : vector<8x32xf32>, vector<32x256xf32>, vector<8x256xf32> -> vector<8x256xf32>
    %77 = arith.addf %69, %76 : vector<8x256xf32>
    %c0_72 = arith.constant 0 : index
    %c127_73 = arith.constant 127 : index
    %78 = vector.load %arg9[%c0_72, %c127_73] : memref<32x512xf32, #tpu.memory_space<vmem>>, vector<32x256xf32>
    %c0_74 = arith.constant 0 : index
    %c0_75 = arith.constant 0 : index
    %79 = vector.load %arg2[%c0_74, %c0_75] : memref<2x256xf32, #tpu.memory_space<vmem>>, vector<1x256xf32>
    %80 = vector.broadcast %79 : vector<1x256xf32> to vector<32x256xf32>
    %81 = arith.mulf %78, %80 : vector<32x256xf32>
    %c3 = arith.constant 3 : index
    %c0_76 = arith.constant 0 : index
    %c0_77 = arith.constant 0 : index
    %82 = vector.load %arg5[%c3, %c0_76, %c0_77] : memref<9x8x32xf32, #tpu.memory_space<vmem>>, vector<1x8x32xf32>
    %83 = vector.shape_cast %82 : vector<1x8x32xf32> to vector<8x32xf32>
    %cst_78 = arith.constant dense<0.000000e+00> : vector<8x256xf32>
    %84 = tpu.matmul %83, %81, %cst_78 {dimension_numbers = #tpu.dot_dimension_numbers<[1], [0], [0], [1], [0, 0, 1, 1], [], []>} : vector<8x32xf32>, vector<32x256xf32>, vector<8x256xf32> -> vector<8x256xf32>
    %85 = arith.addf %77, %84 : vector<8x256xf32>
    %c0_79 = arith.constant 0 : index
    %c128_80 = arith.constant 128 : index
    %86 = vector.load %arg9[%c0_79, %c128_80] : memref<32x512xf32, #tpu.memory_space<vmem>>, vector<32x256xf32>
    %c4_81 = arith.constant 4 : index
    %c0_82 = arith.constant 0 : index
    %c0_83 = arith.constant 0 : index
    %87 = vector.load %arg5[%c4_81, %c0_82, %c0_83] : memref<9x8x32xf32, #tpu.memory_space<vmem>>, vector<1x8x32xf32>
    %88 = vector.shape_cast %87 : vector<1x8x32xf32> to vector<8x32xf32>
    %cst_84 = arith.constant dense<0.000000e+00> : vector<8x256xf32>
    %89 = tpu.matmul %88, %86, %cst_84 {dimension_numbers = #tpu.dot_dimension_numbers<[1], [0], [0], [1], [0, 0, 1, 1], [], []>} : vector<8x32xf32>, vector<32x256xf32>, vector<8x256xf32> -> vector<8x256xf32>
    %90 = arith.addf %85, %89 : vector<8x256xf32>
    %c0_85 = arith.constant 0 : index
    %c129_86 = arith.constant 129 : index
    %91 = vector.load %arg9[%c0_85, %c129_86] : memref<32x512xf32, #tpu.memory_space<vmem>>, vector<32x256xf32>
    %c1_87 = arith.constant 1 : index
    %c0_88 = arith.constant 0 : index
    %92 = vector.load %arg2[%c1_87, %c0_88] : memref<2x256xf32, #tpu.memory_space<vmem>>, vector<1x256xf32>
    %93 = vector.broadcast %92 : vector<1x256xf32> to vector<32x256xf32>
    %94 = arith.mulf %91, %93 : vector<32x256xf32>
    %c5 = arith.constant 5 : index
    %c0_89 = arith.constant 0 : index
    %c0_90 = arith.constant 0 : index
    %95 = vector.load %arg5[%c5, %c0_89, %c0_90] : memref<9x8x32xf32, #tpu.memory_space<vmem>>, vector<1x8x32xf32>
    %96 = vector.shape_cast %95 : vector<1x8x32xf32> to vector<8x32xf32>
    %cst_91 = arith.constant dense<0.000000e+00> : vector<8x256xf32>
    %97 = tpu.matmul %96, %94, %cst_91 {dimension_numbers = #tpu.dot_dimension_numbers<[1], [0], [0], [1], [0, 0, 1, 1], [], []>} : vector<8x32xf32>, vector<32x256xf32>, vector<8x256xf32> -> vector<8x256xf32>
    %98 = arith.addf %90, %97 : vector<8x256xf32>
    %c0_92 = arith.constant 0 : index
    %c143_93 = arith.constant 143 : index
    %99 = vector.load %arg9[%c0_92, %c143_93] : memref<32x512xf32, #tpu.memory_space<vmem>>, vector<32x256xf32>
    %c0_94 = arith.constant 0 : index
    %c0_95 = arith.constant 0 : index
    %100 = vector.load %arg2[%c0_94, %c0_95] : memref<2x256xf32, #tpu.memory_space<vmem>>, vector<1x256xf32>
    %101 = vector.broadcast %100 : vector<1x256xf32> to vector<32x256xf32>
    %102 = arith.mulf %99, %101 : vector<32x256xf32>
    %c6 = arith.constant 6 : index
    %c0_96 = arith.constant 0 : index
    %c0_97 = arith.constant 0 : index
    %103 = vector.load %arg5[%c6, %c0_96, %c0_97] : memref<9x8x32xf32, #tpu.memory_space<vmem>>, vector<1x8x32xf32>
    %104 = vector.shape_cast %103 : vector<1x8x32xf32> to vector<8x32xf32>
    %cst_98 = arith.constant dense<0.000000e+00> : vector<8x256xf32>
    %105 = tpu.matmul %104, %102, %cst_98 {dimension_numbers = #tpu.dot_dimension_numbers<[1], [0], [0], [1], [0, 0, 1, 1], [], []>} : vector<8x32xf32>, vector<32x256xf32>, vector<8x256xf32> -> vector<8x256xf32>
    %106 = arith.addf %98, %105 : vector<8x256xf32>
    %c0_99 = arith.constant 0 : index
    %c144_100 = arith.constant 144 : index
    %107 = vector.load %arg9[%c0_99, %c144_100] : memref<32x512xf32, #tpu.memory_space<vmem>>, vector<32x256xf32>
    %c7 = arith.constant 7 : index
    %c0_101 = arith.constant 0 : index
    %c0_102 = arith.constant 0 : index
    %108 = vector.load %arg5[%c7, %c0_101, %c0_102] : memref<9x8x32xf32, #tpu.memory_space<vmem>>, vector<1x8x32xf32>
    %109 = vector.shape_cast %108 : vector<1x8x32xf32> to vector<8x32xf32>
    %cst_103 = arith.constant dense<0.000000e+00> : vector<8x256xf32>
    %110 = tpu.matmul %109, %107, %cst_103 {dimension_numbers = #tpu.dot_dimension_numbers<[1], [0], [0], [1], [0, 0, 1, 1], [], []>} : vector<8x32xf32>, vector<32x256xf32>, vector<8x256xf32> -> vector<8x256xf32>
    %111 = arith.addf %106, %110 : vector<8x256xf32>
    %c0_104 = arith.constant 0 : index
    %c145_105 = arith.constant 145 : index
    %112 = vector.load %arg9[%c0_104, %c145_105] : memref<32x512xf32, #tpu.memory_space<vmem>>, vector<32x256xf32>
    %c1_106 = arith.constant 1 : index
    %c0_107 = arith.constant 0 : index
    %113 = vector.load %arg2[%c1_106, %c0_107] : memref<2x256xf32, #tpu.memory_space<vmem>>, vector<1x256xf32>
    %114 = vector.broadcast %113 : vector<1x256xf32> to vector<32x256xf32>
    %115 = arith.mulf %112, %114 : vector<32x256xf32>
    %c8 = arith.constant 8 : index
    %c0_108 = arith.constant 0 : index
    %c0_109 = arith.constant 0 : index
    %116 = vector.load %arg5[%c8, %c0_108, %c0_109] : memref<9x8x32xf32, #tpu.memory_space<vmem>>, vector<1x8x32xf32>
    %117 = vector.shape_cast %116 : vector<1x8x32xf32> to vector<8x32xf32>
    %cst_110 = arith.constant dense<0.000000e+00> : vector<8x256xf32>
    %118 = tpu.matmul %117, %115, %cst_110 {dimension_numbers = #tpu.dot_dimension_numbers<[1], [0], [0], [1], [0, 0, 1, 1], [], []>} : vector<8x32xf32>, vector<32x256xf32>, vector<8x256xf32> -> vector<8x256xf32>
    %119 = arith.addf %111, %118 : vector<8x256xf32>
    %c0_111 = arith.constant 0 : index
    %c0_112 = arith.constant 0 : index
    %120 = vector.load %arg6[%c0_111, %c0_112] : memref<8x1xf32, #tpu.memory_space<vmem>>, vector<8x1xf32>
    %121 = vector.broadcast %120 : vector<8x1xf32> to vector<8x256xf32>
    %122 = arith.addf %119, %121 : vector<8x256xf32>
    %c0_113 = arith.constant 0 : index
    %c0_114 = arith.constant 0 : index
    %c0_115 = arith.constant 0 : index
    %123 = vector.load %arg7[%c0_113, %c0_114, %c0_115] : memref<1x8x256xf32, #tpu.memory_space<vmem>>, vector<1x8x256xf32>
    %124 = vector.shape_cast %123 : vector<1x8x256xf32> to vector<8x256xf32>
    %125 = vector.shape_cast %122 : vector<8x256xf32> to vector<1x8x256xf32>
    tpu.vector_store %arg7[%c0_113, %c0_114, %c0_115], %125 {strides = array<i32>} : memref<1x8x256xf32, #tpu.memory_space<vmem>>, vector<1x8x256xf32>,
    return
  }
  func.func @transform_0(%arg0: i32) -> (i32, i32, i32) {
    %c0_i32 = arith.constant 0 : i32
    %c0_i32_0 = arith.constant 0 : i32
    %c0_i32_1 = arith.constant 0 : i32
    return %arg0, %c0_i32, %c0_i32_0 : i32, i32, i32
  }
  func.func @transform_1(%arg0: i32) -> (i32, i32) {
    %c0_i32 = arith.constant 0 : i32
    %c0_i32_0 = arith.constant 0 : i32
    %c0_i32_1 = arith.constant 0 : i32
    return %c0_i32, %c0_i32_0 : i32, i32
  }
  func.func @transform_2(%arg0: i32) -> (i32, i32, i32) {
    %c0_i32 = arith.constant 0 : i32
    %c0_i32_0 = arith.constant 0 : i32
    %c0_i32_1 = arith.constant 0 : i32
    %c0_i32_2 = arith.constant 0 : i32
    return %c0_i32, %c0_i32_0, %c0_i32_1 : i32, i32, i32
  }
  func.func @transform_3(%arg0: i32) -> (i32, i32) {
    %c0_i32 = arith.constant 0 : i32
    %c0_i32_0 = arith.constant 0 : i32
    %c0_i32_1 = arith.constant 0 : i32
    return %c0_i32, %c0_i32_0 : i32, i32
  }
  func.func @transform_4(%arg0: i32) -> (i32, i32, i32) {
    %c0_i32 = arith.constant 0 : i32
    %c0_i32_0 = arith.constant 0 : i32
    %c0_i32_1 = arith.constant 0 : i32
    %c0_i32_2 = arith.constant 0 : i32
    return %c0_i32, %c0_i32_0, %c0_i32_1 : i32, i32, i32
  }
  func.func @transform_5(%arg0: i32) -> (i32, i32) {
    %c0_i32 = arith.constant 0 : i32
    %c0_i32_0 = arith.constant 0 : i32
    %c0_i32_1 = arith.constant 0 : i32
    return %c0_i32, %c0_i32_0 : i32, i32
  }
  func.func @transform_6(%arg0: i32) -> (i32, i32, i32) {
    %c0_i32 = arith.constant 0 : i32
    %c0_i32_0 = arith.constant 0 : i32
    %c0_i32_1 = arith.constant 0 : i32
    return %arg0, %c0_i32, %c0_i32_0 : i32, i32, i32
  }
}

</mosaic_0001>

<llo_original>
// kernel: tpu_custom_call.1
$region0: #{tpu_custom_call.1}
  #allocation0 [shape = 'u32[]', space=smem, size = 0x4, offset = 0x4, fixed_abs, tag = 'smem constant byte address 0x4 - core index']
  #allocation1 [shape = 'u32[144,128]{1,0:T(1,128)}', space=vmem, size = 0x12000, scoped, tag = 'internal scratch']
  #allocation2 [shape = 'f32[8,512]{1,0:T(8,128)}', space=vmem, size = 0x4000, scoped, tag = 'scratch operand']
  #allocation3 [shape = 'f32[32,512]{1,0:T(8,128)}', space=vmem, size = 0x10000, scoped, tag = 'scratch operand']
  %s0 = inlined_call_operand.vmem [shape: f32[2,4,256], index: 0, kind: input, shape index: {}]
  %s1 = inlined_call_operand.vmem [shape: f32[2,256], index: 1, kind: input, shape index: {}]
  %s2 = inlined_call_operand.vmem [shape: f32[3,32,24], index: 2, kind: input, shape index: {}]
  %s3 = inlined_call_operand.vmem [shape: f32[32,1], index: 3, kind: input, shape index: {}]
  %s4 = inlined_call_operand.vmem [shape: f32[9,8,32], index: 4, kind: input, shape index: {}]
  %s5 = inlined_call_operand.vmem [shape: f32[8,1], index: 5, kind: input, shape index: {}]
  %s6 = inlined_call_operand.hbm [shape: f32[2,8,256], index: 6, kind: output, shape index: {}]
  %s7 = sld [smem:[#allocation0]]
  $region57: #{tpu_custom_call.1} parent=0
    _
  %s9 = ssub.s32 1, %s7
  %s10 = scalar_select 0, %s9, %s7
  $region1: #{tpu_custom_call.1} parent=0
    #allocation4 [shape = 'u8[16384]{0}', space=vmem, size = 0x4000, scoped, tag = 'output window, operand 0']
    #allocation5 [shape = 's32[2]{0}', space=sflag, size = 0x8, scoped, tag = 'scoped memory for tpu_custom_call.1']
    %11 = vsyncpa [#allocation5], 0
    %s12 = scalar_lea.sflag [#allocation5], 1
    %13 = vsyncpa %s12, 0
    loop: start=0, step=1, limit=4
    $region2: #{tpu_custom_call.1} parent=1 // loop_pre_header
      _
    $region3: #{tpu_custom_call.1} parent=1 // loop_header
      %s15 = sphi 0, %s19
      %p16 = scmp.ge.s32.totalorder %s15, 4
      %s25 = sphi 0, %s27
      %s28 = sphi 0, %s25
      %s29 = sphi 0, %s28
      %s45 = sphi 0, %s29
      %s49 = sphi 0, %s49
      %s51 = sphi 0, %s49
      %s52 = sphi 0, %s51
      %s66 = sphi 0, %s52
      %s70 = sphi 0, %s70
      %s72 = sphi 0, %s70
      %s73 = sphi 0, %s72
      %s87 = sphi 0, %s73
      %s91 = sphi 0, %s91
      %s93 = sphi 0, %s91
      %s94 = sphi 0, %s93
      %s108 = sphi 0, %s94
      %s112 = sphi 0, %s112
      %s114 = sphi 0, %s112
      %s115 = sphi 0, %s114
      %s129 = sphi 0, %s115
      %s133 = sphi 0, %s133
      %s135 = sphi 0, %s133
      %s136 = sphi 0, %s135
      %s150 = sphi 0, %s136
      %s156 = sphi 0, %s158
      %s159 = sphi 0, %s156
      %s160 = sphi 0, %s159
      %s176 = sphi 0, %s160
    $region4: #{tpu_custom_call.1} parent=1 // loop_header_branch
      %18 = sbr.rel (%p16) target = $region8
    $region5: #{tpu_custom_call.1} parent=1 // loop_body
      %s20 = ssub.s32 %s15, 1
      %s21 = ssub.s32 %s15, 2
      %s22 = sadd.s32 %s15, 1
      %s23 = ssub.s32 %s15, %s22
      %p24 = scmp.eq.s32.totalorder %s23, 0
      %s26 = sadd.s32 %s25, 1
      %s27 = scalar_select %p24, %s25, %s26
      %p30 = pneg %p24
      %p31 = scmp.eq.s32.totalorder %s15, 1
      %p32 = por %p30, %p31
      %p33 = scmp.ne.s32.totalorder %s25, %s28
      %p34 = scmp.eq.s32.totalorder %s15, 0
      %p35 = por %p33, %p34
      %p36 = scmp.ne.s32.totalorder %s25, %s28
      %p37 = scmp.eq.s32.totalorder %s20, 1
      %p38 = por %p36, %p37
      %p39 = scmp.ne.s32.totalorder %s28, %s29
      %p40 = scmp.eq.s32.totalorder %s20, 0
      %p41 = por %p39, %p40
      %p42 = scmp.ne.s32.totalorder %s28, %s29
      %p43 = scmp.eq.s32.totalorder %s21, 1
      %p44 = por %p42, %p43
      %p46 = scmp.ne.s32.totalorder %s29, %s45
      %p47 = scmp.eq.s32.totalorder %s21, 0
      %p48 = por %p46, %p47
      %s50 = sadd.s32 %s49, 1
      %p53 = scmp.eq.s32.totalorder %s15, 1
      %p54 = scmp.ne.s32.totalorder %s49, %s51
      %p55 = scmp.eq.s32.totalorder %s15, 0
      %p56 = por %p54, %p55
      %p57 = scmp.ne.s32.totalorder %s49, %s51
      %p58 = scmp.eq.s32.totalorder %s20, 1
      %p59 = por %p57, %p58
      %p60 = scmp.ne.s32.totalorder %s51, %s52
      %p61 = scmp.eq.s32.totalorder %s20, 0
      %p62 = por %p60, %p61
      %p63 = scmp.ne.s32.totalorder %s51, %s52
      %p64 = scmp.eq.s32.totalorder %s21, 1
      %p65 = por %p63, %p64
      %p67 = scmp.ne.s32.totalorder %s52, %s66
      %p68 = scmp.eq.s32.totalorder %s21, 0
      %p69 = por %p67, %p68
      %s71 = sadd.s32 %s70, 1
      %p74 = scmp.eq.s32.totalorder %s15, 1
      %p75 = scmp.ne.s32.totalorder %s70, %s72
      %p76 = scmp.eq.s32.totalorder %s15, 0
      %p77 = por %p75, %p76
      %p78 = scmp.ne.s32.totalorder %s70, %s72
      %p79 = scmp.eq.s32.totalorder %s20, 1
      %p80 = por %p78, %p79
      %p81 = scmp.ne.s32.totalorder %s72, %s73
      %p82 = scmp.eq.s32.totalorder %s20, 0
      %p83 = por %p81, %p82
      %p84 = scmp.ne.s32.totalorder %s72, %s73
      %p85 = scmp.eq.s32.totalorder %s21, 1
      %p86 = por %p84, %p85
      %p88 = scmp.ne.s32.totalorder %s73, %s87
      %p89 = scmp.eq.s32.totalorder %s21, 0
      %p90 = por %p88, %p89
      %s92 = sadd.s32 %s91, 1
      %p95 = scmp.eq.s32.totalorder %s15, 1
      %p96 = scmp.ne.s32.totalorder %s91, %s93
      %p97 = scmp.eq.s32.totalorder %s15, 0
      %p98 = por %p96, %p97
      %p99 = scmp.ne.s32.totalorder %s91, %s93
      %p100 = scmp.eq.s32.totalorder %s20, 1
      %p101 = por %p99, %p100
      %p102 = scmp.ne.s32.totalorder %s93, %s94
      %p103 = scmp.eq.s32.totalorder %s20, 0
      %p104 = por %p102, %p103
      %p105 = scmp.ne.s32.totalorder %s93, %s94
      %p106 = scmp.eq.s32.totalorder %s21, 1
      %p107 = por %p105, %p106
      %p109 = scmp.ne.s32.totalorder %s94, %s108
      %p110 = scmp.eq.s32.totalorder %s21, 0
      %p111 = por %p109, %p110
      %s113 = sadd.s32 %s112, 1
      %p116 = scmp.eq.s32.totalorder %s15, 1
      %p117 = scmp.ne.s32.totalorder %s112, %s114
      %p118 = scmp.eq.s32.totalorder %s15, 0
      %p119 = por %p117, %p118
      %p120 = scmp.ne.s32.totalorder %s112, %s114
      %p121 = scmp.eq.s32.totalorder %s20, 1
      %p122 = por %p120, %p121
      %p123 = scmp.ne.s32.totalorder %s114, %s115
      %p124 = scmp.eq.s32.totalorder %s20, 0
      %p125 = por %p123, %p124
      %p126 = scmp.ne.s32.totalorder %s114, %s115
      %p127 = scmp.eq.s32.totalorder %s21, 1
      %p128 = por %p126, %p127
      %p130 = scmp.ne.s32.totalorder %s115, %s129
      %p131 = scmp.eq.s32.totalorder %s21, 0
      %p132 = por %p130, %p131
      %s134 = sadd.s32 %s133, 1
      %p137 = scmp.eq.s32.totalorder %s15, 1
      %p138 = scmp.ne.s32.totalorder %s133, %s135
      %p139 = scmp.eq.s32.totalorder %s15, 0
      %p140 = por %p138, %p139
      %p141 = scmp.ne.s32.totalorder %s133, %s135
      %p142 = scmp.eq.s32.totalorder %s20, 1
      %p143 = por %p141, %p142
      %p144 = scmp.ne.s32.totalorder %s135, %s136
      %p145 = scmp.eq.s32.totalorder %s20, 0
      %p146 = por %p144, %p145
      %p147 = scmp.ne.s32.totalorder %s135, %s136
      %p148 = scmp.eq.s32.totalorder %s21, 1
      %p149 = por %p147, %p148
      %p151 = scmp.ne.s32.totalorder %s136, %s150
      %p152 = scmp.eq.s32.totalorder %s21, 0
      %p153 = por %p151, %p152
      %s154 = ssub.s32 %s15, %s22
      %p155 = scmp.eq.s32.totalorder %s154, 0
      %s157 = sadd.s32 %s156, 1
      %s158 = scalar_select %p155, %s156, %s157
      %p161 = pneg %p155
      %p162 = scmp.eq.s32.totalorder %s15, 1
      %p163 = por %p161, %p162
      %p164 = scmp.ne.s32.totalorder %s156, %s159
      %p165 = scmp.eq.s32.totalorder %s15, 0
      %p166 = por %p164, %p165
      %p167 = scmp.ne.s32.totalorder %s156, %s159
      %p168 = scmp.eq.s32.totalorder %s20, 1
      %p169 = por %p167, %p168
      %p170 = scmp.ne.s32.totalorder %s159, %s160
      %p171 = scmp.eq.s32.totalorder %s20, 0
      %p172 = por %p170, %p171
      %p173 = scmp.ne.s32.totalorder %s159, %s160
      %p174 = scmp.eq.s32.totalorder %s21, 1
      %p175 = por %p173, %p174
      %p177 = scmp.ne.s32.totalorder %s160, %s176
      %p178 = scmp.eq.s32.totalorder %s21, 0
      %p179 = por %p177, %p178
      %p180 = scmp.le.s32.totalorder 1, %s15
      %p181 = scmp.lt.s32.totalorder %s15, 3
      %p182 = pnand %p180, %p181
      %p183 = pneg %p182
      // Predicated region
      $region9: #{tpu_custom_call.1} parent=5 // pred_check
        _
      $region10: #{tpu_custom_call.1} parent=5 // pred_check_branch
        %185 = sbr.rel (%p182) target = $region12
      $region11: #{tpu_custom_call.1} parent=5 // pred_region
        %s186 = ssub.s32 %s15, 1
        // Predicated region
        $region13: #{tpu_custom_call.1} parent=11 // pred_check
          %p187 = pneg %p62
        $region14: #{tpu_custom_call.1} parent=11 // pred_check_branch
          %189 = sbr.rel (%p187) target = $region16
        $region15: #{tpu_custom_call.1} parent=11 // pred_region
          _
        $region16: #{tpu_custom_call.1} parent=11 // pred_fallthru
          _
        // Predicated region
        $region17: #{tpu_custom_call.1} parent=11 // pred_check
          %p190 = pneg %p83
        $region18: #{tpu_custom_call.1} parent=11 // pred_check_branch
          %192 = sbr.rel (%p190) target = $region20
        $region19: #{tpu_custom_call.1} parent=11 // pred_region
          _
        $region20: #{tpu_custom_call.1} parent=11 // pred_fallthru
          _
        // Predicated region
        $region21: #{tpu_custom_call.1} parent=11 // pred_check
          %p193 = pneg %p104
        $region22: #{tpu_custom_call.1} parent=11 // pred_check_branch
          %195 = sbr.rel (%p193) target = $region24
        $region23: #{tpu_custom_call.1} parent=11 // pred_region
          _
        $region24: #{tpu_custom_call.1} parent=11 // pred_fallthru
          _
        // Predicated region
        $region25: #{tpu_custom_call.1} parent=11 // pred_check
          %p196 = pneg %p125
        $region26: #{tpu_custom_call.1} parent=11 // pred_check_branch
          %198 = sbr.rel (%p196) target = $region28
        $region27: #{tpu_custom_call.1} parent=11 // pred_region
          _
        $region28: #{tpu_custom_call.1} parent=11 // pred_fallthru
          _
        // Predicated region
        $region29: #{tpu_custom_call.1} parent=11 // pred_check
          %p199 = pneg %p146
        $region30: #{tpu_custom_call.1} parent=11 // pred_check_branch
          %201 = sbr.rel (%p199) target = $region32
        $region31: #{tpu_custom_call.1} parent=11 // pred_region
          _
        $region32: #{tpu_custom_call.1} parent=11 // pred_fallthru
          _
      $region12: #{tpu_custom_call.1} parent=5 // pred_fallthru
        _
      %p202 = scmp.lt.s32.totalorder %s15, 2
      // Predicated region
      $region33: #{tpu_custom_call.1} parent=5 // pred_check
        %p203 = pneg %p202
      $region34: #{tpu_custom_call.1} parent=5 // pred_check_branch
        %205 = sbr.rel (%p203) target = $region36
      $region35: #{tpu_custom_call.1} parent=5 // pred_region
        // Predicated region
        $region37: #{tpu_custom_call.1} parent=35 // pred_check
          %p206 = pneg %p35
        $region38: #{tpu_custom_call.1} parent=35 // pred_check_branch
          %208 = sbr.rel (%p206) target = $region40
        $region39: #{tpu_custom_call.1} parent=35 // pred_region
          %p209 = scmp.lt.s32.totalorder %s15, 1
          %s210 = scalar_select %p209, %s15, 1
          %s211 = smul.addr %s210, 2
          %s212 = smul.addr %s211, 4
          %s213 = scalar_lea.vmem %s0, %s212
        $region40: #{tpu_custom_call.1} parent=35 // pred_fallthru
          _
      $region36: #{tpu_custom_call.1} parent=5 // pred_fallthru
        _
      %p214 = scmp.le.s32.totalorder 1, %s15
      %p215 = scmp.lt.s32.totalorder %s15, 3
      %p216 = pnand %p214, %p215
      %p217 = pneg %p216
      // Predicated region
      $region41: #{tpu_custom_call.1} parent=5 // pred_check
        _
      $region42: #{tpu_custom_call.1} parent=5 // pred_check_branch
        %219 = sbr.rel (%p216) target = $region44
      $region43: #{tpu_custom_call.1} parent=5 // pred_region
        %s220 = ssub.s32 %s15, 1
        %p221 = scmp.lt.s32.totalorder %s20, 1
        %s222 = scalar_select %p221, %s20, 1
        %s223 = smul.addr %s222, 2
        %s224 = smul.addr %s223, 4
        %s225 = scalar_lea.vmem %s0, %s224
        %p226 = pneg %p41
        %p227 = pneg %p38
        %p228 = pneg %p62
        %p229 = pneg %p59
        %p230 = pneg %p83
        %p231 = pneg %p80
        %p232 = pneg %p104
        %p233 = pneg %p101
        %p234 = pneg %p125
        %p235 = pneg %p122
        %p236 = pneg %p146
        %p237 = pneg %p143
        %p238 = pneg %p172
        %p239 = pneg %p169
        %s240 = sand.u32 %s159, 1
        %s241 = scalar_lea.sflag [#allocation5], %s240
        %s242 = sand.u32 %s159, 1
        %s243 = smul.addr %s242, 16
        %s244 = scalar_lea.vmem [#allocation4], %s243
        %p245 = scmp.lt.s32.totalorder %s20, 1
        %s246 = scalar_select %p245, %s20, 1
        %s247 = smul.addr %s246, 2
        %s248 = smul.addr %s247, 4
        %s249 = scalar_lea.vmem %s0, %s248
        %250 = vst [vmem:[#allocation2] sm:$0xff] 0.0
        %251 = vst [vmem:[#allocation2 + $0x18] sm:$0xff] 0.0
        %252 = vst [vmem:[#allocation2 + $0x8] sm:$0xf0] 0.0
        %253 = vst [vmem:[#allocation2 + $0x10] sm:$0xf0] 0.0
        %254 = vst [vmem:[#allocation3] sm:$0xff] 0.0
        %255 = vst [vmem:[#allocation3 + $0x20] sm:$0xff] 0.0
        %256 = vst [vmem:[#allocation3 + $0x40] sm:$0xff] 0.0
        %257 = vst [vmem:[#allocation3 + $0x60] sm:$0xff] 0.0
        %258 = vst [vmem:[#allocation3 + $0x18] sm:$0xff] 0.0
        %259 = vst [vmem:[#allocation3 + $0x38] sm:$0xff] 0.0
        %260 = vst [vmem:[#allocation3 + $0x58] sm:$0xff] 0.0
        %261 = vst [vmem:[#allocation3 + $0x78] sm:$0xff] 0.0
        %v262 = vld [vmem:[%s249] sm:$0xff]
        %v264 = vcombine.high %v262, %v262
        %266 = vst [vmem:[#allocation2 + $0x8] sm:$0xf] %v262
        %267 = vst [vmem:[#allocation2 + $0x10] sm:$0xf] %v264
        %v268 = vld [vmem:[#allocation2] sm:$0xff]
        %v269 = vld [vmem:[#allocation2 + $0x8] sm:$0xff]
        %v270 = vld [vmem:[#allocation2 + $0x10] sm:$0xff]
        %v271 = vld [vmem:[%s1] ss:$2 sm:$0x3]
        %v273 = vlaneseq
        %v274 = vshrl.u32 %v273, 7
        %v275 = vsub.s32 0, %v274
        %v276 = vrot.slane %v271, %v275
        %v277 = vlaneseq
        %v278 = vshrl.u32 %v277, 7
        %v279 = vsub.s32 1, %v278
        %v280 = vrot.slane %v271, %v279
        %281 = vrot.lane.b32.xlu0 %v276, 111
        %v282 = vpop.permute.xlu0 %281
        %283 = vrot.lane.b32.xlu0 %v280, 111
        %v284 = vpop.permute.xlu0 %283
        %vm285 = vcmask 908288
        %v286 = vsel %vm285, %v282, %v284
        %v290 = vmul.f32 %v268, %v282
        %v291 = vmul.f32 %v269, %v286
        %v292 = vmul.f32 %v270, %v284
        %s293 = scalar_lea.vmem %s1, 1
        %v294 = vld [vmem:[%s293] ss:$2 sm:$0x3]
        %v296 = vlaneseq
        %v297 = vshrl.u32 %v296, 7
        %v298 = vsub.s32 0, %v297
        %v299 = vrot.slane %v294, %v298
        %v300 = vlaneseq
        %v301 = vshrl.u32 %v300, 7
        %v302 = vsub.s32 1, %v301
        %v303 = vrot.slane %v294, %v302
        %304 = vrot.lane.b32.xlu0 %v299, 113
        %v305 = vpop.permute.xlu0 %304
        %306 = vrot.lane.b32.xlu0 %v303, 113
        %v307 = vpop.permute.xlu0 %306
        %vm308 = vcmask 924672
        %v309 = vsel %vm308, %v305, %v307
        %v313 = vmul.f32 %v268, %v305
        %v314 = vmul.f32 %v269, %v309
        %v315 = vmul.f32 %v270, %v307
        %319 = vrot.lane.b32.xlu0 %v268, 127
        %v320 = vpop.permute.xlu0 %319
        %321 = vrot.lane.b32.xlu0 %v269, 127
        %v322 = vpop.permute.xlu0 %321
        %323 = vrot.lane.b32.xlu0 %v270, 127
        %v324 = vpop.permute.xlu0 %323
        %vm325 = vcmask 1039360
        %v326 = vsel %vm325, %v320, %v322
        %v327 = vsel %vm325, %v322, %v324
        %331 = vrot.lane.b32.xlu0 %v313, 126
        %v332 = vpop.permute.xlu0 %331
        %333 = vrot.lane.b32.xlu0 %v314, 126
        %v334 = vpop.permute.xlu0 %333
        %335 = vrot.lane.b32.xlu0 %v315, 126
        %v336 = vpop.permute.xlu0 %335
        %vm337 = vcmask 1031168
        %v338 = vsel %vm337, %v332, %v334
        %v339 = vsel %vm337, %v334, %v336
        %v340 = vld [vmem:[%s2] sm:$0xff]
        %v341 = vld [vmem:[%s2 + $0x8] sm:$0xff]
        %v342 = vld [vmem:[%s2 + $0x10] sm:$0xff]
        %v343 = vld [vmem:[%s2 + $0x18] sm:$0xff]
        %344 = vrot.lane.b32.xlu0 %v276, 127
        %v345 = vpop.permute.xlu0 %344
        %346 = vrot.lane.b32.xlu0 %v280, 127
        %v347 = vpop.permute.xlu0 %346
        %v348 = vsel %vm325, %v345, %v347
        %v352 = vmul.f32 %v268, %v345
        %v353 = vmul.f32 %v269, %v348
        %v354 = vmul.f32 %v270, %v347
        %v355 = vld [vmem:[#allocation2 + $0x8] sm:$0xff]
        %v356 = vld [vmem:[#allocation2 + $0x10] sm:$0xff]
        %v357 = vld [vmem:[#allocation2 + $0x18] sm:$0xff]
        %358 = vrot.lane.b32.xlu0 %v299, 1
        %v359 = vpop.permute.xlu0 %358
        %360 = vrot.lane.b32.xlu0 %v303, 1
        %v361 = vpop.permute.xlu0 %360
        %vm362 = vcmask 7168
        %v363 = vsel %vm362, %v359, %v361
        %v367 = vmul.f32 %v355, %v359
        %v368 = vmul.f32 %v356, %v363
        %v369 = vmul.f32 %v357, %v361
        %373 = vrot.lane.b32.xlu0 %v367, 126
        %v374 = vpop.permute.xlu0 %373
        %375 = vrot.lane.b32.xlu0 %v368, 126
        %v376 = vpop.permute.xlu0 %375
        %377 = vrot.lane.b32.xlu0 %v369, 126
        %v378 = vpop.permute.xlu0 %377
        %v379 = vsel %vm337, %v374, %v376
        %v380 = vsel %vm337, %v376, %v378
        %s381 = scalar_lea.vmem %s2, 32
        %v382 = vld [vmem:[%s381] sm:$0xff]
        %v383 = vld [vmem:[%s381 + $0x8] sm:$0xff]
        %v384 = vld [vmem:[%s381 + $0x10] sm:$0xff]
        %v385 = vld [vmem:[%s381 + $0x18] sm:$0xff]
        %389 = vrot.lane.b32.xlu0 %v352, 1
        %v390 = vpop.permute.xlu0 %389
        %391 = vrot.lane.b32.xlu0 %v353, 1
        %v392 = vpop.permute.xlu0 %391
        %393 = vrot.lane.b32.xlu0 %v354, 1
        %v394 = vpop.permute.xlu0 %393
        %395 = vrot.lane.b32.xlu0 %v322, 1
        %v396 = vpop.permute.xlu0 %395
        %397 = vrot.lane.b32.xlu0 %v327, 1
        %v398 = vpop.permute.xlu0 %397
        %399 = vrot.lane.b32.xlu0 %v324, 1
        %v400 = vpop.permute.xlu0 %399
        %401 = vrot.lane.b32.xlu0 %v374, 1
        %v402 = vpop.permute.xlu0 %401
        %403 = vrot.lane.b32.xlu0 %v379, 1
        %v404 = vpop.permute.xlu0 %403
        %405 = vrot.lane.b32.xlu0 %v380, 1
        %v406 = vpop.permute.xlu0 %405
        %v407 = vsel %vm362, %v390, %v392
        %v408 = vsel %vm362, %v392, %v394
        %v409 = vsel %vm362, %v396, %v398
        %v410 = vsel %vm362, %v398, %v400
        %v411 = vsel %vm362, %v402, %v404
        %v412 = vsel %vm362, %v404, %v406
        %vm419 = vcmask 195584
        %v421 = vsel %vm419, %v382, 0
        %v424 = vsel %vm419, %v383, 0
        %v427 = vsel %vm419, %v384, 0
        %v430 = vsel %vm419, %v385, 0
        %432 = vmatprep.subr.mxu0 %v408
        %433 = vmatpush1.msra.mxu0 %v407
        %434 = vmatprep.subr.mxu0 %v410
        %435 = vmatpush1.msra.mxu0 %v409
        %436 = vmatprep.subr.mxu0 %v412
        %437 = vmatpush1.msra.mxu0 %v411
        %438 = vmatprep.subr.mxu0 0.0
        %439 = vmatpush1.msra.mxu0 0.0
        %440 = vmatprep.subr.mxu0 0.0
        %441 = vmatpush1.msra.mxu0 0.0
        %442 = vmatprep.subr.mxu0 0.0
        %443 = vmatpush1.msra.mxu0 0.0
        %444 = vmatprep.subr.mxu0 0.0
        %445 = vmatpush1.msra.mxu0 0.0
        %446 = vmatprep.subr.mxu0 0.0
        %447 = vmatpush1.msra.mxu0 0.0
        %448 = vmatprep.subr.mxu0 0.0
        %449 = vmatpush1.msra.mxu0 0.0
        %450 = vmatprep.subr.mxu0 0.0
        %451 = vmatpush1.msra.mxu0 0.0
        %452 = vmatprep.subr.mxu0 0.0
        %453 = vmatpush1.msra.mxu0 0.0
        %454 = vmatprep.subr.mxu0 0.0
        %455 = vmatpush1.msra.mxu0 0.0
        %456 = vmatprep.subr.mxu0 0.0
        %457 = vmatpush1.msra.mxu0 0.0
        %458 = vmatprep.subr.mxu0 0.0
        %459 = vmatpush1.msra.mxu0 0.0
        %460 = vmatprep.subr.mxu0 0.0
        %461 = vmatpush1.msra.mxu0 0.0
        %462 = vmatprep.subr.mxu0 0.0
        %463 = vmatpush1.msra.mxu0 0.0
        %464 = vmatprep.subr.mxu0 0.0
        %465 = vmatpush1.msra.mxu0 0.0
        %466 = vmatprep.subr.mxu0 0.0
        %467 = vmatpush1.msra.mxu0 0.0
        %468 = vmatprep.subr.mxu0 0.0
        %469 = vmatpush1.msra.mxu0 0.0
        %470 = vmatprep.subr.mxu0 0.0
        %471 = vmatpush1.msra.mxu0 0.0
        %472 = vmatprep.subr.mxu0 0.0
        %473 = vmatpush1.msra.mxu0 0.0
        %474 = vmatprep.subr.mxu0 0.0
        %475 = vmatpush1.msra.mxu0 0.0
        %476 = vmatprep.subr.mxu0 0.0
        %477 = vmatpush1.msra.mxu0 0.0
        %478 = vmatprep.subr.mxu0 0.0
        %479 = vmatpush1.msra.mxu0 0.0
        %480 = vmatprep.subr.mxu0 0.0
        %481 = vmatpush1.msra.mxu0 0.0
        %482 = vmatprep.subr.mxu0 0.0
        %483 = vmatpush1.msra.mxu0 0.0
        %484 = vmatprep.subr.mxu0 0.0
        %485 = vmatpush1.msra.mxu0 0.0
        %486 = vmatprep.subr.mxu0 0.0
        %487 = vmatpush1.msra.mxu0 0.0
        %488 = vmatprep.subr.mxu0 0.0
        %489 = vmatpush1.msra.mxu0 0.0
        %490 = vmatprep.subr.mxu0 0.0
        %491 = vmatpush1.msra.mxu0 0.0
        %492 = vmatprep.subr.mxu0 0.0
        %493 = vmatpush1.msra.mxu0 0.0
        %494 = vmatprep.subr.mxu0 0.0
        %495 = vmatpush1.msra.mxu0 0.0
        %496 = vmatprep.mubr.f32.mxu0 0.0
        %497 = vmatmul.mubr.f32.gmra.mrb[0].mxu0 %v421
        %v498 = vpop.f32.mrb[0].mxu0
        %v499 = vadd.f32 0.0, %v498
        %v500 = vpop.f32.mrb[0].mxu0
        %v501 = vadd.f32 0.0, %v500
        %502 = vmatprep.mubr.f32.mxu0 0.0
        %503 = vmatmul.mubr.f32.gmra.mrb[0].mxu0 %v424
        %v504 = vpop.f32.mrb[0].mxu0
        %v505 = vadd.f32 0.0, %v504
        %v506 = vpop.f32.mrb[0].mxu0
        %v507 = vadd.f32 0.0, %v506
        %508 = vmatprep.mubr.f32.mxu0 0.0
        %509 = vmatmul.mubr.f32.gmra.mrb[0].mxu0 %v427
        %v510 = vpop.f32.mrb[0].mxu0
        %v511 = vadd.f32 0.0, %v510
        %v512 = vpop.f32.mrb[0].mxu0
        %v513 = vadd.f32 0.0, %v512
        %514 = vmatprep.mubr.f32.mxu0 0.0
        %515 = vmatmul.mubr.f32.gmra.mrb[0].mxu0 %v430
        %v516 = vpop.f32.mrb[0].mxu0
        %v517 = vadd.f32 0.0, %v516
        %v518 = vpop.f32.mrb[0].mxu0
        %v519 = vadd.f32 0.0, %v518
        %520 = vdwg.mxu0
        %524 = vrot.lane.b32.xlu0 %v290, 17
        %v525 = vpop.permute.xlu0 %524
        %526 = vrot.lane.b32.xlu0 %v291, 17
        %v527 = vpop.permute.xlu0 %526
        %528 = vrot.lane.b32.xlu0 %v292, 17
        %v529 = vpop.permute.xlu0 %528
        %530 = vrot.lane.b32.xlu0 %v326, 17
        %v531 = vpop.permute.xlu0 %530
        %532 = vrot.lane.b32.xlu0 %v327, 17
        %v533 = vpop.permute.xlu0 %532
        %534 = vrot.lane.b32.xlu0 %v324, 17
        %v535 = vpop.permute.xlu0 %534
        %536 = vrot.lane.b32.xlu0 %v338, 17
        %v537 = vpop.permute.xlu0 %536
        %538 = vrot.lane.b32.xlu0 %v339, 17
        %v539 = vpop.permute.xlu0 %538
        %540 = vrot.lane.b32.xlu0 %v336, 17
        %v541 = vpop.permute.xlu0 %540
        %vm542 = vcmask 138240
        %v543 = vsel %vm542, %v525, %v527
        %v544 = vsel %vm542, %v527, %v529
        %v545 = vsel %vm542, %v531, %v533
        %v546 = vsel %vm542, %v533, %v535
        %v547 = vsel %vm542, %v537, %v539
        %v548 = vsel %vm542, %v539, %v541
        %v556 = vsel %vm419, %v340, 0
        %v559 = vsel %vm419, %v341, 0
        %v562 = vsel %vm419, %v342, 0
        %v565 = vsel %vm419, %v343, 0
        %567 = vmatprep.subr.mxu0 %v544
        %568 = vmatpush1.msra.mxu0 %v543
        %569 = vmatprep.subr.mxu0 %v546
        %570 = vmatpush1.msra.mxu0 %v545
        %571 = vmatprep.subr.mxu0 %v548
        %572 = vmatpush1.msra.mxu0 %v547
        %573 = vmatprep.subr.mxu0 0.0
        %574 = vmatpush1.msra.mxu0 0.0
        %575 = vmatprep.subr.mxu0 0.0
        %576 = vmatpush1.msra.mxu0 0.0
        %577 = vmatprep.subr.mxu0 0.0
        %578 = vmatpush1.msra.mxu0 0.0
        %579 = vmatprep.subr.mxu0 0.0
        %580 = vmatpush1.msra.mxu0 0.0
        %581 = vmatprep.subr.mxu0 0.0
        %582 = vmatpush1.msra.mxu0 0.0
        %583 = vmatprep.subr.mxu0 0.0
        %584 = vmatpush1.msra.mxu0 0.0
        %585 = vmatprep.subr.mxu0 0.0
        %586 = vmatpush1.msra.mxu0 0.0
        %587 = vmatprep.subr.mxu0 0.0
        %588 = vmatpush1.msra.mxu0 0.0
        %589 = vmatprep.subr.mxu0 0.0
        %590 = vmatpush1.msra.mxu0 0.0
        %591 = vmatprep.subr.mxu0 0.0
        %592 = vmatpush1.msra.mxu0 0.0
        %593 = vmatprep.subr.mxu0 0.0
        %594 = vmatpush1.msra.mxu0 0.0
        %595 = vmatprep.subr.mxu0 0.0
        %596 = vmatpush1.msra.mxu0 0.0
        %597 = vmatprep.subr.mxu0 0.0
        %598 = vmatpush1.msra.mxu0 0.0
        %599 = vmatprep.subr.mxu0 0.0
        %600 = vmatpush1.msra.mxu0 0.0
        %601 = vmatprep.subr.mxu0 0.0
        %602 = vmatpush1.msra.mxu0 0.0
        %603 = vmatprep.subr.mxu0 0.0
        %604 = vmatpush1.msra.mxu0 0.0
        %605 = vmatprep.subr.mxu0 0.0
        %606 = vmatpush1.msra.mxu0 0.0
        %607 = vmatprep.subr.mxu0 0.0
        %608 = vmatpush1.msra.mxu0 0.0
        %609 = vmatprep.subr.mxu0 0.0
        %610 = vmatpush1.msra.mxu0 0.0
        %611 = vmatprep.subr.mxu0 0.0
        %612 = vmatpush1.msra.mxu0 0.0
        %613 = vmatprep.subr.mxu0 0.0
        %614 = vmatpush1.msra.mxu0 0.0
        %615 = vmatprep.subr.mxu0 0.0
        %616 = vmatpush1.msra.mxu0 0.0
        %617 = vmatprep.subr.mxu0 0.0
        %618 = vmatpush1.msra.mxu0 0.0
        %619 = vmatprep.subr.mxu0 0.0
        %620 = vmatpush1.msra.mxu0 0.0
        %621 = vmatprep.subr.mxu0 0.0
        %622 = vmatpush1.msra.mxu0 0.0
        %623 = vmatprep.subr.mxu0 0.0
        %624 = vmatpush1.msra.mxu0 0.0
        %625 = vmatprep.subr.mxu0 0.0
        %626 = vmatpush1.msra.mxu0 0.0
        %627 = vmatprep.subr.mxu0 0.0
        %628 = vmatpush1.msra.mxu0 0.0
        %629 = vmatprep.subr.mxu0 0.0
        %630 = vmatpush1.msra.mxu0 0.0
        %631 = vmatprep.mubr.f32.mxu0 0.0
        %632 = vmatmul.mubr.f32.gmra.mrb[0].mxu0 %v556
        %v633 = vpop.f32.mrb[0].mxu0
        %v634 = vadd.f32 %v499, %v633
        %v635 = vpop.f32.mrb[0].mxu0
        %v636 = vadd.f32 %v501, %v635
        %637 = vmatprep.mubr.f32.mxu0 0.0
        %638 = vmatmul.mubr.f32.gmra.mrb[0].mxu0 %v559
        %v639 = vpop.f32.mrb[0].mxu0
        %v640 = vadd.f32 %v505, %v639
        %v641 = vpop.f32.mrb[0].mxu0
        %v642 = vadd.f32 %v507, %v641
        %643 = vmatprep.mubr.f32.mxu0 0.0
        %644 = vmatmul.mubr.f32.gmra.mrb[0].mxu0 %v562
        %v645 = vpop.f32.mrb[0].mxu0
        %v646 = vadd.f32 %v511, %v645
        %v647 = vpop.f32.mrb[0].mxu0
        %v648 = vadd.f32 %v513, %v647
        %649 = vmatprep.mubr.f32.mxu0 0.0
        %650 = vmatmul.mubr.f32.gmra.mrb[0].mxu0 %v565
        %v651 = vpop.f32.mrb[0].mxu0
        %v652 = vadd.f32 %v517, %v651
        %v653 = vpop.f32.mrb[0].mxu0
        %v654 = vadd.f32 %v519, %v653
        %655 = vdwg.mxu0
        %656 = vrot.lane.b32.xlu0 %v276, 15
        %v657 = vpop.permute.xlu0 %656
        %658 = vrot.lane.b32.xlu0 %v280, 15
        %v659 = vpop.permute.xlu0 %658
        %vm660 = vcmask 121856
        %v661 = vsel %vm660, %v657, %v659
        %v665 = vmul.f32 %v355, %v657
        %v666 = vmul.f32 %v356, %v661
        %v667 = vmul.f32 %v357, %v659
        %668 = vrot.lane.b32.xlu0 %v299, 17
        %v669 = vpop.permute.xlu0 %668
        %670 = vrot.lane.b32.xlu0 %v303, 17
        %v671 = vpop.permute.xlu0 %670
        %v672 = vsel %vm542, %v669, %v671
        %v676 = vmul.f32 %v355, %v669
        %v677 = vmul.f32 %v356, %v672
        %v678 = vmul.f32 %v357, %v671
        %682 = vrot.lane.b32.xlu0 %v355, 127
        %v683 = vpop.permute.xlu0 %682
        %684 = vrot.lane.b32.xlu0 %v356, 127
        %v685 = vpop.permute.xlu0 %684
        %686 = vrot.lane.b32.xlu0 %v357, 127
        %v687 = vpop.permute.xlu0 %686
        %v688 = vsel %vm325, %v683, %v685
        %v689 = vsel %vm325, %v685, %v687
        %693 = vrot.lane.b32.xlu0 %v676, 126
        %v694 = vpop.permute.xlu0 %693
        %695 = vrot.lane.b32.xlu0 %v677, 126
        %v696 = vpop.permute.xlu0 %695
        %697 = vrot.lane.b32.xlu0 %v678, 126
        %v698 = vpop.permute.xlu0 %697
        %v699 = vsel %vm337, %v694, %v696
        %v700 = vsel %vm337, %v696, %v698
        %s701 = scalar_lea.vmem %s2, 64
        %v702 = vld [vmem:[%s701] sm:$0xff]
        %v703 = vld [vmem:[%s701 + $0x8] sm:$0xff]
        %v704 = vld [vmem:[%s701 + $0x10] sm:$0xff]
        %v705 = vld [vmem:[%s701 + $0x18] sm:$0xff]
        %709 = vrot.lane.b32.xlu0 %v665, 113
        %v710 = vpop.permute.xlu0 %709
        %711 = vrot.lane.b32.xlu0 %v666, 113
        %v712 = vpop.permute.xlu0 %711
        %713 = vrot.lane.b32.xlu0 %v667, 113
        %v714 = vpop.permute.xlu0 %713
        %715 = vrot.lane.b32.xlu0 %v688, 113
        %v716 = vpop.permute.xlu0 %715
        %717 = vrot.lane.b32.xlu0 %v689, 113
        %v718 = vpop.permute.xlu0 %717
        %719 = vrot.lane.b32.xlu0 %v687, 113
        %v720 = vpop.permute.xlu0 %719
        %721 = vrot.lane.b32.xlu0 %v699, 113
        %v722 = vpop.permute.xlu0 %721
        %723 = vrot.lane.b32.xlu0 %v700, 113
        %v724 = vpop.permute.xlu0 %723
        %725 = vrot.lane.b32.xlu0 %v698, 113
        %v726 = vpop.permute.xlu0 %725
        %v727 = vsel %vm308, %v710, %v712
        %v728 = vsel %vm308, %v712, %v714
        %v729 = vsel %vm308, %v716, %v718
        %v730 = vsel %vm308, %v718, %v720
        %v731 = vsel %vm308, %v722, %v724
        %v732 = vsel %vm308, %v724, %v726
        %v740 = vsel %vm419, %v702, 0
        %v743 = vsel %vm419, %v703, 0
        %v746 = vsel %vm419, %v704, 0
        %v749 = vsel %vm419, %v705, 0
        %751 = vmatprep.subr.mxu0 %v728
        %752 = vmatpush1.msra.mxu0 %v727
        %753 = vmatprep.subr.mxu0 %v730
        %754 = vmatpush1.msra.mxu0 %v729
        %755 = vmatprep.subr.mxu0 %v732
        %756 = vmatpush1.msra.mxu0 %v731
        %757 = vmatprep.subr.mxu0 0.0
        %758 = vmatpush1.msra.mxu0 0.0
        %759 = vmatprep.subr.mxu0 0.0
        %760 = vmatpush1.msra.mxu0 0.0
        %761 = vmatprep.subr.mxu0 0.0
        %762 = vmatpush1.msra.mxu0 0.0
        %763 = vmatprep.subr.mxu0 0.0
        %764 = vmatpush1.msra.mxu0 0.0
        %765 = vmatprep.subr.mxu0 0.0
        %766 = vmatpush1.msra.mxu0 0.0
        %767 = vmatprep.subr.mxu0 0.0
        %768 = vmatpush1.msra.mxu0 0.0
        %769 = vmatprep.subr.mxu0 0.0
        %770 = vmatpush1.msra.mxu0 0.0
        %771 = vmatprep.subr.mxu0 0.0
        %772 = vmatpush1.msra.mxu0 0.0
        %773 = vmatprep.subr.mxu0 0.0
        %774 = vmatpush1.msra.mxu0 0.0
        %775 = vmatprep.subr.mxu0 0.0
        %776 = vmatpush1.msra.mxu0 0.0
        %777 = vmatprep.subr.mxu0 0.0
        %778 = vmatpush1.msra.mxu0 0.0
        %779 = vmatprep.subr.mxu0 0.0
        %780 = vmatpush1.msra.mxu0 0.0
        %781 = vmatprep.subr.mxu0 0.0
        %782 = vmatpush1.msra.mxu0 0.0
        %783 = vmatprep.subr.mxu0 0.0
        %784 = vmatpush1.msra.mxu0 0.0
        %785 = vmatprep.subr.mxu0 0.0
        %786 = vmatpush1.msra.mxu0 0.0
        %787 = vmatprep.subr.mxu0 0.0
        %788 = vmatpush1.msra.mxu0 0.0
        %789 = vmatprep.subr.mxu0 0.0
        %790 = vmatpush1.msra.mxu0 0.0
        %791 = vmatprep.subr.mxu0 0.0
        %792 = vmatpush1.msra.mxu0 0.0
        %793 = vmatprep.subr.mxu0 0.0
        %794 = vmatpush1.msra.mxu0 0.0
        %795 = vmatprep.subr.mxu0 0.0
        %796 = vmatpush1.msra.mxu0 0.0
        %797 = vmatprep.subr.mxu0 0.0
        %798 = vmatpush1.msra.mxu0 0.0
        %799 = vmatprep.subr.mxu0 0.0
        %800 = vmatpush1.msra.mxu0 0.0
        %801 = vmatprep.subr.mxu0 0.0
        %802 = vmatpush1.msra.mxu0 0.0
        %803 = vmatprep.subr.mxu0 0.0
        %804 = vmatpush1.msra.mxu0 0.0
        %805 = vmatprep.subr.mxu0 0.0
        %806 = vmatpush1.msra.mxu0 0.0
        %807 = vmatprep.subr.mxu0 0.0
        %808 = vmatpush1.msra.mxu0 0.0
        %809 = vmatprep.subr.mxu0 0.0
        %810 = vmatpush1.msra.mxu0 0.0
        %811 = vmatprep.subr.mxu0 0.0
        %812 = vmatpush1.msra.mxu0 0.0
        %813 = vmatprep.subr.mxu0 0.0
        %814 = vmatpush1.msra.mxu0 0.0
        %815 = vmatprep.mubr.f32.mxu0 0.0
        %816 = vmatmul.mubr.f32.gmra.mrb[0].mxu0 %v740
        %v817 = vpop.f32.mrb[0].mxu0
        %v818 = vadd.f32 0.0, %v817
        %v819 = vpop.f32.mrb[0].mxu0
        %v820 = vadd.f32 0.0, %v819
        %821 = vmatprep.mubr.f32.mxu0 0.0
        %822 = vmatmul.mubr.f32.gmra.mrb[0].mxu0 %v743
        %v823 = vpop.f32.mrb[0].mxu0
        %v824 = vadd.f32 0.0, %v823
        %v825 = vpop.f32.mrb[0].mxu0
        %v826 = vadd.f32 0.0, %v825
        %827 = vmatprep.mubr.f32.mxu0 0.0
        %828 = vmatmul.mubr.f32.gmra.mrb[0].mxu0 %v746
        %v829 = vpop.f32.mrb[0].mxu0
        %v830 = vadd.f32 0.0, %v829
        %v831 = vpop.f32.mrb[0].mxu0
        %v832 = vadd.f32 0.0, %v831
        %833 = vmatprep.mubr.f32.mxu0 0.0
        %834 = vmatmul.mubr.f32.gmra.mrb[0].mxu0 %v749
        %v835 = vpop.f32.mrb[0].mxu0
        %v836 = vadd.f32 0.0, %v835
        %v837 = vpop.f32.mrb[0].mxu0
        %v838 = vadd.f32 0.0, %v837
        %839 = vdwg.mxu0
        %v840 = vadd.f32 %v634, %v818
        %v841 = vadd.f32 %v636, %v820
        %v842 = vadd.f32 %v640, %v824
        %v843 = vadd.f32 %v642, %v826
        %v844 = vadd.f32 %v646, %v830
        %v845 = vadd.f32 %v648, %v832
        %v846 = vadd.f32 %v652, %v836
        %v847 = vadd.f32 %v654, %v838
        %v848 = vld [vmem:[%s3] sm:$0xff]
        %v849 = vld [vmem:[%s3 + $0x8] sm:$0xff]
        %v850 = vld [vmem:[%s3 + $0x10] sm:$0xff]
        %v851 = vld [vmem:[%s3 + $0x18] sm:$0xff]
        %853 = vset.pattern.permute.xlu0 0
        %854 = vperm.xlu0 %853, %v848
        %v855 = vpop.permute.xlu0 %854
        %858 = vset.pattern.permute.xlu0 0
        %859 = vperm.xlu0 %858, %v849
        %v860 = vpop.permute.xlu0 %859
        %863 = vset.pattern.permute.xlu0 0
        %864 = vperm.xlu0 %863, %v850
        %v865 = vpop.permute.xlu0 %864
        %868 = vset.pattern.permute.xlu0 0
        %869 = vperm.xlu0 %868, %v851
        %v870 = vpop.permute.xlu0 %869
        %v872 = vadd.f32 %v840, %v855
        %v873 = vadd.f32 %v841, %v855
        %v874 = vadd.f32 %v842, %v860
        %v875 = vadd.f32 %v843, %v860
        %v876 = vadd.f32 %v844, %v865
        %v877 = vadd.f32 %v845, %v865
        %v878 = vadd.f32 %v846, %v870
        %v879 = vadd.f32 %v847, %v870
        %v880 = vmax.f32 %v872, 0.0
        %v881 = vmax.f32 %v873, 0.0
        %v882 = vmax.f32 %v874, 0.0
        %v883 = vmax.f32 %v875, 0.0
        %v884 = vmax.f32 %v876, 0.0
        %v885 = vmax.f32 %v877, 0.0
        %v886 = vmax.f32 %v878, 0.0
        %v887 = vmax.f32 %v879, 0.0
        %888 = vst [vmem:[#allocation3 + $0x8] sm:$0xff] %v880
        %889 = vst [vmem:[#allocation3 + $0x10] sm:$0xff] %v881
        %890 = vst [vmem:[#allocation3 + $0x28] sm:$0xff] %v882
        %891 = vst [vmem:[#allocation3 + $0x30] sm:$0xff] %v883
        %892 = vst [vmem:[#allocation3 + $0x48] sm:$0xff] %v884
        %893 = vst [vmem:[#allocation3 + $0x50] sm:$0xff] %v885
        %894 = vst [vmem:[#allocation3 + $0x68] sm:$0xff] %v886
        %895 = vst [vmem:[#allocation3 + $0x70] sm:$0xff] %v887
        %v896 = vld [vmem:[#allocation3] sm:$0xff]
        %v897 = vld [vmem:[#allocation3 + $0x8] sm:$0xff]
        %v898 = vld [vmem:[#allocation3 + $0x10] sm:$0xff]
        %v899 = vld [vmem:[#allocation3 + $0x20] sm:$0xff]
        %v900 = vld [vmem:[#allocation3 + $0x28] sm:$0xff]
        %v901 = vld [vmem:[#allocation3 + $0x30] sm:$0xff]
        %v902 = vld [vmem:[#allocation3 + $0x40] sm:$0xff]
        %v903 = vld [vmem:[#allocation3 + $0x48] sm:$0xff]
        %v904 = vld [vmem:[#allocation3 + $0x50] sm:$0xff]
        %v905 = vld [vmem:[#allocation3 + $0x60] sm:$0xff]
        %v906 = vld [vmem:[#allocation3 + $0x68] sm:$0xff]
        %v907 = vld [vmem:[#allocation3 + $0x70] sm:$0xff]
        %v908 = vld [vmem:[%s1] ss:$2 sm:$0x3]
        %v910 = vlaneseq
        %v911 = vshrl.u32 %v910, 7
        %v912 = vsub.s32 0, %v911
        %v913 = vrot.slane %v908, %v912
        %v914 = vlaneseq
        %v915 = vshrl.u32 %v914, 7
        %v916 = vsub.s32 1, %v915
        %v917 = vrot.slane %v908, %v916
        %918 = vrot.lane.b32.xlu0 %v913, 111
        %v919 = vpop.permute.xlu0 %918
        %920 = vrot.lane.b32.xlu0 %v917, 111
        %v921 = vpop.permute.xlu0 %920
        %v922 = vsel %vm285, %v919, %v921
        %v926 = vmul.f32 %v896, %v919
        %v927 = vmul.f32 %v897, %v922
        %v928 = vmul.f32 %v898, %v921
        %v929 = vmul.f32 %v899, %v919
        %v930 = vmul.f32 %v900, %v922
        %v931 = vmul.f32 %v901, %v921
        %v932 = vmul.f32 %v902, %v919
        %v933 = vmul.f32 %v903, %v922
        %v934 = vmul.f32 %v904, %v921
        %v935 = vmul.f32 %v905, %v919
        %v936 = vmul.f32 %v906, %v922
        %v937 = vmul.f32 %v907, %v921
        %v938 = vld [vmem:[%s4] sm:$0xff]
        %s939 = scalar_lea.vmem %s4, 8
        %v940 = vld [vmem:[%s939] sm:$0xff]
        %953 = vrot.lane.b32.xlu0 %v896, 16
        %v954 = vpop.permute.xlu0 %953
        %955 = vrot.lane.b32.xlu0 %v897, 16
        %v956 = vpop.permute.xlu0 %955
        %957 = vrot.lane.b32.xlu0 %v898, 16
        %v958 = vpop.permute.xlu0 %957
        %959 = vrot.lane.b32.xlu0 %v899, 16
        %v960 = vpop.permute.xlu0 %959
        %961 = vrot.lane.b32.xlu0 %v900, 16
        %v962 = vpop.permute.xlu0 %961
        %963 = vrot.lane.b32.xlu0 %v901, 16
        %v964 = vpop.permute.xlu0 %963
        %965 = vrot.lane.b32.xlu0 %v902, 16
        %v966 = vpop.permute.xlu0 %965
        %967 = vrot.lane.b32.xlu0 %v903, 16
        %v968 = vpop.permute.xlu0 %967
        %969 = vrot.lane.b32.xlu0 %v904, 16
        %v970 = vpop.permute.xlu0 %969
        %971 = vrot.lane.b32.xlu0 %v905, 16
        %v972 = vpop.permute.xlu0 %971
        %973 = vrot.lane.b32.xlu0 %v906, 16
        %v974 = vpop.permute.xlu0 %973
        %975 = vrot.lane.b32.xlu0 %v907, 16
        %v976 = vpop.permute.xlu0 %975
        %vm977 = vcmask 130048
        %v978 = vsel %vm977, %v954, %v956
        %v979 = vsel %vm977, %v956, %v958
        %v980 = vsel %vm977, %v960, %v962
        %v981 = vsel %vm977, %v962, %v964
        %v982 = vsel %vm977, %v966, %v968
        %v983 = vsel %vm977, %v968, %v970
        %v984 = vsel %vm977, %v972, %v974
        %v985 = vsel %vm977, %v974, %v976
        %vm994 = vcmask 261120
        %v996 = vsel %vm994, %v940, 0
        %998 = vmatprep.subr.mxu0 %v979
        %999 = vmatpush1.msra.mxu0 %v978
        %1000 = vmatprep.subr.mxu0 %v981
        %1001 = vmatpush1.msra.mxu0 %v980
        %1002 = vmatprep.subr.mxu0 %v983
        %1003 = vmatpush1.msra.mxu0 %v982
        %1004 = vmatprep.subr.mxu0 %v985
        %1005 = vmatpush1.msra.mxu0 %v984
        %1006 = vmatprep.subr.mxu0 0.0
        %1007 = vmatpush1.msra.mxu0 0.0
        %1008 = vmatprep.subr.mxu0 0.0
        %1009 = vmatpush1.msra.mxu0 0.0
        %1010 = vmatprep.subr.mxu0 0.0
        %1011 = vmatpush1.msra.mxu0 0.0
        %1012 = vmatprep.subr.mxu0 0.0
        %1013 = vmatpush1.msra.mxu0 0.0
        %1014 = vmatprep.subr.mxu0 0.0
        %1015 = vmatpush1.msra.mxu0 0.0
        %1016 = vmatprep.subr.mxu0 0.0
        %1017 = vmatpush1.msra.mxu0 0.0
        %1018 = vmatprep.subr.mxu0 0.0
        %1019 = vmatpush1.msra.mxu0 0.0
        %1020 = vmatprep.subr.mxu0 0.0
        %1021 = vmatpush1.msra.mxu0 0.0
        %1022 = vmatprep.subr.mxu0 0.0
        %1023 = vmatpush1.msra.mxu0 0.0
        %1024 = vmatprep.subr.mxu0 0.0
        %1025 = vmatpush1.msra.mxu0 0.0
        %1026 = vmatprep.subr.mxu0 0.0
        %1027 = vmatpush1.msra.mxu0 0.0
        %1028 = vmatprep.subr.mxu0 0.0
        %1029 = vmatpush1.msra.mxu0 0.0
        %1030 = vmatprep.subr.mxu0 0.0
        %1031 = vmatpush1.msra.mxu0 0.0
        %1032 = vmatprep.subr.mxu0 0.0
        %1033 = vmatpush1.msra.mxu0 0.0
        %1034 = vmatprep.subr.mxu0 0.0
        %1035 = vmatpush1.msra.mxu0 0.0
        %1036 = vmatprep.subr.mxu0 0.0
        %1037 = vmatpush1.msra.mxu0 0.0
        %1038 = vmatprep.subr.mxu0 0.0
        %1039 = vmatpush1.msra.mxu0 0.0
        %1040 = vmatprep.subr.mxu0 0.0
        %1041 = vmatpush1.msra.mxu0 0.0
        %1042 = vmatprep.subr.mxu0 0.0
        %1043 = vmatpush1.msra.mxu0 0.0
        %1044 = vmatprep.subr.mxu0 0.0
        %1045 = vmatpush1.msra.mxu0 0.0
        %1046 = vmatprep.subr.mxu0 0.0
        %1047 = vmatpush1.msra.mxu0 0.0
        %1048 = vmatprep.subr.mxu0 0.0
        %1049 = vmatpush1.msra.mxu0 0.0
        %1050 = vmatprep.subr.mxu0 0.0
        %1051 = vmatpush1.msra.mxu0 0.0
        %1052 = vmatprep.subr.mxu0 0.0
        %1053 = vmatpush1.msra.mxu0 0.0
        %1054 = vmatprep.subr.mxu0 0.0
        %1055 = vmatpush1.msra.mxu0 0.0
        %1056 = vmatprep.subr.mxu0 0.0
        %1057 = vmatpush1.msra.mxu0 0.0
        %1058 = vmatprep.subr.mxu0 0.0
        %1059 = vmatpush1.msra.mxu0 0.0
        %1060 = vmatprep.subr.mxu0 0.0
        %1061 = vmatpush1.msra.mxu0 0.0
        %1062 = vmatprep.mubr.f32.mxu0 0.0
        %1063 = vmatmul.mubr.f32.gmra.mrb[0].mxu0 %v996
        %v1064 = vpop.f32.mrb[0].mxu0
        %v1065 = vadd.f32 0.0, %v1064
        %v1066 = vpop.f32.mrb[0].mxu0
        %v1067 = vadd.f32 0.0, %v1066
        %1068 = vdwg.mxu0
        %1081 = vrot.lane.b32.xlu0 %v926, 17
        %v1082 = vpop.permute.xlu0 %1081
        %1083 = vrot.lane.b32.xlu0 %v927, 17
        %v1084 = vpop.permute.xlu0 %1083
        %1085 = vrot.lane.b32.xlu0 %v928, 17
        %v1086 = vpop.permute.xlu0 %1085
        %1087 = vrot.lane.b32.xlu0 %v929, 17
        %v1088 = vpop.permute.xlu0 %1087
        %1089 = vrot.lane.b32.xlu0 %v930, 17
        %v1090 = vpop.permute.xlu0 %1089
        %1091 = vrot.lane.b32.xlu0 %v931, 17
        %v1092 = vpop.permute.xlu0 %1091
        %1093 = vrot.lane.b32.xlu0 %v932, 17
        %v1094 = vpop.permute.xlu0 %1093
        %1095 = vrot.lane.b32.xlu0 %v933, 17
        %v1096 = vpop.permute.xlu0 %1095
        %1097 = vrot.lane.b32.xlu0 %v934, 17
        %v1098 = vpop.permute.xlu0 %1097
        %1099 = vrot.lane.b32.xlu0 %v935, 17
        %v1100 = vpop.permute.xlu0 %1099
        %1101 = vrot.lane.b32.xlu0 %v936, 17
        %v1102 = vpop.permute.xlu0 %1101
        %1103 = vrot.lane.b32.xlu0 %v937, 17
        %v1104 = vpop.permute.xlu0 %1103
        %v1105 = vsel %vm542, %v1082, %v1084
        %v1106 = vsel %vm542, %v1084, %v1086
        %v1107 = vsel %vm542, %v1088, %v1090
        %v1108 = vsel %vm542, %v1090, %v1092
        %v1109 = vsel %vm542, %v1094, %v1096
        %v1110 = vsel %vm542, %v1096, %v1098
        %v1111 = vsel %vm542, %v1100, %v1102
        %v1112 = vsel %vm542, %v1102, %v1104
        %v1122 = vsel %vm994, %v938, 0
        %1124 = vmatprep.subr.mxu0 %v1106
        %1125 = vmatpush1.msra.mxu0 %v1105
        %1126 = vmatprep.subr.mxu0 %v1108
        %1127 = vmatpush1.msra.mxu0 %v1107
        %1128 = vmatprep.subr.mxu0 %v1110
        %1129 = vmatpush1.msra.mxu0 %v1109
        %1130 = vmatprep.subr.mxu0 %v1112
        %1131 = vmatpush1.msra.mxu0 %v1111
        %1132 = vmatprep.subr.mxu0 0.0
        %1133 = vmatpush1.msra.mxu0 0.0
        %1134 = vmatprep.subr.mxu0 0.0
        %1135 = vmatpush1.msra.mxu0 0.0
        %1136 = vmatprep.subr.mxu0 0.0
        %1137 = vmatpush1.msra.mxu0 0.0
        %1138 = vmatprep.subr.mxu0 0.0
        %1139 = vmatpush1.msra.mxu0 0.0
        %1140 = vmatprep.subr.mxu0 0.0
        %1141 = vmatpush1.msra.mxu0 0.0
        %1142 = vmatprep.subr.mxu0 0.0
        %1143 = vmatpush1.msra.mxu0 0.0
        %1144 = vmatprep.subr.mxu0 0.0
        %1145 = vmatpush1.msra.mxu0 0.0
        %1146 = vmatprep.subr.mxu0 0.0
        %1147 = vmatpush1.msra.mxu0 0.0
        %1148 = vmatprep.subr.mxu0 0.0
        %1149 = vmatpush1.msra.mxu0 0.0
        %1150 = vmatprep.subr.mxu0 0.0
        %1151 = vmatpush1.msra.mxu0 0.0
        %1152 = vmatprep.subr.mxu0 0.0
        %1153 = vmatpush1.msra.mxu0 0.0
        %1154 = vmatprep.subr.mxu0 0.0
        %1155 = vmatpush1.msra.mxu0 0.0
        %1156 = vmatprep.subr.mxu0 0.0
        %1157 = vmatpush1.msra.mxu0 0.0
        %1158 = vmatprep.subr.mxu0 0.0
        %1159 = vmatpush1.msra.mxu0 0.0
        %1160 = vmatprep.subr.mxu0 0.0
        %1161 = vmatpush1.msra.mxu0 0.0
        %1162 = vmatprep.subr.mxu0 0.0
        %1163 = vmatpush1.msra.mxu0 0.0
        %1164 = vmatprep.subr.mxu0 0.0
        %1165 = vmatpush1.msra.mxu0 0.0
        %1166 = vmatprep.subr.mxu0 0.0
        %1167 = vmatpush1.msra.mxu0 0.0
        %1168 = vmatprep.subr.mxu0 0.0
        %1169 = vmatpush1.msra.mxu0 0.0
        %1170 = vmatprep.subr.mxu0 0.0
        %1171 = vmatpush1.msra.mxu0 0.0
        %1172 = vmatprep.subr.mxu0 0.0
        %1173 = vmatpush1.msra.mxu0 0.0
        %1174 = vmatprep.subr.mxu0 0.0
        %1175 = vmatpush1.msra.mxu0 0.0
        %1176 = vmatprep.subr.mxu0 0.0
        %1177 = vmatpush1.msra.mxu0 0.0
        %1178 = vmatprep.subr.mxu0 0.0
        %1179 = vmatpush1.msra.mxu0 0.0
        %1180 = vmatprep.subr.mxu0 0.0
        %1181 = vmatpush1.msra.mxu0 0.0
        %1182 = vmatprep.subr.mxu0 0.0
        %1183 = vmatpush1.msra.mxu0 0.0
        %1184 = vmatprep.subr.mxu0 0.0
        %1185 = vmatpush1.msra.mxu0 0.0
        %1186 = vmatprep.subr.mxu0 0.0
        %1187 = vmatpush1.msra.mxu0 0.0
        %1188 = vmatprep.mubr.f32.mxu0 0.0
        %1189 = vmatmul.mubr.f32.gmra.mrb[0].mxu0 %v1122
        %v1190 = vpop.f32.mrb[0].mxu0
        %v1191 = vadd.f32 %v1065, %v1190
        %v1192 = vpop.f32.mrb[0].mxu0
        %v1193 = vadd.f32 %v1067, %v1192
        %1194 = vdwg.mxu0
        %v1195 = vld [vmem:[%s293] ss:$2 sm:$0x3]
        %v1197 = vlaneseq
        %v1198 = vshrl.u32 %v1197, 7
        %v1199 = vsub.s32 0, %v1198
        %v1200 = vrot.slane %v1195, %v1199
        %v1201 = vlaneseq
        %v1202 = vshrl.u32 %v1201, 7
        %v1203 = vsub.s32 1, %v1202
        %v1204 = vrot.slane %v1195, %v1203
        %1205 = vrot.lane.b32.xlu0 %v1200, 113
        %v1206 = vpop.permute.xlu0 %1205
        %1207 = vrot.lane.b32.xlu0 %v1204, 113
        %v1208 = vpop.permute.xlu0 %1207
        %v1209 = vsel %vm308, %v1206, %v1208
        %v1213 = vmul.f32 %v896, %v1206
        %v1214 = vmul.f32 %v897, %v1209
        %v1215 = vmul.f32 %v898, %v1208
        %v1216 = vmul.f32 %v899, %v1206
        %v1217 = vmul.f32 %v900, %v1209
        %v1218 = vmul.f32 %v901, %v1208
        %v1219 = vmul.f32 %v902, %v1206
        %v1220 = vmul.f32 %v903, %v1209
        %v1221 = vmul.f32 %v904, %v1208
        %v1222 = vmul.f32 %v905, %v1206
        %v1223 = vmul.f32 %v906, %v1209
        %v1224 = vmul.f32 %v907, %v1208
        %s1225 = scalar_lea.vmem %s4, 16
        %v1226 = vld [vmem:[%s1225] sm:$0xff]
        %1239 = vrot.lane.b32.xlu0 %v1213, 15
        %v1240 = vpop.permute.xlu0 %1239
        %1241 = vrot.lane.b32.xlu0 %v1214, 15
        %v1242 = vpop.permute.xlu0 %1241
        %1243 = vrot.lane.b32.xlu0 %v1215, 15
        %v1244 = vpop.permute.xlu0 %1243
        %1245 = vrot.lane.b32.xlu0 %v1216, 15
        %v1246 = vpop.permute.xlu0 %1245
        %1247 = vrot.lane.b32.xlu0 %v1217, 15
        %v1248 = vpop.permute.xlu0 %1247
        %1249 = vrot.lane.b32.xlu0 %v1218, 15
        %v1250 = vpop.permute.xlu0 %1249
        %1251 = vrot.lane.b32.xlu0 %v1219, 15
        %v1252 = vpop.permute.xlu0 %1251
        %1253 = vrot.lane.b32.xlu0 %v1220, 15
        %v1254 = vpop.permute.xlu0 %1253
        %1255 = vrot.lane.b32.xlu0 %v1221, 15
        %v1256 = vpop.permute.xlu0 %1255
        %1257 = vrot.lane.b32.xlu0 %v1222, 15
        %v1258 = vpop.permute.xlu0 %1257
        %1259 = vrot.lane.b32.xlu0 %v1223, 15
        %v1260 = vpop.permute.xlu0 %1259
        %1261 = vrot.lane.b32.xlu0 %v1224, 15
        %v1262 = vpop.permute.xlu0 %1261
        %v1263 = vsel %vm660, %v1240, %v1242
        %v1264 = vsel %vm660, %v1242, %v1244
        %v1265 = vsel %vm660, %v1246, %v1248
        %v1266 = vsel %vm660, %v1248, %v1250
        %v1267 = vsel %vm660, %v1252, %v1254
        %v1268 = vsel %vm660, %v1254, %v1256
        %v1269 = vsel %vm660, %v1258, %v1260
        %v1270 = vsel %vm660, %v1260, %v1262
        %v1280 = vsel %vm994, %v1226, 0
        %1282 = vmatprep.subr.mxu0 %v1264
        %1283 = vmatpush1.msra.mxu0 %v1263
        %1284 = vmatprep.subr.mxu0 %v1266
        %1285 = vmatpush1.msra.mxu0 %v1265
        %1286 = vmatprep.subr.mxu0 %v1268
        %1287 = vmatpush1.msra.mxu0 %v1267
        %1288 = vmatprep.subr.mxu0 %v1270
        %1289 = vmatpush1.msra.mxu0 %v1269
        %1290 = vmatprep.subr.mxu0 0.0
        %1291 = vmatpush1.msra.mxu0 0.0
        %1292 = vmatprep.subr.mxu0 0.0
        %1293 = vmatpush1.msra.mxu0 0.0
        %1294 = vmatprep.subr.mxu0 0.0
        %1295 = vmatpush1.msra.mxu0 0.0
        %1296 = vmatprep.subr.mxu0 0.0
        %1297 = vmatpush1.msra.mxu0 0.0
        %1298 = vmatprep.subr.mxu0 0.0
        %1299 = vmatpush1.msra.mxu0 0.0
        %1300 = vmatprep.subr.mxu0 0.0
        %1301 = vmatpush1.msra.mxu0 0.0
        %1302 = vmatprep.subr.mxu0 0.0
        %1303 = vmatpush1.msra.mxu0 0.0
        %1304 = vmatprep.subr.mxu0 0.0
        %1305 = vmatpush1.msra.mxu0 0.0
        %1306 = vmatprep.subr.mxu0 0.0
        %1307 = vmatpush1.msra.mxu0 0.0
        %1308 = vmatprep.subr.mxu0 0.0
        %1309 = vmatpush1.msra.mxu0 0.0
        %1310 = vmatprep.subr.mxu0 0.0
        %1311 = vmatpush1.msra.mxu0 0.0
        %1312 = vmatprep.subr.mxu0 0.0
        %1313 = vmatpush1.msra.mxu0 0.0
        %1314 = vmatprep.subr.mxu0 0.0
        %1315 = vmatpush1.msra.mxu0 0.0
        %1316 = vmatprep.subr.mxu0 0.0
        %1317 = vmatpush1.msra.mxu0 0.0
        %1318 = vmatprep.subr.mxu0 0.0
        %1319 = vmatpush1.msra.mxu0 0.0
        %1320 = vmatprep.subr.mxu0 0.0
        %1321 = vmatpush1.msra.mxu0 0.0
        %1322 = vmatprep.subr.mxu0 0.0
        %1323 = vmatpush1.msra.mxu0 0.0
        %1324 = vmatprep.subr.mxu0 0.0
        %1325 = vmatpush1.msra.mxu0 0.0
        %1326 = vmatprep.subr.mxu0 0.0
        %1327 = vmatpush1.msra.mxu0 0.0
        %1328 = vmatprep.subr.mxu0 0.0
        %1329 = vmatpush1.msra.mxu0 0.0
        %1330 = vmatprep.subr.mxu0 0.0
        %1331 = vmatpush1.msra.mxu0 0.0
        %1332 = vmatprep.subr.mxu0 0.0
        %1333 = vmatpush1.msra.mxu0 0.0
        %1334 = vmatprep.subr.mxu0 0.0
        %1335 = vmatpush1.msra.mxu0 0.0
        %1336 = vmatprep.subr.mxu0 0.0
        %1337 = vmatpush1.msra.mxu0 0.0
        %1338 = vmatprep.subr.mxu0 0.0
        %1339 = vmatpush1.msra.mxu0 0.0
        %1340 = vmatprep.subr.mxu0 0.0
        %1341 = vmatpush1.msra.mxu0 0.0
        %1342 = vmatprep.subr.mxu0 0.0
        %1343 = vmatpush1.msra.mxu0 0.0
        %1344 = vmatprep.subr.mxu0 0.0
        %1345 = vmatpush1.msra.mxu0 0.0
        %1346 = vmatprep.mubr.f32.mxu0 0.0
        %1347 = vmatmul.mubr.f32.gmra.mrb[0].mxu0 %v1280
        %v1348 = vpop.f32.mrb[0].mxu0
        %v1349 = vadd.f32 0.0, %v1348
        %v1350 = vpop.f32.mrb[0].mxu0
        %v1351 = vadd.f32 0.0, %v1350
        %1352 = vdwg.mxu0
        %v1353 = vadd.f32 %v1191, %v1349
        %v1354 = vadd.f32 %v1193, %v1351
        %1355 = vrot.lane.b32.xlu0 %v913, 127
        %v1356 = vpop.permute.xlu0 %1355
        %1357 = vrot.lane.b32.xlu0 %v917, 127
        %v1358 = vpop.permute.xlu0 %1357
        %v1359 = vsel %vm325, %v1356, %v1358
        %v1363 = vmul.f32 %v896, %v1356
        %v1364 = vmul.f32 %v897, %v1359
        %v1365 = vmul.f32 %v898, %v1358
        %v1366 = vmul.f32 %v899, %v1356
        %v1367 = vmul.f32 %v900, %v1359
        %v1368 = vmul.f32 %v901, %v1358
        %v1369 = vmul.f32 %v902, %v1356
        %v1370 = vmul.f32 %v903, %v1359
        %v1371 = vmul.f32 %v904, %v1358
        %v1372 = vmul.f32 %v905, %v1356
        %v1373 = vmul.f32 %v906, %v1359
        %v1374 = vmul.f32 %v907, %v1358
        %s1375 = scalar_lea.vmem %s4, 24
        %v1376 = vld [vmem:[%s1375] sm:$0xff]
        %1389 = vrot.lane.b32.xlu0 %v1363, 1
        %v1390 = vpop.permute.xlu0 %1389
        %1391 = vrot.lane.b32.xlu0 %v1364, 1
        %v1392 = vpop.permute.xlu0 %1391
        %1393 = vrot.lane.b32.xlu0 %v1365, 1
        %v1394 = vpop.permute.xlu0 %1393
        %1395 = vrot.lane.b32.xlu0 %v1366, 1
        %v1396 = vpop.permute.xlu0 %1395
        %1397 = vrot.lane.b32.xlu0 %v1367, 1
        %v1398 = vpop.permute.xlu0 %1397
        %1399 = vrot.lane.b32.xlu0 %v1368, 1
        %v1400 = vpop.permute.xlu0 %1399
        %1401 = vrot.lane.b32.xlu0 %v1369, 1
        %v1402 = vpop.permute.xlu0 %1401
        %1403 = vrot.lane.b32.xlu0 %v1370, 1
        %v1404 = vpop.permute.xlu0 %1403
        %1405 = vrot.lane.b32.xlu0 %v1371, 1
        %v1406 = vpop.permute.xlu0 %1405
        %1407 = vrot.lane.b32.xlu0 %v1372, 1
        %v1408 = vpop.permute.xlu0 %1407
        %1409 = vrot.lane.b32.xlu0 %v1373, 1
        %v1410 = vpop.permute.xlu0 %1409
        %1411 = vrot.lane.b32.xlu0 %v1374, 1
        %v1412 = vpop.permute.xlu0 %1411
        %v1413 = vsel %vm362, %v1390, %v1392
        %v1414 = vsel %vm362, %v1392, %v1394
        %v1415 = vsel %vm362, %v1396, %v1398
        %v1416 = vsel %vm362, %v1398, %v1400
        %v1417 = vsel %vm362, %v1402, %v1404
        %v1418 = vsel %vm362, %v1404, %v1406
        %v1419 = vsel %vm362, %v1408, %v1410
        %v1420 = vsel %vm362, %v1410, %v1412
        %v1430 = vsel %vm994, %v1376, 0
        %1432 = vmatprep.subr.mxu0 %v1414
        %1433 = vmatpush1.msra.mxu0 %v1413
        %1434 = vmatprep.subr.mxu0 %v1416
        %1435 = vmatpush1.msra.mxu0 %v1415
        %1436 = vmatprep.subr.mxu0 %v1418
        %1437 = vmatpush1.msra.mxu0 %v1417
        %1438 = vmatprep.subr.mxu0 %v1420
        %1439 = vmatpush1.msra.mxu0 %v1419
        %1440 = vmatprep.subr.mxu0 0.0
        %1441 = vmatpush1.msra.mxu0 0.0
        %1442 = vmatprep.subr.mxu0 0.0
        %1443 = vmatpush1.msra.mxu0 0.0
        %1444 = vmatprep.subr.mxu0 0.0
        %1445 = vmatpush1.msra.mxu0 0.0
        %1446 = vmatprep.subr.mxu0 0.0
        %1447 = vmatpush1.msra.mxu0 0.0
        %1448 = vmatprep.subr.mxu0 0.0
        %1449 = vmatpush1.msra.mxu0 0.0
        %1450 = vmatprep.subr.mxu0 0.0
        %1451 = vmatpush1.msra.mxu0 0.0
        %1452 = vmatprep.subr.mxu0 0.0
        %1453 = vmatpush1.msra.mxu0 0.0
        %1454 = vmatprep.subr.mxu0 0.0
        %1455 = vmatpush1.msra.mxu0 0.0
        %1456 = vmatprep.subr.mxu0 0.0
        %1457 = vmatpush1.msra.mxu0 0.0
        %1458 = vmatprep.subr.mxu0 0.0
        %1459 = vmatpush1.msra.mxu0 0.0
        %1460 = vmatprep.subr.mxu0 0.0
        %1461 = vmatpush1.msra.mxu0 0.0
        %1462 = vmatprep.subr.mxu0 0.0
        %1463 = vmatpush1.msra.mxu0 0.0
        %1464 = vmatprep.subr.mxu0 0.0
        %1465 = vmatpush1.msra.mxu0 0.0
        %1466 = vmatprep.subr.mxu0 0.0
        %1467 = vmatpush1.msra.mxu0 0.0
        %1468 = vmatprep.subr.mxu0 0.0
        %1469 = vmatpush1.msra.mxu0 0.0
        %1470 = vmatprep.subr.mxu0 0.0
        %1471 = vmatpush1.msra.mxu0 0.0
        %1472 = vmatprep.subr.mxu0 0.0
        %1473 = vmatpush1.msra.mxu0 0.0
        %1474 = vmatprep.subr.mxu0 0.0
        %1475 = vmatpush1.msra.mxu0 0.0
        %1476 = vmatprep.subr.mxu0 0.0
        %1477 = vmatpush1.msra.mxu0 0.0
        %1478 = vmatprep.subr.mxu0 0.0
        %1479 = vmatpush1.msra.mxu0 0.0
        %1480 = vmatprep.subr.mxu0 0.0
        %1481 = vmatpush1.msra.mxu0 0.0
        %1482 = vmatprep.subr.mxu0 0.0
        %1483 = vmatpush1.msra.mxu0 0.0
        %1484 = vmatprep.subr.mxu0 0.0
        %1485 = vmatpush1.msra.mxu0 0.0
        %1486 = vmatprep.subr.mxu0 0.0
        %1487 = vmatpush1.msra.mxu0 0.0
        %1488 = vmatprep.subr.mxu0 0.0
        %1489 = vmatpush1.msra.mxu0 0.0
        %1490 = vmatprep.subr.mxu0 0.0
        %1491 = vmatpush1.msra.mxu0 0.0
        %1492 = vmatprep.subr.mxu0 0.0
        %1493 = vmatpush1.msra.mxu0 0.0
        %1494 = vmatprep.subr.mxu0 0.0
        %1495 = vmatpush1.msra.mxu0 0.0
        %1496 = vmatprep.mubr.f32.mxu0 0.0
        %1497 = vmatmul.mubr.f32.gmra.mrb[0].mxu0 %v1430
        %v1498 = vpop.f32.mrb[0].mxu0
        %v1499 = vadd.f32 0.0, %v1498
        %v1500 = vpop.f32.mrb[0].mxu0
        %v1501 = vadd.f32 0.0, %v1500
        %1502 = vdwg.mxu0
        %v1503 = vadd.f32 %v1353, %v1499
        %v1504 = vadd.f32 %v1354, %v1501
        %s1505 = scalar_lea.vmem %s4, 32
        %v1506 = vld [vmem:[%s1505] sm:$0xff]
        %v1508 = vsel %vm994, %v1506, 0
        %1510 = vmatprep.subr.mxu0 %v898
        %1511 = vmatpush1.msra.mxu0 %v897
        %1512 = vmatprep.subr.mxu0 %v901
        %1513 = vmatpush1.msra.mxu0 %v900
        %1514 = vmatprep.subr.mxu0 %v904
        %1515 = vmatpush1.msra.mxu0 %v903
        %1516 = vmatprep.subr.mxu0 %v907
        %1517 = vmatpush1.msra.mxu0 %v906
        %1518 = vmatprep.subr.mxu0 0.0
        %1519 = vmatpush1.msra.mxu0 0.0
        %1520 = vmatprep.subr.mxu0 0.0
        %1521 = vmatpush1.msra.mxu0 0.0
        %1522 = vmatprep.subr.mxu0 0.0
        %1523 = vmatpush1.msra.mxu0 0.0
        %1524 = vmatprep.subr.mxu0 0.0
        %1525 = vmatpush1.msra.mxu0 0.0
        %1526 = vmatprep.subr.mxu0 0.0
        %1527 = vmatpush1.msra.mxu0 0.0
        %1528 = vmatprep.subr.mxu0 0.0
        %1529 = vmatpush1.msra.mxu0 0.0
        %1530 = vmatprep.subr.mxu0 0.0
        %1531 = vmatpush1.msra.mxu0 0.0
        %1532 = vmatprep.subr.mxu0 0.0
        %1533 = vmatpush1.msra.mxu0 0.0
        %1534 = vmatprep.subr.mxu0 0.0
        %1535 = vmatpush1.msra.mxu0 0.0
        %1536 = vmatprep.subr.mxu0 0.0
        %1537 = vmatpush1.msra.mxu0 0.0
        %1538 = vmatprep.subr.mxu0 0.0
        %1539 = vmatpush1.msra.mxu0 0.0
        %1540 = vmatprep.subr.mxu0 0.0
        %1541 = vmatpush1.msra.mxu0 0.0
        %1542 = vmatprep.subr.mxu0 0.0
        %1543 = vmatpush1.msra.mxu0 0.0
        %1544 = vmatprep.subr.mxu0 0.0
        %1545 = vmatpush1.msra.mxu0 0.0
        %1546 = vmatprep.subr.mxu0 0.0
        %1547 = vmatpush1.msra.mxu0 0.0
        %1548 = vmatprep.subr.mxu0 0.0
        %1549 = vmatpush1.msra.mxu0 0.0
        %1550 = vmatprep.subr.mxu0 0.0
        %1551 = vmatpush1.msra.mxu0 0.0
        %1552 = vmatprep.subr.mxu0 0.0
        %1553 = vmatpush1.msra.mxu0 0.0
        %1554 = vmatprep.subr.mxu0 0.0
        %1555 = vmatpush1.msra.mxu0 0.0
        %1556 = vmatprep.subr.mxu0 0.0
        %1557 = vmatpush1.msra.mxu0 0.0
        %1558 = vmatprep.subr.mxu0 0.0
        %1559 = vmatpush1.msra.mxu0 0.0
        %1560 = vmatprep.subr.mxu0 0.0
        %1561 = vmatpush1.msra.mxu0 0.0
        %1562 = vmatprep.subr.mxu0 0.0
        %1563 = vmatpush1.msra.mxu0 0.0
        %1564 = vmatprep.subr.mxu0 0.0
        %1565 = vmatpush1.msra.mxu0 0.0
        %1566 = vmatprep.subr.mxu0 0.0
        %1567 = vmatpush1.msra.mxu0 0.0
        %1568 = vmatprep.subr.mxu0 0.0
        %1569 = vmatpush1.msra.mxu0 0.0
        %1570 = vmatprep.subr.mxu0 0.0
        %1571 = vmatpush1.msra.mxu0 0.0
        %1572 = vmatprep.subr.mxu0 0.0
        %1573 = vmatpush1.msra.mxu0 0.0
        %1574 = vmatprep.mubr.f32.mxu0 0.0
        %1575 = vmatmul.mubr.f32.gmra.mrb[0].mxu0 %v1508
        %v1576 = vpop.f32.mrb[0].mxu0
        %v1577 = vadd.f32 0.0, %v1576
        %v1578 = vpop.f32.mrb[0].mxu0
        %v1579 = vadd.f32 0.0, %v1578
        %1580 = vdwg.mxu0
        %v1581 = vadd.f32 %v1503, %v1577
        %v1582 = vadd.f32 %v1504, %v1579
        %v1583 = vld [vmem:[#allocation3 + $0x8] sm:$0xff]
        %v1584 = vld [vmem:[#allocation3 + $0x10] sm:$0xff]
        %v1585 = vld [vmem:[#allocation3 + $0x18] sm:$0xff]
        %v1586 = vld [vmem:[#allocation3 + $0x28] sm:$0xff]
        %v1587 = vld [vmem:[#allocation3 + $0x30] sm:$0xff]
        %v1588 = vld [vmem:[#allocation3 + $0x38] sm:$0xff]
        %v1589 = vld [vmem:[#allocation3 + $0x48] sm:$0xff]
        %v1590 = vld [vmem:[#allocation3 + $0x50] sm:$0xff]
        %v1591 = vld [vmem:[#allocation3 + $0x58] sm:$0xff]
        %v1592 = vld [vmem:[#allocation3 + $0x68] sm:$0xff]
        %v1593 = vld [vmem:[#allocation3 + $0x70] sm:$0xff]
        %v1594 = vld [vmem:[#allocation3 + $0x78] sm:$0xff]
        %1595 = vrot.lane.b32.xlu0 %v1200, 1
        %v1596 = vpop.permute.xlu0 %1595
        %1597 = vrot.lane.b32.xlu0 %v1204, 1
        %v1598 = vpop.permute.xlu0 %1597
        %v1599 = vsel %vm362, %v1596, %v1598
        %v1603 = vmul.f32 %v1583, %v1596
        %v1604 = vmul.f32 %v1584, %v1599
        %v1605 = vmul.f32 %v1585, %v1598
        %v1606 = vmul.f32 %v1586, %v1596
        %v1607 = vmul.f32 %v1587, %v1599
        %v1608 = vmul.f32 %v1588, %v1598
        %v1609 = vmul.f32 %v1589, %v1596
        %v1610 = vmul.f32 %v1590, %v1599
        %v1611 = vmul.f32 %v1591, %v1598
        %v1612 = vmul.f32 %v1592, %v1596
        %v1613 = vmul.f32 %v1593, %v1599
        %v1614 = vmul.f32 %v1594, %v1598
        %s1615 = scalar_lea.vmem %s4, 40
        %v1616 = vld [vmem:[%s1615] sm:$0xff]
        %1629 = vrot.lane.b32.xlu0 %v1603, 127
        %v1630 = vpop.permute.xlu0 %1629
        %1631 = vrot.lane.b32.xlu0 %v1604, 127
        %v1632 = vpop.permute.xlu0 %1631
        %1633 = vrot.lane.b32.xlu0 %v1605, 127
        %v1634 = vpop.permute.xlu0 %1633
        %1635 = vrot.lane.b32.xlu0 %v1606, 127
        %v1636 = vpop.permute.xlu0 %1635
        %1637 = vrot.lane.b32.xlu0 %v1607, 127
        %v1638 = vpop.permute.xlu0 %1637
        %1639 = vrot.lane.b32.xlu0 %v1608, 127
        %v1640 = vpop.permute.xlu0 %1639
        %1641 = vrot.lane.b32.xlu0 %v1609, 127
        %v1642 = vpop.permute.xlu0 %1641
        %1643 = vrot.lane.b32.xlu0 %v1610, 127
        %v1644 = vpop.permute.xlu0 %1643
        %1645 = vrot.lane.b32.xlu0 %v1611, 127
        %v1646 = vpop.permute.xlu0 %1645
        %1647 = vrot.lane.b32.xlu0 %v1612, 127
        %v1648 = vpop.permute.xlu0 %1647
        %1649 = vrot.lane.b32.xlu0 %v1613, 127
        %v1650 = vpop.permute.xlu0 %1649
        %1651 = vrot.lane.b32.xlu0 %v1614, 127
        %v1652 = vpop.permute.xlu0 %1651
        %v1653 = vsel %vm325, %v1630, %v1632
        %v1654 = vsel %vm325, %v1632, %v1634
        %v1655 = vsel %vm325, %v1636, %v1638
        %v1656 = vsel %vm325, %v1638, %v1640
        %v1657 = vsel %vm325, %v1642, %v1644
        %v1658 = vsel %vm325, %v1644, %v1646
        %v1659 = vsel %vm325, %v1648, %v1650
        %v1660 = vsel %vm325, %v1650, %v1652
        %v1670 = vsel %vm994, %v1616, 0
        %1672 = vmatprep.subr.mxu0 %v1654
        %1673 = vmatpush1.msra.mxu0 %v1653
        %1674 = vmatprep.subr.mxu0 %v1656
        %1675 = vmatpush1.msra.mxu0 %v1655
        %1676 = vmatprep.subr.mxu0 %v1658
        %1677 = vmatpush1.msra.mxu0 %v1657
        %1678 = vmatprep.subr.mxu0 %v1660
        %1679 = vmatpush1.msra.mxu0 %v1659
        %1680 = vmatprep.subr.mxu0 0.0
        %1681 = vmatpush1.msra.mxu0 0.0
        %1682 = vmatprep.subr.mxu0 0.0
        %1683 = vmatpush1.msra.mxu0 0.0
        %1684 = vmatprep.subr.mxu0 0.0
        %1685 = vmatpush1.msra.mxu0 0.0
        %1686 = vmatprep.subr.mxu0 0.0
        %1687 = vmatpush1.msra.mxu0 0.0
        %1688 = vmatprep.subr.mxu0 0.0
        %1689 = vmatpush1.msra.mxu0 0.0
        %1690 = vmatprep.subr.mxu0 0.0
        %1691 = vmatpush1.msra.mxu0 0.0
        %1692 = vmatprep.subr.mxu0 0.0
        %1693 = vmatpush1.msra.mxu0 0.0
        %1694 = vmatprep.subr.mxu0 0.0
        %1695 = vmatpush1.msra.mxu0 0.0
        %1696 = vmatprep.subr.mxu0 0.0
        %1697 = vmatpush1.msra.mxu0 0.0
        %1698 = vmatprep.subr.mxu0 0.0
        %1699 = vmatpush1.msra.mxu0 0.0
        %1700 = vmatprep.subr.mxu0 0.0
        %1701 = vmatpush1.msra.mxu0 0.0
        %1702 = vmatprep.subr.mxu0 0.0
        %1703 = vmatpush1.msra.mxu0 0.0
        %1704 = vmatprep.subr.mxu0 0.0
        %1705 = vmatpush1.msra.mxu0 0.0
        %1706 = vmatprep.subr.mxu0 0.0
        %1707 = vmatpush1.msra.mxu0 0.0
        %1708 = vmatprep.subr.mxu0 0.0
        %1709 = vmatpush1.msra.mxu0 0.0
        %1710 = vmatprep.subr.mxu0 0.0
        %1711 = vmatpush1.msra.mxu0 0.0
        %1712 = vmatprep.subr.mxu0 0.0
        %1713 = vmatpush1.msra.mxu0 0.0
        %1714 = vmatprep.subr.mxu0 0.0
        %1715 = vmatpush1.msra.mxu0 0.0
        %1716 = vmatprep.subr.mxu0 0.0
        %1717 = vmatpush1.msra.mxu0 0.0
        %1718 = vmatprep.subr.mxu0 0.0
        %1719 = vmatpush1.msra.mxu0 0.0
        %1720 = vmatprep.subr.mxu0 0.0
        %1721 = vmatpush1.msra.mxu0 0.0
        %1722 = vmatprep.subr.mxu0 0.0
        %1723 = vmatpush1.msra.mxu0 0.0
        %1724 = vmatprep.subr.mxu0 0.0
        %1725 = vmatpush1.msra.mxu0 0.0
        %1726 = vmatprep.subr.mxu0 0.0
        %1727 = vmatpush1.msra.mxu0 0.0
        %1728 = vmatprep.subr.mxu0 0.0
        %1729 = vmatpush1.msra.mxu0 0.0
        %1730 = vmatprep.subr.mxu0 0.0
        %1731 = vmatpush1.msra.mxu0 0.0
        %1732 = vmatprep.subr.mxu0 0.0
        %1733 = vmatpush1.msra.mxu0 0.0
        %1734 = vmatprep.subr.mxu0 0.0
        %1735 = vmatpush1.msra.mxu0 0.0
        %1736 = vmatprep.mubr.f32.mxu0 0.0
        %1737 = vmatmul.mubr.f32.gmra.mrb[0].mxu0 %v1670
        %v1738 = vpop.f32.mrb[0].mxu0
        %v1739 = vadd.f32 0.0, %v1738
        %v1740 = vpop.f32.mrb[0].mxu0
        %v1741 = vadd.f32 0.0, %v1740
        %1742 = vdwg.mxu0
        %v1743 = vadd.f32 %v1581, %v1739
        %v1744 = vadd.f32 %v1582, %v1741
        %1745 = vrot.lane.b32.xlu0 %v913, 15
        %v1746 = vpop.permute.xlu0 %1745
        %1747 = vrot.lane.b32.xlu0 %v917, 15
        %v1748 = vpop.permute.xlu0 %1747
        %v1749 = vsel %vm660, %v1746, %v1748
        %v1753 = vmul.f32 %v1583, %v1746
        %v1754 = vmul.f32 %v1584, %v1749
        %v1755 = vmul.f32 %v1585, %v1748
        %v1756 = vmul.f32 %v1586, %v1746
        %v1757 = vmul.f32 %v1587, %v1749
        %v1758 = vmul.f32 %v1588, %v1748
        %v1759 = vmul.f32 %v1589, %v1746
        %v1760 = vmul.f32 %v1590, %v1749
        %v1761 = vmul.f32 %v1591, %v1748
        %v1762 = vmul.f32 %v1592, %v1746
        %v1763 = vmul.f32 %v1593, %v1749
        %v1764 = vmul.f32 %v1594, %v1748
        %s1765 = scalar_lea.vmem %s4, 48
        %v1766 = vld [vmem:[%s1765] sm:$0xff]
        %1779 = vrot.lane.b32.xlu0 %v1753, 113
        %v1780 = vpop.permute.xlu0 %1779
        %1781 = vrot.lane.b32.xlu0 %v1754, 113
        %v1782 = vpop.permute.xlu0 %1781
        %1783 = vrot.lane.b32.xlu0 %v1755, 113
        %v1784 = vpop.permute.xlu0 %1783
        %1785 = vrot.lane.b32.xlu0 %v1756, 113
        %v1786 = vpop.permute.xlu0 %1785
        %1787 = vrot.lane.b32.xlu0 %v1757, 113
        %v1788 = vpop.permute.xlu0 %1787
        %1789 = vrot.lane.b32.xlu0 %v1758, 113
        %v1790 = vpop.permute.xlu0 %1789
        %1791 = vrot.lane.b32.xlu0 %v1759, 113
        %v1792 = vpop.permute.xlu0 %1791
        %1793 = vrot.lane.b32.xlu0 %v1760, 113
        %v1794 = vpop.permute.xlu0 %1793
        %1795 = vrot.lane.b32.xlu0 %v1761, 113
        %v1796 = vpop.permute.xlu0 %1795
        %1797 = vrot.lane.b32.xlu0 %v1762, 113
        %v1798 = vpop.permute.xlu0 %1797
        %1799 = vrot.lane.b32.xlu0 %v1763, 113
        %v1800 = vpop.permute.xlu0 %1799
        %1801 = vrot.lane.b32.xlu0 %v1764, 113
        %v1802 = vpop.permute.xlu0 %1801
        %v1803 = vsel %vm308, %v1780, %v1782
        %v1804 = vsel %vm308, %v1782, %v1784
        %v1805 = vsel %vm308, %v1786, %v1788
        %v1806 = vsel %vm308, %v1788, %v1790
        %v1807 = vsel %vm308, %v1792, %v1794
        %v1808 = vsel %vm308, %v1794, %v1796
        %v1809 = vsel %vm308, %v1798, %v1800
        %v1810 = vsel %vm308, %v1800, %v1802
        %v1820 = vsel %vm994, %v1766, 0
        %1822 = vmatprep.subr.mxu0 %v1804
        %1823 = vmatpush1.msra.mxu0 %v1803
        %1824 = vmatprep.subr.mxu0 %v1806
        %1825 = vmatpush1.msra.mxu0 %v1805
        %1826 = vmatprep.subr.mxu0 %v1808
        %1827 = vmatpush1.msra.mxu0 %v1807
        %1828 = vmatprep.subr.mxu0 %v1810
        %1829 = vmatpush1.msra.mxu0 %v1809
        %1830 = vmatprep.subr.mxu0 0.0
        %1831 = vmatpush1.msra.mxu0 0.0
        %1832 = vmatprep.subr.mxu0 0.0
        %1833 = vmatpush1.msra.mxu0 0.0
        %1834 = vmatprep.subr.mxu0 0.0
        %1835 = vmatpush1.msra.mxu0 0.0
        %1836 = vmatprep.subr.mxu0 0.0
        %1837 = vmatpush1.msra.mxu0 0.0
        %1838 = vmatprep.subr.mxu0 0.0
        %1839 = vmatpush1.msra.mxu0 0.0
        %1840 = vmatprep.subr.mxu0 0.0
        %1841 = vmatpush1.msra.mxu0 0.0
        %1842 = vmatprep.subr.mxu0 0.0
        %1843 = vmatpush1.msra.mxu0 0.0
        %1844 = vmatprep.subr.mxu0 0.0
        %1845 = vmatpush1.msra.mxu0 0.0
        %1846 = vmatprep.subr.mxu0 0.0
        %1847 = vmatpush1.msra.mxu0 0.0
        %1848 = vmatprep.subr.mxu0 0.0
        %1849 = vmatpush1.msra.mxu0 0.0
        %1850 = vmatprep.subr.mxu0 0.0
        %1851 = vmatpush1.msra.mxu0 0.0
        %1852 = vmatprep.subr.mxu0 0.0
        %1853 = vmatpush1.msra.mxu0 0.0
        %1854 = vmatprep.subr.mxu0 0.0
        %1855 = vmatpush1.msra.mxu0 0.0
        %1856 = vmatprep.subr.mxu0 0.0
        %1857 = vmatpush1.msra.mxu0 0.0
        %1858 = vmatprep.subr.mxu0 0.0
        %1859 = vmatpush1.msra.mxu0 0.0
        %1860 = vmatprep.subr.mxu0 0.0
        %1861 = vmatpush1.msra.mxu0 0.0
        %1862 = vmatprep.subr.mxu0 0.0
        %1863 = vmatpush1.msra.mxu0 0.0
        %1864 = vmatprep.subr.mxu0 0.0
        %1865 = vmatpush1.msra.mxu0 0.0
        %1866 = vmatprep.subr.mxu0 0.0
        %1867 = vmatpush1.msra.mxu0 0.0
        %1868 = vmatprep.subr.mxu0 0.0
        %1869 = vmatpush1.msra.mxu0 0.0
        %1870 = vmatprep.subr.mxu0 0.0
        %1871 = vmatpush1.msra.mxu0 0.0
        %1872 = vmatprep.subr.mxu0 0.0
        %1873 = vmatpush1.msra.mxu0 0.0
        %1874 = vmatprep.subr.mxu0 0.0
        %1875 = vmatpush1.msra.mxu0 0.0
        %1876 = vmatprep.subr.mxu0 0.0
        %1877 = vmatpush1.msra.mxu0 0.0
        %1878 = vmatprep.subr.mxu0 0.0
        %1879 = vmatpush1.msra.mxu0 0.0
        %1880 = vmatprep.subr.mxu0 0.0
        %1881 = vmatpush1.msra.mxu0 0.0
        %1882 = vmatprep.subr.mxu0 0.0
        %1883 = vmatpush1.msra.mxu0 0.0
        %1884 = vmatprep.subr.mxu0 0.0
        %1885 = vmatpush1.msra.mxu0 0.0
        %1886 = vmatprep.mubr.f32.mxu0 0.0
        %1887 = vmatmul.mubr.f32.gmra.mrb[0].mxu0 %v1820
        %v1888 = vpop.f32.mrb[0].mxu0
        %v1889 = vadd.f32 0.0, %v1888
        %v1890 = vpop.f32.mrb[0].mxu0
        %v1891 = vadd.f32 0.0, %v1890
        %1892 = vdwg.mxu0
        %v1893 = vadd.f32 %v1743, %v1889
        %v1894 = vadd.f32 %v1744, %v1891
        %s1895 = scalar_lea.vmem %s4, 56
        %v1896 = vld [vmem:[%s1895] sm:$0xff]
        %1909 = vrot.lane.b32.xlu0 %v1583, 112
        %v1910 = vpop.permute.xlu0 %1909
        %1911 = vrot.lane.b32.xlu0 %v1584, 112
        %v1912 = vpop.permute.xlu0 %1911
        %1913 = vrot.lane.b32.xlu0 %v1585, 112
        %v1914 = vpop.permute.xlu0 %1913
        %1915 = vrot.lane.b32.xlu0 %v1586, 112
        %v1916 = vpop.permute.xlu0 %1915
        %1917 = vrot.lane.b32.xlu0 %v1587, 112
        %v1918 = vpop.permute.xlu0 %1917
        %1919 = vrot.lane.b32.xlu0 %v1588, 112
        %v1920 = vpop.permute.xlu0 %1919
        %1921 = vrot.lane.b32.xlu0 %v1589, 112
        %v1922 = vpop.permute.xlu0 %1921
        %1923 = vrot.lane.b32.xlu0 %v1590, 112
        %v1924 = vpop.permute.xlu0 %1923
        %1925 = vrot.lane.b32.xlu0 %v1591, 112
        %v1926 = vpop.permute.xlu0 %1925
        %1927 = vrot.lane.b32.xlu0 %v1592, 112
        %v1928 = vpop.permute.xlu0 %1927
        %1929 = vrot.lane.b32.xlu0 %v1593, 112
        %v1930 = vpop.permute.xlu0 %1929
        %1931 = vrot.lane.b32.xlu0 %v1594, 112
        %v1932 = vpop.permute.xlu0 %1931
        %vm1933 = vcmask 916480
        %v1934 = vsel %vm1933, %v1910, %v1912
        %v1935 = vsel %vm1933, %v1912, %v1914
        %v1936 = vsel %vm1933, %v1916, %v1918
        %v1937 = vsel %vm1933, %v1918, %v1920
        %v1938 = vsel %vm1933, %v1922, %v1924
        %v1939 = vsel %vm1933, %v1924, %v1926
        %v1940 = vsel %vm1933, %v1928, %v1930
        %v1941 = vsel %vm1933, %v1930, %v1932
        %v1951 = vsel %vm994, %v1896, 0
        %1953 = vmatprep.subr.mxu0 %v1935
        %1954 = vmatpush1.msra.mxu0 %v1934
        %1955 = vmatprep.subr.mxu0 %v1937
        %1956 = vmatpush1.msra.mxu0 %v1936
        %1957 = vmatprep.subr.mxu0 %v1939
        %1958 = vmatpush1.msra.mxu0 %v1938
        %1959 = vmatprep.subr.mxu0 %v1941
        %1960 = vmatpush1.msra.mxu0 %v1940
        %1961 = vmatprep.subr.mxu0 0.0
        %1962 = vmatpush1.msra.mxu0 0.0
        %1963 = vmatprep.subr.mxu0 0.0
        %1964 = vmatpush1.msra.mxu0 0.0
        %1965 = vmatprep.subr.mxu0 0.0
        %1966 = vmatpush1.msra.mxu0 0.0
        %1967 = vmatprep.subr.mxu0 0.0
        %1968 = vmatpush1.msra.mxu0 0.0
        %1969 = vmatprep.subr.mxu0 0.0
        %1970 = vmatpush1.msra.mxu0 0.0
        %1971 = vmatprep.subr.mxu0 0.0
        %1972 = vmatpush1.msra.mxu0 0.0
        %1973 = vmatprep.subr.mxu0 0.0
        %1974 = vmatpush1.msra.mxu0 0.0
        %1975 = vmatprep.subr.mxu0 0.0
        %1976 = vmatpush1.msra.mxu0 0.0
        %1977 = vmatprep.subr.mxu0 0.0
        %1978 = vmatpush1.msra.mxu0 0.0
        %1979 = vmatprep.subr.mxu0 0.0
        %1980 = vmatpush1.msra.mxu0 0.0
        %1981 = vmatprep.subr.mxu0 0.0
        %1982 = vmatpush1.msra.mxu0 0.0
        %1983 = vmatprep.subr.mxu0 0.0
        %1984 = vmatpush1.msra.mxu0 0.0
        %1985 = vmatprep.subr.mxu0 0.0
        %1986 = vmatpush1.msra.mxu0 0.0
        %1987 = vmatprep.subr.mxu0 0.0
        %1988 = vmatpush1.msra.mxu0 0.0
        %1989 = vmatprep.subr.mxu0 0.0
        %1990 = vmatpush1.msra.mxu0 0.0
        %1991 = vmatprep.subr.mxu0 0.0
        %1992 = vmatpush1.msra.mxu0 0.0
        %1993 = vmatprep.subr.mxu0 0.0
        %1994 = vmatpush1.msra.mxu0 0.0
        %1995 = vmatprep.subr.mxu0 0.0
        %1996 = vmatpush1.msra.mxu0 0.0
        %1997 = vmatprep.subr.mxu0 0.0
        %1998 = vmatpush1.msra.mxu0 0.0
        %1999 = vmatprep.subr.mxu0 0.0
        %2000 = vmatpush1.msra.mxu0 0.0
        %2001 = vmatprep.subr.mxu0 0.0
        %2002 = vmatpush1.msra.mxu0 0.0
        %2003 = vmatprep.subr.mxu0 0.0
        %2004 = vmatpush1.msra.mxu0 0.0
        %2005 = vmatprep.subr.mxu0 0.0
        %2006 = vmatpush1.msra.mxu0 0.0
        %2007 = vmatprep.subr.mxu0 0.0
        %2008 = vmatpush1.msra.mxu0 0.0
        %2009 = vmatprep.subr.mxu0 0.0
        %2010 = vmatpush1.msra.mxu0 0.0
        %2011 = vmatprep.subr.mxu0 0.0
        %2012 = vmatpush1.msra.mxu0 0.0
        %2013 = vmatprep.subr.mxu0 0.0
        %2014 = vmatpush1.msra.mxu0 0.0
        %2015 = vmatprep.subr.mxu0 0.0
        %2016 = vmatpush1.msra.mxu0 0.0
        %2017 = vmatprep.mubr.f32.mxu0 0.0
        %2018 = vmatmul.mubr.f32.gmra.mrb[0].mxu0 %v1951
        %v2019 = vpop.f32.mrb[0].mxu0
        %v2020 = vadd.f32 0.0, %v2019
        %v2021 = vpop.f32.mrb[0].mxu0
        %v2022 = vadd.f32 0.0, %v2021
        %2023 = vdwg.mxu0
        %v2024 = vadd.f32 %v1893, %v2020
        %v2025 = vadd.f32 %v1894, %v2022
        %2026 = vrot.lane.b32.xlu0 %v1200, 17
        %v2027 = vpop.permute.xlu0 %2026
        %2028 = vrot.lane.b32.xlu0 %v1204, 17
        %v2029 = vpop.permute.xlu0 %2028
        %v2030 = vsel %vm542, %v2027, %v2029
        %v2034 = vmul.f32 %v1583, %v2027
        %v2035 = vmul.f32 %v1584, %v2030
        %v2036 = vmul.f32 %v1585, %v2029
        %v2037 = vmul.f32 %v1586, %v2027
        %v2038 = vmul.f32 %v1587, %v2030
        %v2039 = vmul.f32 %v1588, %v2029
        %v2040 = vmul.f32 %v1589, %v2027
        %v2041 = vmul.f32 %v1590, %v2030
        %v2042 = vmul.f32 %v1591, %v2029
        %v2043 = vmul.f32 %v1592, %v2027
        %v2044 = vmul.f32 %v1593, %v2030
        %v2045 = vmul.f32 %v1594, %v2029
        %s2046 = scalar_lea.vmem %s4, 64
        %v2047 = vld [vmem:[%s2046] sm:$0xff]
        %2060 = vrot.lane.b32.xlu0 %v2034, 111
        %v2061 = vpop.permute.xlu0 %2060
        %2062 = vrot.lane.b32.xlu0 %v2035, 111
        %v2063 = vpop.permute.xlu0 %2062
        %2064 = vrot.lane.b32.xlu0 %v2036, 111
        %v2065 = vpop.permute.xlu0 %2064
        %2066 = vrot.lane.b32.xlu0 %v2037, 111
        %v2067 = vpop.permute.xlu0 %2066
        %2068 = vrot.lane.b32.xlu0 %v2038, 111
        %v2069 = vpop.permute.xlu0 %2068
        %2070 = vrot.lane.b32.xlu0 %v2039, 111
        %v2071 = vpop.permute.xlu0 %2070
        %2072 = vrot.lane.b32.xlu0 %v2040, 111
        %v2073 = vpop.permute.xlu0 %2072
        %2074 = vrot.lane.b32.xlu0 %v2041, 111
        %v2075 = vpop.permute.xlu0 %2074
        %2076 = vrot.lane.b32.xlu0 %v2042, 111
        %v2077 = vpop.permute.xlu0 %2076
        %2078 = vrot.lane.b32.xlu0 %v2043, 111
        %v2079 = vpop.permute.xlu0 %2078
        %2080 = vrot.lane.b32.xlu0 %v2044, 111
        %v2081 = vpop.permute.xlu0 %2080
        %2082 = vrot.lane.b32.xlu0 %v2045, 111
        %v2083 = vpop.permute.xlu0 %2082
        %v2084 = vsel %vm285, %v2061, %v2063
        %v2085 = vsel %vm285, %v2063, %v2065
        %v2086 = vsel %vm285, %v2067, %v2069
        %v2087 = vsel %vm285, %v2069, %v2071
        %v2088 = vsel %vm285, %v2073, %v2075
        %v2089 = vsel %vm285, %v2075, %v2077
        %v2090 = vsel %vm285, %v2079, %v2081
        %v2091 = vsel %vm285, %v2081, %v2083
        %v2101 = vsel %vm994, %v2047, 0
        %2103 = vmatprep.subr.mxu0 %v2085
        %2104 = vmatpush1.msra.mxu0 %v2084
        %2105 = vmatprep.subr.mxu0 %v2087
        %2106 = vmatpush1.msra.mxu0 %v2086
        %2107 = vmatprep.subr.mxu0 %v2089
        %2108 = vmatpush1.msra.mxu0 %v2088
        %2109 = vmatprep.subr.mxu0 %v2091
        %2110 = vmatpush1.msra.mxu0 %v2090
        %2111 = vmatprep.subr.mxu0 0.0
        %2112 = vmatpush1.msra.mxu0 0.0
        %2113 = vmatprep.subr.mxu0 0.0
        %2114 = vmatpush1.msra.mxu0 0.0
        %2115 = vmatprep.subr.mxu0 0.0
        %2116 = vmatpush1.msra.mxu0 0.0
        %2117 = vmatprep.subr.mxu0 0.0
        %2118 = vmatpush1.msra.mxu0 0.0
        %2119 = vmatprep.subr.mxu0 0.0
        %2120 = vmatpush1.msra.mxu0 0.0
        %2121 = vmatprep.subr.mxu0 0.0
        %2122 = vmatpush1.msra.mxu0 0.0
        %2123 = vmatprep.subr.mxu0 0.0
        %2124 = vmatpush1.msra.mxu0 0.0
        %2125 = vmatprep.subr.mxu0 0.0
        %2126 = vmatpush1.msra.mxu0 0.0
        %2127 = vmatprep.subr.mxu0 0.0
        %2128 = vmatpush1.msra.mxu0 0.0
        %2129 = vmatprep.subr.mxu0 0.0
        %2130 = vmatpush1.msra.mxu0 0.0
        %2131 = vmatprep.subr.mxu0 0.0
        %2132 = vmatpush1.msra.mxu0 0.0
        %2133 = vmatprep.subr.mxu0 0.0
        %2134 = vmatpush1.msra.mxu0 0.0
        %2135 = vmatprep.subr.mxu0 0.0
        %2136 = vmatpush1.msra.mxu0 0.0
        %2137 = vmatprep.subr.mxu0 0.0
        %2138 = vmatpush1.msra.mxu0 0.0
        %2139 = vmatprep.subr.mxu0 0.0
        %2140 = vmatpush1.msra.mxu0 0.0
        %2141 = vmatprep.subr.mxu0 0.0
        %2142 = vmatpush1.msra.mxu0 0.0
        %2143 = vmatprep.subr.mxu0 0.0
        %2144 = vmatpush1.msra.mxu0 0.0
        %2145 = vmatprep.subr.mxu0 0.0
        %2146 = vmatpush1.msra.mxu0 0.0
        %2147 = vmatprep.subr.mxu0 0.0
        %2148 = vmatpush1.msra.mxu0 0.0
        %2149 = vmatprep.subr.mxu0 0.0
        %2150 = vmatpush1.msra.mxu0 0.0
        %2151 = vmatprep.subr.mxu0 0.0
        %2152 = vmatpush1.msra.mxu0 0.0
        %2153 = vmatprep.subr.mxu0 0.0
        %2154 = vmatpush1.msra.mxu0 0.0
        %2155 = vmatprep.subr.mxu0 0.0
        %2156 = vmatpush1.msra.mxu0 0.0
        %2157 = vmatprep.subr.mxu0 0.0
        %2158 = vmatpush1.msra.mxu0 0.0
        %2159 = vmatprep.subr.mxu0 0.0
        %2160 = vmatpush1.msra.mxu0 0.0
        %2161 = vmatprep.subr.mxu0 0.0
        %2162 = vmatpush1.msra.mxu0 0.0
        %2163 = vmatprep.subr.mxu0 0.0
        %2164 = vmatpush1.msra.mxu0 0.0
        %2165 = vmatprep.subr.mxu0 0.0
        %2166 = vmatpush1.msra.mxu0 0.0
        %2167 = vmatprep.mubr.f32.mxu0 0.0
        %2168 = vmatmul.mubr.f32.gmra.mrb[0].mxu0 %v2101
        %v2169 = vpop.f32.mrb[0].mxu0
        %v2170 = vadd.f32 0.0, %v2169
        %v2171 = vpop.f32.mrb[0].mxu0
        %v2172 = vadd.f32 0.0, %v2171
        %2173 = vdwg.mxu0
        %v2174 = vadd.f32 %v2024, %v2170
        %v2175 = vadd.f32 %v2025, %v2172
        %v2176 = vld [vmem:[%s5] sm:$0xff]
        %2178 = vset.pattern.permute.xlu0 0
        %2179 = vperm.xlu0 %2178, %v2176
        %v2180 = vpop.permute.xlu0 %2179
        %v2182 = vadd.f32 %v2174, %v2180
        %v2183 = vadd.f32 %v2175, %v2180
        %2184 = vst [vmem:[%s244] sm:$0xff] %v2182
        %2185 = vst [vmem:[%s244 + $0x8] sm:$0xff] %v2183
        %s2186 = sand.u32 %s159, 1
        %s2187 = scalar_lea.sflag [#allocation5], %s2186
        %s2188 = sand.u32 %s159, 1
        %s2189 = smul.addr %s2188, 16
        %s2190 = scalar_lea.vmem [#allocation4], %s2189
        // Predicated region
        $region45: #{tpu_custom_call.1} parent=43 // pred_check
          %p2191 = pneg %p169
        $region46: #{tpu_custom_call.1} parent=43 // pred_check_branch
          %2193 = sbr.rel (%p2191) target = $region48
        $region47: #{tpu_custom_call.1} parent=43 // pred_region
          %s2195 = ssub.s32 256, 256
          %2196 = vsyncadd %s2187, %s2195
          %s2197 = smul.addr %s20, 2
          %s2198 = smul.addr %s2197, 128
          %s2199 = scalar_lea.hbm %s6, %s2198
          %s2201 = sshll.u32 %s2190, 4
          %s2202 = int_to_ptr.vmem [resolvable:$true] %s2201
          %2204 = dma.vmem_to_hbm [thread:$0]  %s2202, 256, %s2199, %s2187
        $region48: #{tpu_custom_call.1} parent=43 // pred_fallthru
          _
      $region44: #{tpu_custom_call.1} parent=5 // pred_fallthru
        _
      %p2205 = scmp.le.s32.totalorder 2, %s15
      // Predicated region
      $region49: #{tpu_custom_call.1} parent=5 // pred_check
        %p2206 = pneg %p2205
      $region50: #{tpu_custom_call.1} parent=5 // pred_check_branch
        %2208 = sbr.rel (%p2206) target = $region52
      $region51: #{tpu_custom_call.1} parent=5 // pred_region
        %s2209 = ssub.s32 %s15, 2
        // Predicated region
        $region53: #{tpu_custom_call.1} parent=51 // pred_check
          %p2210 = pneg %p175
        $region54: #{tpu_custom_call.1} parent=51 // pred_check_branch
          %2212 = sbr.rel (%p2210) target = $region56
        $region55: #{tpu_custom_call.1} parent=51 // pred_region
          %s2213 = sand.u32 %s160, 1
          %s2214 = scalar_lea.sflag [#allocation5], %s2213
          %s2215 = sand.u32 %s160, 1
          %s2216 = smul.addr %s2215, 16
          %s2217 = scalar_lea.vmem [#allocation4], %s2216
          %2218 = dma.done %s2214, 256
        $region56: #{tpu_custom_call.1} parent=51 // pred_fallthru
          _
      $region52: #{tpu_custom_call.1} parent=5 // pred_fallthru
        _
    $region6: #{tpu_custom_call.1} parent=1 // loop_footer
      %s19 = sadd.s32 1, %s15
    $region7: #{tpu_custom_call.1} parent=1 // loop_footer_branch
      %14 = sbr.rel target = $region3
    $region8: #{tpu_custom_call.1} parent=1 // loop_exit
      _
    %2219 = vsyncpa [#allocation5], 1
    %s2220 = scalar_lea.sflag [#allocation5], 1
    %2221 = vsyncpa %s2220, 1

// kernel: tpu_custom_call.1
$region0: #{tpu_custom_call.1}
  #allocation0 [shape = 'u32[]', space=smem, size = 0x4, offset = 0x4, fixed_abs, tag = 'smem constant byte address 0x4 - core index']
  #allocation1 [shape = 'u32[144,128]{1,0:T(1,128)}', space=vmem, size = 0x12000, scoped, tag = 'internal scratch']
  #allocation2 [shape = 'f32[8,512]{1,0:T(8,128)}', space=vmem, size = 0x4000, scoped, tag = 'scratch operand']
  #allocation3 [shape = 'f32[32,512]{1,0:T(8,128)}', space=vmem, size = 0x10000, scoped, tag = 'scratch operand']
  %s0 = inlined_call_operand.vmem [shape: f32[2,4,256], index: 0, kind: input, shape index: {}]
  %s1 = inlined_call_operand.vmem [shape: f32[2,256], index: 1, kind: input, shape index: {}]
  %s2 = inlined_call_operand.vmem [shape: f32[3,32,24], index: 2, kind: input, shape index: {}]
  %s3 = inlined_call_operand.vmem [shape: f32[32,1], index: 3, kind: input, shape index: {}]
  %s4 = inlined_call_operand.vmem [shape: f32[9,8,32], index: 4, kind: input, shape index: {}]
  %s5 = inlined_call_operand.vmem [shape: f32[8,1], index: 5, kind: input, shape index: {}]
  %s6 = inlined_call_operand.hbm [shape: f32[2,8,256], index: 6, kind: output, shape index: {}]
  %s7 = sld [smem:[#allocation0]]
  $region57: #{tpu_custom_call.1} parent=0
    _
  %s9 = ssub.s32 1, %s7
  %s10 = scalar_select 0, %s9, %s7
  $region1: #{tpu_custom_call.1} parent=0
    #allocation4 [shape = 'u8[16384]{0}', space=vmem, size = 0x4000, scoped, tag = 'output window, operand 0']
    #allocation5 [shape = 's32[2]{0}', space=sflag, size = 0x8, scoped, tag = 'scoped memory for tpu_custom_call.1']
    %11 = vsyncpa [#allocation5], 0
    %s12 = scalar_lea.sflag [#allocation5], 1
    %13 = vsyncpa %s12, 0
    loop: start=0, step=1, limit=4
    $region2: #{tpu_custom_call.1} parent=1 // loop_pre_header
      _
    $region3: #{tpu_custom_call.1} parent=1 // loop_header
      %s15 = sphi 0, %s19
      %p16 = scmp.ge.s32.totalorder %s15, 4
      %s25 = sphi 0, %s27
      %s28 = sphi 0, %s25
      %s29 = sphi 0, %s28
      %s45 = sphi 0, %s29
      %s49 = sphi 0, %s49
      %s51 = sphi 0, %s49
      %s52 = sphi 0, %s51
      %s66 = sphi 0, %s52
      %s70 = sphi 0, %s70
      %s72 = sphi 0, %s70
      %s73 = sphi 0, %s72
      %s87 = sphi 0, %s73
      %s91 = sphi 0, %s91
      %s93 = sphi 0, %s91
      %s94 = sphi 0, %s93
      %s108 = sphi 0, %s94
      %s112 = sphi 0, %s112
      %s114 = sphi 0, %s112
      %s115 = sphi 0, %s114
      %s129 = sphi 0, %s115
      %s133 = sphi 0, %s133
      %s135 = sphi 0, %s133
      %s136 = sphi 0, %s135
      %s150 = sphi 0, %s136
      %s156 = sphi 0, %s158
      %s159 = sphi 0, %s156
      %s160 = sphi 0, %s159
      %s176 = sphi 0, %s160
    $region4: #{tpu_custom_call.1} parent=1 // loop_header_branch
      %18 = sbr.rel (%p16) target = $region8
    $region5: #{tpu_custom_call.1} parent=1 // loop_body
      %s20 = ssub.s32 %s15, 1
      %s21 = ssub.s32 %s15, 2
      %s22 = sadd.s32 %s15, 1
      %s23 = ssub.s32 %s15, %s22
      %p24 = scmp.eq.s32.totalorder %s23, 0
      %s26 = sadd.s32 %s25, 1
      %s27 = scalar_select %p24, %s25, %s26
      %p30 = pneg %p24
      %p31 = scmp.eq.s32.totalorder %s15, 1
      %p32 = por %p30, %p31
      %p33 = scmp.ne.s32.totalorder %s25, %s28
      %p34 = scmp.eq.s32.totalorder %s15, 0
      %p35 = por %p33, %p34
      %p36 = scmp.ne.s32.totalorder %s25, %s28
      %p37 = scmp.eq.s32.totalorder %s20, 1
      %p38 = por %p36, %p37
      %p39 = scmp.ne.s32.totalorder %s28, %s29
      %p40 = scmp.eq.s32.totalorder %s20, 0
      %p41 = por %p39, %p40
      %p42 = scmp.ne.s32.totalorder %s28, %s29
      %p43 = scmp.eq.s32.totalorder %s21, 1
      %p44 = por %p42, %p43
      %p46 = scmp.ne.s32.totalorder %s29, %s45
      %p47 = scmp.eq.s32.totalorder %s21, 0
      %p48 = por %p46, %p47
      %s50 = sadd.s32 %s49, 1
      %p53 = scmp.eq.s32.totalorder %s15, 1
      %p54 = scmp.ne.s32.totalorder %s49, %s51
      %p55 = scmp.eq.s32.totalorder %s15, 0
      %p56 = por %p54, %p55
      %p57 = scmp.ne.s32.totalorder %s49, %s51
      %p58 = scmp.eq.s32.totalorder %s20, 1
      %p59 = por %p57, %p58
      %p60 = scmp.ne.s32.totalorder %s51, %s52
      %p61 = scmp.eq.s32.totalorder %s20, 0
      %p62 = por %p60, %p61
      %p63 = scmp.ne.s32.totalorder %s51, %s52
      %p64 = scmp.eq.s32.totalorder %s21, 1
      %p65 = por %p63, %p64
      %p67 = scmp.ne.s32.totalorder %s52, %s66
      %p68 = scmp.eq.s32.totalorder %s21, 0
      %p69 = por %p67, %p68
      %s71 = sadd.s32 %s70, 1
      %p74 = scmp.eq.s32.totalorder %s15, 1
      %p75 = scmp.ne.s32.totalorder %s70, %s72
      %p76 = scmp.eq.s32.totalorder %s15, 0
      %p77 = por %p75, %p76
      %p78 = scmp.ne.s32.totalorder %s70, %s72
      %p79 = scmp.eq.s32.totalorder %s20, 1
      %p80 = por %p78, %p79
      %p81 = scmp.ne.s32.totalorder %s72, %s73
      %p82 = scmp.eq.s32.totalorder %s20, 0
      %p83 = por %p81, %p82
      %p84 = scmp.ne.s32.totalorder %s72, %s73
      %p85 = scmp.eq.s32.totalorder %s21, 1
      %p86 = por %p84, %p85
      %p88 = scmp.ne.s32.totalorder %s73, %s87
      %p89 = scmp.eq.s32.totalorder %s21, 0
      %p90 = por %p88, %p89
      %s92 = sadd.s32 %s91, 1
      %p95 = scmp.eq.s32.totalorder %s15, 1
      %p96 = scmp.ne.s32.totalorder %s91, %s93
      %p97 = scmp.eq.s32.totalorder %s15, 0
      %p98 = por %p96, %p97
      %p99 = scmp.ne.s32.totalorder %s91, %s93
      %p100 = scmp.eq.s32.totalorder %s20, 1
      %p101 = por %p99, %p100
      %p102 = scmp.ne.s32.totalorder %s93, %s94
      %p103 = scmp.eq.s32.totalorder %s20, 0
      %p104 = por %p102, %p103
      %p105 = scmp.ne.s32.totalorder %s93, %s94
      %p106 = scmp.eq.s32.totalorder %s21, 1
      %p107 = por %p105, %p106
      %p109 = scmp.ne.s32.totalorder %s94, %s108
      %p110 = scmp.eq.s32.totalorder %s21, 0
      %p111 = por %p109, %p110
      %s113 = sadd.s32 %s112, 1
      %p116 = scmp.eq.s32.totalorder %s15, 1
      %p117 = scmp.ne.s32.totalorder %s112, %s114
      %p118 = scmp.eq.s32.totalorder %s15, 0
      %p119 = por %p117, %p118
      %p120 = scmp.ne.s32.totalorder %s112, %s114
      %p121 = scmp.eq.s32.totalorder %s20, 1
      %p122 = por %p120, %p121
      %p123 = scmp.ne.s32.totalorder %s114, %s115
      %p124 = scmp.eq.s32.totalorder %s20, 0
      %p125 = por %p123, %p124
      %p126 = scmp.ne.s32.totalorder %s114, %s115
      %p127 = scmp.eq.s32.totalorder %s21, 1
      %p128 = por %p126, %p127
      %p130 = scmp.ne.s32.totalorder %s115, %s129
      %p131 = scmp.eq.s32.totalorder %s21, 0
      %p132 = por %p130, %p131
      %s134 = sadd.s32 %s133, 1
      %p137 = scmp.eq.s32.totalorder %s15, 1
      %p138 = scmp.ne.s32.totalorder %s133, %s135
      %p139 = scmp.eq.s32.totalorder %s15, 0
      %p140 = por %p138, %p139
      %p141 = scmp.ne.s32.totalorder %s133, %s135
      %p142 = scmp.eq.s32.totalorder %s20, 1
      %p143 = por %p141, %p142
      %p144 = scmp.ne.s32.totalorder %s135, %s136
      %p145 = scmp.eq.s32.totalorder %s20, 0
      %p146 = por %p144, %p145
      %p147 = scmp.ne.s32.totalorder %s135, %s136
      %p148 = scmp.eq.s32.totalorder %s21, 1
      %p149 = por %p147, %p148
      %p151 = scmp.ne.s32.totalorder %s136, %s150
      %p152 = scmp.eq.s32.totalorder %s21, 0
      %p153 = por %p151, %p152
      %s154 = ssub.s32 %s15, %s22
      %p155 = scmp.eq.s32.totalorder %s154, 0
      %s157 = sadd.s32 %s156, 1
      %s158 = scalar_select %p155, %s156, %s157
      %p161 = pneg %p155
      %p162 = scmp.eq.s32.totalorder %s15, 1
      %p163 = por %p161, %p162
      %p164 = scmp.ne.s32.totalorder %s156, %s159
      %p165 = scmp.eq.s32.totalorder %s15, 0
      %p166 = por %p164, %p165
      %p167 = scmp.ne.s32.totalorder %s156, %s159
      %p168 = scmp.eq.s32.totalorder %s20, 1
      %p169 = por %p167, %p168
      %p170 = scmp.ne.s32.totalorder %s159, %s160
      %p171 = scmp.eq.s32.totalorder %s20, 0
      %p172 = por %p170, %p171
      %p173 = scmp.ne.s32.totalorder %s159, %s160
      %p174 = scmp.eq.s32.totalorder %s21, 1
      %p175 = por %p173, %p174
      %p177 = scmp.ne.s32.totalorder %s160, %s176
      %p178 = scmp.eq.s32.totalorder %s21, 0
      %p179 = por %p177, %p178
      %p180 = scmp.le.s32.totalorder 1, %s15
      %p181 = scmp.lt.s32.totalorder %s15, 3
      %p182 = pnand %p180, %p181
      %p183 = pneg %p182
      // Predicated region
      $region9: #{tpu_custom_call.1} parent=5 // pred_check
        _
      $region10: #{tpu_custom_call.1} parent=5 // pred_check_branch
        %185 = sbr.rel (%p182) target = $region12
      $region11: #{tpu_custom_call.1} parent=5 // pred_region
        %s186 = ssub.s32 %s15, 1
        // Predicated region
        $region13: #{tpu_custom_call.1} parent=11 // pred_check
          %p187 = pneg %p62
        $region14: #{tpu_custom_call.1} parent=11 // pred_check_branch
          %189 = sbr.rel (%p187) target = $region16
        $region15: #{tpu_custom_call.1} parent=11 // pred_region
          _
        $region16: #{tpu_custom_call.1} parent=11 // pred_fallthru
          _
        // Predicated region
        $region17: #{tpu_custom_call.1} parent=11 // pred_check
          %p190 = pneg %p83
        $region18: #{tpu_custom_call.1} parent=11 // pred_check_branch
          %192 = sbr.rel (%p190) target = $region20
        $region19: #{tpu_custom_call.1} parent=11 // pred_region
          _
        $region20: #{tpu_custom_call.1} parent=11 // pred_fallthru
          _
        // Predicated region
        $region21: #{tpu_custom_call.1} parent=11 // pred_check
          %p193 = pneg %p104
        $region22: #{tpu_custom_call.1} parent=11 // pred_check_branch
          %195 = sbr.rel (%p193) target = $region24
        $region23: #{tpu_custom_call.1} parent=11 // pred_region
          _
        $region24: #{tpu_custom_call.1} parent=11 // pred_fallthru
          _
        // Predicated region
        $region25: #{tpu_custom_call.1} parent=11 // pred_check
          %p196 = pneg %p125
        $region26: #{tpu_custom_call.1} parent=11 // pred_check_branch
          %198 = sbr.rel (%p196) target = $region28
        $region27: #{tpu_custom_call.1} parent=11 // pred_region
          _
        $region28: #{tpu_custom_call.1} parent=11 // pred_fallthru
          _
        // Predicated region
        $region29: #{tpu_custom_call.1} parent=11 // pred_check
          %p199 = pneg %p146
        $region30: #{tpu_custom_call.1} parent=11 // pred_check_branch
          %201 = sbr.rel (%p199) target = $region32
        $region31: #{tpu_custom_call.1} parent=11 // pred_region
          _
        $region32: #{tpu_custom_call.1} parent=11 // pred_fallthru
          _
      $region12: #{tpu_custom_call.1} parent=5 // pred_fallthru
        _
      %p202 = scmp.lt.s32.totalorder %s15, 2
      // Predicated region
      $region33: #{tpu_custom_call.1} parent=5 // pred_check
        %p203 = pneg %p202
      $region34: #{tpu_custom_call.1} parent=5 // pred_check_branch
        %205 = sbr.rel (%p203) target = $region36
      $region35: #{tpu_custom_call.1} parent=5 // pred_region
        // Predicated region
        $region37: #{tpu_custom_call.1} parent=35 // pred_check
          %p206 = pneg %p35
        $region38: #{tpu_custom_call.1} parent=35 // pred_check_branch
          %208 = sbr.rel (%p206) target = $region40
        $region39: #{tpu_custom_call.1} parent=35 // pred_region
          %p209 = scmp.lt.s32.totalorder %s15, 1
          %s210 = scalar_select %p209, %s15, 1
          %s211 = smul.addr %s210, 2
          %s212 = smul.addr %s211, 4
          %s213 = scalar_lea.vmem %s0, %s212
        $region40: #{tpu_custom_call.1} parent=35 // pred_fallthru
          _
      $region36: #{tpu_custom_call.1} parent=5 // pred_fallthru
        _
      %p214 = scmp.le.s32.totalorder 1, %s15
      %p215 = scmp.lt.s32.totalorder %s15, 3
      %p216 = pnand %p214, %p215
      %p217 = pneg %p216
      // Predicated region
      $region41: #{tpu_custom_call.1} parent=5 // pred_check
        _
      $region42: #{tpu_custom_call.1} parent=5 // pred_check_branch
        %219 = sbr.rel (%p216) target = $region44
      $region43: #{tpu_custom_call.1} parent=5 // pred_region
        %s220 = ssub.s32 %s15, 1
        %p221 = scmp.lt.s32.totalorder %s20, 1
        %s222 = scalar_select %p221, %s20, 1
        %s223 = smul.addr %s222, 2
        %s224 = smul.addr %s223, 4
        %s225 = scalar_lea.vmem %s0, %s224
        %p226 = pneg %p41
        %p227 = pneg %p38
        %p228 = pneg %p62
        %p229 = pneg %p59
        %p230 = pneg %p83
        %p231 = pneg %p80
        %p232 = pneg %p104
        %p233 = pneg %p101
        %p234 = pneg %p125
        %p235 = pneg %p122
        %p236 = pneg %p146
        %p237 = pneg %p143
        %p238 = pneg %p172
        %p239 = pneg %p169
        %s240 = sand.u32 %s159, 1
        %s241 = scalar_lea.sflag [#allocation5], %s240
        %s242 = sand.u32 %s159, 1
        %s243 = smul.addr %s242, 16
        %s244 = scalar_lea.vmem [#allocation4], %s243
        %p245 = scmp.lt.s32.totalorder %s20, 1
        %s246 = scalar_select %p245, %s20, 1
        %s247 = smul.addr %s246, 2
        %s248 = smul.addr %s247, 4
        %s249 = scalar_lea.vmem %s0, %s248
        %250 = vst [vmem:[#allocation2] sm:$0xff] 0.0
        %251 = vst [vmem:[#allocation2 + $0x18] sm:$0xff] 0.0
        %252 = vst [vmem:[#allocation2 + $0x8] sm:$0xf0] 0.0
        %253 = vst [vmem:[#allocation2 + $0x10] sm:$0xf0] 0.0
        %254 = vst [vmem:[#allocation3] sm:$0xff] 0.0
        %255 = vst [vmem:[#allocation3 + $0x20] sm:$0xff] 0.0
        %256 = vst [vmem:[#allocation3 + $0x40] sm:$0xff] 0.0
        %257 = vst [vmem:[#allocation3 + $0x60] sm:$0xff] 0.0
        %258 = vst [vmem:[#allocation3 + $0x18] sm:$0xff] 0.0
        %259 = vst [vmem:[#allocation3 + $0x38] sm:$0xff] 0.0
        %260 = vst [vmem:[#allocation3 + $0x58] sm:$0xff] 0.0
        %261 = vst [vmem:[#allocation3 + $0x78] sm:$0xff] 0.0
        %v262 = vld [vmem:[%s249] sm:$0xff]
        %v264 = vcombine.high %v262, %v262
        %266 = vst [vmem:[#allocation2 + $0x8] sm:$0xf] %v262
        %267 = vst [vmem:[#allocation2 + $0x10] sm:$0xf] %v264
        %v268 = vld [vmem:[#allocation2] sm:$0xff]
        %v269 = vld [vmem:[#allocation2 + $0x8] sm:$0xff]
        %v270 = vld [vmem:[#allocation2 + $0x10] sm:$0xff]
        %v271 = vld [vmem:[%s1] ss:$2 sm:$0x3]
        %v273 = vlaneseq
        %v274 = vshrl.u32 %v273, 7
        %v275 = vsub.s32 0, %v274
        %v276 = vrot.slane %v271, %v275
        %v277 = vlaneseq
        %v278 = vshrl.u32 %v277, 7
        %v279 = vsub.s32 1, %v278
        %v280 = vrot.slane %v271, %v279
        %281 = vrot.lane.b32.xlu0 %v276, 111
        %v282 = vpop.permute.xlu0 %281
        %283 = vrot.lane.b32.xlu0 %v280, 111
        %v284 = vpop.permute.xlu0 %283
        %vm285 = vcmask 908288
        %v286 = vsel %vm285, %v282, %v284
        %v290 = vmul.f32 %v268, %v282
        %v291 = vmul.f32 %v269, %v286
        %v292 = vmul.f32 %v270, %v284
        %s293 = scalar_lea.vmem %s1, 1
        %v294 = vld [vmem:[%s293] ss:$2 sm:$0x3]
        %v296 = vlaneseq
        %v297 = vshrl.u32 %v296, 7
        %v298 = vsub.s32 0, %v297
        %v299 = vrot.slane %v294, %v298
        %v300 = vlaneseq
        %v301 = vshrl.u32 %v300, 7
        %v302 = vsub.s32 1, %v301
        %v303 = vrot.slane %v294, %v302
        %304 = vrot.lane.b32.xlu0 %v299, 113
        %v305 = vpop.permute.xlu0 %304
        %306 = vrot.lane.b32.xlu0 %v303, 113
        %v307 = vpop.permute.xlu0 %306
        %vm308 = vcmask 924672
        %v309 = vsel %vm308, %v305, %v307
        %v313 = vmul.f32 %v268, %v305
        %v314 = vmul.f32 %v269, %v309
        %v315 = vmul.f32 %v270, %v307
        %319 = vrot.lane.b32.xlu0 %v268, 127
        %v320 = vpop.permute.xlu0 %319
        %321 = vrot.lane.b32.xlu0 %v269, 127
        %v322 = vpop.permute.xlu0 %321
        %323 = vrot.lane.b32.xlu0 %v270, 127
        %v324 = vpop.permute.xlu0 %323
        %vm325 = vcmask 1039360
        %v326 = vsel %vm325, %v320, %v322
        %v327 = vsel %vm325, %v322, %v324
        %331 = vrot.lane.b32.xlu0 %v313, 126
        %v332 = vpop.permute.xlu0 %331
        %333 = vrot.lane.b32.xlu0 %v314, 126
        %v334 = vpop.permute.xlu0 %333
        %335 = vrot.lane.b32.xlu0 %v315, 126
        %v336 = vpop.permute.xlu0 %335
        %vm337 = vcmask 1031168
        %v338 = vsel %vm337, %v332, %v334
        %v339 = vsel %vm337, %v334, %v336
        %v340 = vld [vmem:[%s2] sm:$0xff]
        %v341 = vld [vmem:[%s2 + $0x8] sm:$0xff]
        %v342 = vld [vmem:[%s2 + $0x10] sm:$0xff]
        %v343 = vld [vmem:[%s2 + $0x18] sm:$0xff]
        %344 = vrot.lane.b32.xlu0 %v276, 127
        %v345 = vpop.permute.xlu0 %344
        %346 = vrot.lane.b32.xlu0 %v280, 127
        %v347 = vpop.permute.xlu0 %346
        %v348 = vsel %vm325, %v345, %v347
        %v352 = vmul.f32 %v268, %v345
        %v353 = vmul.f32 %v269, %v348
        %v354 = vmul.f32 %v270, %v347
        %v355 = vld [vmem:[#allocation2 + $0x8] sm:$0xff]
        %v356 = vld [vmem:[#allocation2 + $0x10] sm:$0xff]
        %v357 = vld [vmem:[#allocation2 + $0x18] sm:$0xff]
        %358 = vrot.lane.b32.xlu0 %v299, 1
        %v359 = vpop.permute.xlu0 %358
        %360 = vrot.lane.b32.xlu0 %v303, 1
        %v361 = vpop.permute.xlu0 %360
        %vm362 = vcmask 7168
        %v363 = vsel %vm362, %v359, %v361
        %v367 = vmul.f32 %v355, %v359
        %v368 = vmul.f32 %v356, %v363
        %v369 = vmul.f32 %v357, %v361
        %373 = vrot.lane.b32.xlu0 %v367, 126
        %v374 = vpop.permute.xlu0 %373
        %375 = vrot.lane.b32.xlu0 %v368, 126
        %v376 = vpop.permute.xlu0 %375
        %377 = vrot.lane.b32.xlu0 %v369, 126
        %v378 = vpop.permute.xlu0 %377
        %v379 = vsel %vm337, %v374, %v376
        %v380 = vsel %vm337, %v376, %v378
        %s381 = scalar_lea.vmem %s2, 32
        %v382 = vld [vmem:[%s381] sm:$0xff]
        %v383 = vld [vmem:[%s381 + $0x8] sm:$0xff]
        %v384 = vld [vmem:[%s381 + $0x10] sm:$0xff]
        %v385 = vld [vmem:[%s381 + $0x18] sm:$0xff]
        %389 = vrot.lane.b32.xlu0 %v352, 1
        %v390 = vpop.permute.xlu0 %389
        %391 = vrot.lane.b32.xlu0 %v353, 1
        %v392 = vpop.permute.xlu0 %391
        %393 = vrot.lane.b32.xlu0 %v354, 1
        %v394 = vpop.permute.xlu0 %393
        %395 = vrot.lane.b32.xlu0 %v322, 1
        %v396 = vpop.permute.xlu0 %395
        %397 = vrot.lane.b32.xlu0 %v327, 1
        %v398 = vpop.permute.xlu0 %397
        %399 = vrot.lane.b32.xlu0 %v324, 1
        %v400 = vpop.permute.xlu0 %399
        %401 = vrot.lane.b32.xlu0 %v374, 1
        %v402 = vpop.permute.xlu0 %401
        %403 = vrot.lane.b32.xlu0 %v379, 1
        %v404 = vpop.permute.xlu0 %403
        %405 = vrot.lane.b32.xlu0 %v380, 1
        %v406 = vpop.permute.xlu0 %405
        %v407 = vsel %vm362, %v390, %v392
        %v408 = vsel %vm362, %v392, %v394
        %v409 = vsel %vm362, %v396, %v398
        %v410 = vsel %vm362, %v398, %v400
        %v411 = vsel %vm362, %v402, %v404
        %v412 = vsel %vm362, %v404, %v406
        %vm419 = vcmask 195584
        %v421 = vsel %vm419, %v382, 0
        %v424 = vsel %vm419, %v383, 0
        %v427 = vsel %vm419, %v384, 0
        %v430 = vsel %vm419, %v385, 0
        %432 = vmatprep.subr.mxu0 %v408
        %433 = vmatpush1.msra.mxu0 %v407
        %434 = vmatprep.subr.mxu0 %v410
        %435 = vmatpush1.msra.mxu0 %v409
        %436 = vmatprep.subr.mxu0 %v412
        %437 = vmatpush1.msra.mxu0 %v411
        %438 = vmatprep.subr.mxu0 0.0
        %439 = vmatpush1.msra.mxu0 0.0
        %440 = vmatprep.subr.mxu0 0.0
        %441 = vmatpush1.msra.mxu0 0.0
        %442 = vmatprep.subr.mxu0 0.0
        %443 = vmatpush1.msra.mxu0 0.0
        %444 = vmatprep.subr.mxu0 0.0
        %445 = vmatpush1.msra.mxu0 0.0
        %446 = vmatprep.subr.mxu0 0.0
        %447 = vmatpush1.msra.mxu0 0.0
        %448 = vmatprep.subr.mxu0 0.0
        %449 = vmatpush1.msra.mxu0 0.0
        %450 = vmatprep.subr.mxu0 0.0
        %451 = vmatpush1.msra.mxu0 0.0
        %452 = vmatprep.subr.mxu0 0.0
        %453 = vmatpush1.msra.mxu0 0.0
        %454 = vmatprep.subr.mxu0 0.0
        %455 = vmatpush1.msra.mxu0 0.0
        %456 = vmatprep.subr.mxu0 0.0
        %457 = vmatpush1.msra.mxu0 0.0
        %458 = vmatprep.subr.mxu0 0.0
        %459 = vmatpush1.msra.mxu0 0.0
        %460 = vmatprep.subr.mxu0 0.0
        %461 = vmatpush1.msra.mxu0 0.0
        %462 = vmatprep.subr.mxu0 0.0
        %463 = vmatpush1.msra.mxu0 0.0
        %464 = vmatprep.subr.mxu0 0.0
        %465 = vmatpush1.msra.mxu0 0.0
        %466 = vmatprep.subr.mxu0 0.0
        %467 = vmatpush1.msra.mxu0 0.0
        %468 = vmatprep.subr.mxu0 0.0
        %469 = vmatpush1.msra.mxu0 0.0
        %470 = vmatprep.subr.mxu0 0.0
        %471 = vmatpush1.msra.mxu0 0.0
        %472 = vmatprep.subr.mxu0 0.0
        %473 = vmatpush1.msra.mxu0 0.0
        %474 = vmatprep.subr.mxu0 0.0
        %475 = vmatpush1.msra.mxu0 0.0
        %476 = vmatprep.subr.mxu0 0.0
        %477 = vmatpush1.msra.mxu0 0.0
        %478 = vmatprep.subr.mxu0 0.0
        %479 = vmatpush1.msra.mxu0 0.0
        %480 = vmatprep.subr.mxu0 0.0
        %481 = vmatpush1.msra.mxu0 0.0
        %482 = vmatprep.subr.mxu0 0.0
        %483 = vmatpush1.msra.mxu0 0.0
        %484 = vmatprep.subr.mxu0 0.0
        %485 = vmatpush1.msra.mxu0 0.0
        %486 = vmatprep.subr.mxu0 0.0
        %487 = vmatpush1.msra.mxu0 0.0
        %488 = vmatprep.subr.mxu0 0.0
        %489 = vmatpush1.msra.mxu0 0.0
        %490 = vmatprep.subr.mxu0 0.0
        %491 = vmatpush1.msra.mxu0 0.0
        %492 = vmatprep.subr.mxu0 0.0
        %493 = vmatpush1.msra.mxu0 0.0
        %494 = vmatprep.subr.mxu0 0.0
        %495 = vmatpush1.msra.mxu0 0.0
        %496 = vmatprep.mubr.f32.mxu0 0.0
        %497 = vmatmul.mubr.f32.gmra.mrb[0].mxu0 %v421
        %v498 = vpop.f32.mrb[0].mxu0
        %v499 = vadd.f32 0.0, %v498
        %v500 = vpop.f32.mrb[0].mxu0
        %v501 = vadd.f32 0.0, %v500
        %502 = vmatprep.mubr.f32.mxu0 0.0
        %503 = vmatmul.mubr.f32.gmra.mrb[0].mxu0 %v424
        %v504 = vpop.f32.mrb[0].mxu0
        %v505 = vadd.f32 0.0, %v504
        %v506 = vpop.f32.mrb[0].mxu0
        %v507 = vadd.f32 0.0, %v506
        %508 = vmatprep.mubr.f32.mxu0 0.0
        %509 = vmatmul.mubr.f32.gmra.mrb[0].mxu0 %v427
        %v510 = vpop.f32.mrb[0].mxu0
        %v511 = vadd.f32 0.0, %v510
        %v512 = vpop.f32.mrb[0].mxu0
        %v513 = vadd.f32 0.0, %v512
        %514 = vmatprep.mubr.f32.mxu0 0.0
        %515 = vmatmul.mubr.f32.gmra.mrb[0].mxu0 %v430
        %v516 = vpop.f32.mrb[0].mxu0
        %v517 = vadd.f32 0.0, %v516
        %v518 = vpop.f32.mrb[0].mxu0
        %v519 = vadd.f32 0.0, %v518
        %520 = vdwg.mxu0
        %524 = vrot.lane.b32.xlu0 %v290, 17
        %v525 = vpop.permute.xlu0 %524
        %526 = vrot.lane.b32.xlu0 %v291, 17
        %v527 = vpop.permute.xlu0 %526
        %528 = vrot.lane.b32.xlu0 %v292, 17
        %v529 = vpop.permute.xlu0 %528
        %530 = vrot.lane.b32.xlu0 %v326, 17
        %v531 = vpop.permute.xlu0 %530
        %532 = vrot.lane.b32.xlu0 %v327, 17
        %v533 = vpop.permute.xlu0 %532
        %534 = vrot.lane.b32.xlu0 %v324, 17
        %v535 = vpop.permute.xlu0 %534
        %536 = vrot.lane.b32.xlu0 %v338, 17
        %v537 = vpop.permute.xlu0 %536
        %538 = vrot.lane.b32.xlu0 %v339, 17
        %v539 = vpop.permute.xlu0 %538
        %540 = vrot.lane.b32.xlu0 %v336, 17
        %v541 = vpop.permute.xlu0 %540
        %vm542 = vcmask 138240
        %v543 = vsel %vm542, %v525, %v527
        %v544 = vsel %vm542, %v527, %v529
        %v545 = vsel %vm542, %v531, %v533
        %v546 = vsel %vm542, %v533, %v535
        %v547 = vsel %vm542, %v537, %v539
        %v548 = vsel %vm542, %v539, %v541
        %v556 = vsel %vm419, %v340, 0
        %v559 = vsel %vm419, %v341, 0
        %v562 = vsel %vm419, %v342, 0
        %v565 = vsel %vm419, %v343, 0
        %567 = vmatprep.subr.mxu0 %v544
        %568 = vmatpush1.msra.mxu0 %v543
        %569 = vmatprep.subr.mxu0 %v546
        %570 = vmatpush1.msra.mxu0 %v545
        %571 = vmatprep.subr.mxu0 %v548
        %572 = vmatpush1.msra.mxu0 %v547
        %573 = vmatprep.subr.mxu0 0.0
        %574 = vmatpush1.msra.mxu0 0.0
        %575 = vmatprep.subr.mxu0 0.0
        %576 = vmatpush1.msra.mxu0 0.0
        %577 = vmatprep.subr.mxu0 0.0
        %578 = vmatpush1.msra.mxu0 0.0
        %579 = vmatprep.subr.mxu0 0.0
        %580 = vmatpush1.msra.mxu0 0.0
        %581 = vmatprep.subr.mxu0 0.0
        %582 = vmatpush1.msra.mxu0 0.0
        %583 = vmatprep.subr.mxu0 0.0
        %584 = vmatpush1.msra.mxu0 0.0
        %585 = vmatprep.subr.mxu0 0.0
        %586 = vmatpush1.msra.mxu0 0.0
        %587 = vmatprep.subr.mxu0 0.0
        %588 = vmatpush1.msra.mxu0 0.0
        %589 = vmatprep.subr.mxu0 0.0
        %590 = vmatpush1.msra.mxu0 0.0
        %591 = vmatprep.subr.mxu0 0.0
        %592 = vmatpush1.msra.mxu0 0.0
        %593 = vmatprep.subr.mxu0 0.0
        %594 = vmatpush1.msra.mxu0 0.0
        %595 = vmatprep.subr.mxu0 0.0
        %596 = vmatpush1.msra.mxu0 0.0
        %597 = vmatprep.subr.mxu0 0.0
        %598 = vmatpush1.msra.mxu0 0.0
        %599 = vmatprep.subr.mxu0 0.0
        %600 = vmatpush1.msra.mxu0 0.0
        %601 = vmatprep.subr.mxu0 0.0
        %602 = vmatpush1.msra.mxu0 0.0
        %603 = vmatprep.subr.mxu0 0.0
        %604 = vmatpush1.msra.mxu0 0.0
        %605 = vmatprep.subr.mxu0 0.0
        %606 = vmatpush1.msra.mxu0 0.0
        %607 = vmatprep.subr.mxu0 0.0
        %608 = vmatpush1.msra.mxu0 0.0
        %609 = vmatprep.subr.mxu0 0.0
        %610 = vmatpush1.msra.mxu0 0.0
        %611 = vmatprep.subr.mxu0 0.0
        %612 = vmatpush1.msra.mxu0 0.0
        %613 = vmatprep.subr.mxu0 0.0
        %614 = vmatpush1.msra.mxu0 0.0
        %615 = vmatprep.subr.mxu0 0.0
        %616 = vmatpush1.msra.mxu0 0.0
        %617 = vmatprep.subr.mxu0 0.0
        %618 = vmatpush1.msra.mxu0 0.0
        %619 = vmatprep.subr.mxu0 0.0
        %620 = vmatpush1.msra.mxu0 0.0
        %621 = vmatprep.subr.mxu0 0.0
        %622 = vmatpush1.msra.mxu0 0.0
        %623 = vmatprep.subr.mxu0 0.0
        %624 = vmatpush1.msra.mxu0 0.0
        %625 = vmatprep.subr.mxu0 0.0
        %626 = vmatpush1.msra.mxu0 0.0
        %627 = vmatprep.subr.mxu0 0.0
        %628 = vmatpush1.msra.mxu0 0.0
        %629 = vmatprep.subr.mxu0 0.0
        %630 = vmatpush1.msra.mxu0 0.0
        %631 = vmatprep.mubr.f32.mxu0 0.0
        %632 = vmatmul.mubr.f32.gmra.mrb[0].mxu0 %v556
        %v633 = vpop.f32.mrb[0].mxu0
        %v634 = vadd.f32 %v499, %v633
        %v635 = vpop.f32.mrb[0].mxu0
        %v636 = vadd.f32 %v501, %v635
        %637 = vmatprep.mubr.f32.mxu0 0.0
        %638 = vmatmul.mubr.f32.gmra.mrb[0].mxu0 %v559
        %v639 = vpop.f32.mrb[0].mxu0
        %v640 = vadd.f32 %v505, %v639
        %v641 = vpop.f32.mrb[0].mxu0
        %v642 = vadd.f32 %v507, %v641
        %643 = vmatprep.mubr.f32.mxu0 0.0
        %644 = vmatmul.mubr.f32.gmra.mrb[0].mxu0 %v562
        %v645 = vpop.f32.mrb[0].mxu0
        %v646 = vadd.f32 %v511, %v645
        %v647 = vpop.f32.mrb[0].mxu0
        %v648 = vadd.f32 %v513, %v647
        %649 = vmatprep.mubr.f32.mxu0 0.0
        %650 = vmatmul.mubr.f32.gmra.mrb[0].mxu0 %v565
        %v651 = vpop.f32.mrb[0].mxu0
        %v652 = vadd.f32 %v517, %v651
        %v653 = vpop.f32.mrb[0].mxu0
        %v654 = vadd.f32 %v519, %v653
        %655 = vdwg.mxu0
        %656 = vrot.lane.b32.xlu0 %v276, 15
        %v657 = vpop.permute.xlu0 %656
        %658 = vrot.lane.b32.xlu0 %v280, 15
        %v659 = vpop.permute.xlu0 %658
        %vm660 = vcmask 121856
        %v661 = vsel %vm660, %v657, %v659
        %v665 = vmul.f32 %v355, %v657
        %v666 = vmul.f32 %v356, %v661
        %v667 = vmul.f32 %v357, %v659
        %668 = vrot.lane.b32.xlu0 %v299, 17
        %v669 = vpop.permute.xlu0 %668
        %670 = vrot.lane.b32.xlu0 %v303, 17
        %v671 = vpop.permute.xlu0 %670
        %v672 = vsel %vm542, %v669, %v671
        %v676 = vmul.f32 %v355, %v669
        %v677 = vmul.f32 %v356, %v672
        %v678 = vmul.f32 %v357, %v671
        %682 = vrot.lane.b32.xlu0 %v355, 127
        %v683 = vpop.permute.xlu0 %682
        %684 = vrot.lane.b32.xlu0 %v356, 127
        %v685 = vpop.permute.xlu0 %684
        %686 = vrot.lane.b32.xlu0 %v357, 127
        %v687 = vpop.permute.xlu0 %686
        %v688 = vsel %vm325, %v683, %v685
        %v689 = vsel %vm325, %v685, %v687
        %693 = vrot.lane.b32.xlu0 %v676, 126
        %v694 = vpop.permute.xlu0 %693
        %695 = vrot.lane.b32.xlu0 %v677, 126
        %v696 = vpop.permute.xlu0 %695
        %697 = vrot.lane.b32.xlu0 %v678, 126
        %v698 = vpop.permute.xlu0 %697
        %v699 = vsel %vm337, %v694, %v696
        %v700 = vsel %vm337, %v696, %v698
        %s701 = scalar_lea.vmem %s2, 64
        %v702 = vld [vmem:[%s701] sm:$0xff]
        %v703 = vld [vmem:[%s701 + $0x8] sm:$0xff]
        %v704 = vld [vmem:[%s701 + $0x10] sm:$0xff]
        %v705 = vld [vmem:[%s701 + $0x18] sm:$0xff]
        %709 = vrot.lane.b32.xlu0 %v665, 113
        %v710 = vpop.permute.xlu0 %709
        %711 = vrot.lane.b32.xlu0 %v666, 113
        %v712 = vpop.permute.xlu0 %711
        %713 = vrot.lane.b32.xlu0 %v667, 113
        %v714 = vpop.permute.xlu0 %713
        %715 = vrot.lane.b32.xlu0 %v688, 113
        %v716 = vpop.permute.xlu0 %715
        %717 = vrot.lane.b32.xlu0 %v689, 113
        %v718 = vpop.permute.xlu0 %717
        %719 = vrot.lane.b32.xlu0 %v687, 113
        %v720 = vpop.permute.xlu0 %719
        %721 = vrot.lane.b32.xlu0 %v699, 113
        %v722 = vpop.permute.xlu0 %721
        %723 = vrot.lane.b32.xlu0 %v700, 113
        %v724 = vpop.permute.xlu0 %723
        %725 = vrot.lane.b32.xlu0 %v698, 113
        %v726 = vpop.permute.xlu0 %725
        %v727 = vsel %vm308, %v710, %v712
        %v728 = vsel %vm308, %v712, %v714
        %v729 = vsel %vm308, %v716, %v718
        %v730 = vsel %vm308, %v718, %v720
        %v731 = vsel %vm308, %v722, %v724
        %v732 = vsel %vm308, %v724, %v726
        %v740 = vsel %vm419, %v702, 0
        %v743 = vsel %vm419, %v703, 0
        %v746 = vsel %vm419, %v704, 0
        %v749 = vsel %vm419, %v705, 0
        %751 = vmatprep.subr.mxu0 %v728
        %752 = vmatpush1.msra.mxu0 %v727
        %753 = vmatprep.subr.mxu0 %v730
        %754 = vmatpush1.msra.mxu0 %v729
        %755 = vmatprep.subr.mxu0 %v732
        %756 = vmatpush1.msra.mxu0 %v731
        %757 = vmatprep.subr.mxu0 0.0
        %758 = vmatpush1.msra.mxu0 0.0
        %759 = vmatprep.subr.mxu0 0.0
        %760 = vmatpush1.msra.mxu0 0.0
        %761 = vmatprep.subr.mxu0 0.0
        %762 = vmatpush1.msra.mxu0 0.0
        %763 = vmatprep.subr.mxu0 0.0
        %764 = vmatpush1.msra.mxu0 0.0
        %765 = vmatprep.subr.mxu0 0.0
        %766 = vmatpush1.msra.mxu0 0.0
        %767 = vmatprep.subr.mxu0 0.0
        %768 = vmatpush1.msra.mxu0 0.0
        %769 = vmatprep.subr.mxu0 0.0
        %770 = vmatpush1.msra.mxu0 0.0
        %771 = vmatprep.subr.mxu0 0.0
        %772 = vmatpush1.msra.mxu0 0.0
        %773 = vmatprep.subr.mxu0 0.0
        %774 = vmatpush1.msra.mxu0 0.0
        %775 = vmatprep.subr.mxu0 0.0
        %776 = vmatpush1.msra.mxu0 0.0
        %777 = vmatprep.subr.mxu0 0.0
        %778 = vmatpush1.msra.mxu0 0.0
        %779 = vmatprep.subr.mxu0 0.0
        %780 = vmatpush1.msra.mxu0 0.0
        %781 = vmatprep.subr.mxu0 0.0
        %782 = vmatpush1.msra.mxu0 0.0
        %783 = vmatprep.subr.mxu0 0.0
        %784 = vmatpush1.msra.mxu0 0.0
        %785 = vmatprep.subr.mxu0 0.0
        %786 = vmatpush1.msra.mxu0 0.0
        %787 = vmatprep.subr.mxu0 0.0
        %788 = vmatpush1.msra.mxu0 0.0
        %789 = vmatprep.subr.mxu0 0.0
        %790 = vmatpush1.msra.mxu0 0.0
        %791 = vmatprep.subr.mxu0 0.0
        %792 = vmatpush1.msra.mxu0 0.0
        %793 = vmatprep.subr.mxu0 0.0
        %794 = vmatpush1.msra.mxu0 0.0
        %795 = vmatprep.subr.mxu0 0.0
        %796 = vmatpush1.msra.mxu0 0.0
        %797 = vmatprep.subr.mxu0 0.0
        %798 = vmatpush1.msra.mxu0 0.0
        %799 = vmatprep.subr.mxu0 0.0
        %800 = vmatpush1.msra.mxu0 0.0
        %801 = vmatprep.subr.mxu0 0.0
        %802 = vmatpush1.msra.mxu0 0.0
        %803 = vmatprep.subr.mxu0 0.0
        %804 = vmatpush1.msra.mxu0 0.0
        %805 = vmatprep.subr.mxu0 0.0
        %806 = vmatpush1.msra.mxu0 0.0
        %807 = vmatprep.subr.mxu0 0.0
        %808 = vmatpush1.msra.mxu0 0.0
        %809 = vmatprep.subr.mxu0 0.0
        %810 = vmatpush1.msra.mxu0 0.0
        %811 = vmatprep.subr.mxu0 0.0
        %812 = vmatpush1.msra.mxu0 0.0
        %813 = vmatprep.subr.mxu0 0.0
        %814 = vmatpush1.msra.mxu0 0.0
        %815 = vmatprep.mubr.f32.mxu0 0.0
        %816 = vmatmul.mubr.f32.gmra.mrb[0].mxu0 %v740
        %v817 = vpop.f32.mrb[0].mxu0
        %v818 = vadd.f32 0.0, %v817
        %v819 = vpop.f32.mrb[0].mxu0
        %v820 = vadd.f32 0.0, %v819
        %821 = vmatprep.mubr.f32.mxu0 0.0
        %822 = vmatmul.mubr.f32.gmra.mrb[0].mxu0 %v743
        %v823 = vpop.f32.mrb[0].mxu0
        %v824 = vadd.f32 0.0, %v823
        %v825 = vpop.f32.mrb[0].mxu0
        %v826 = vadd.f32 0.0, %v825
        %827 = vmatprep.mubr.f32.mxu0 0.0
        %828 = vmatmul.mubr.f32.gmra.mrb[0].mxu0 %v746
        %v829 = vpop.f32.mrb[0].mxu0
        %v830 = vadd.f32 0.0, %v829
        %v831 = vpop.f32.mrb[0].mxu0
        %v832 = vadd.f32 0.0, %v831
        %833 = vmatprep.mubr.f32.mxu0 0.0
        %834 = vmatmul.mubr.f32.gmra.mrb[0].mxu0 %v749
        %v835 = vpop.f32.mrb[0].mxu0
        %v836 = vadd.f32 0.0, %v835
        %v837 = vpop.f32.mrb[0].mxu0
        %v838 = vadd.f32 0.0, %v837
        %839 = vdwg.mxu0
        %v840 = vadd.f32 %v634, %v818
        %v841 = vadd.f32 %v636, %v820
        %v842 = vadd.f32 %v640, %v824
        %v843 = vadd.f32 %v642, %v826
        %v844 = vadd.f32 %v646, %v830
        %v845 = vadd.f32 %v648, %v832
        %v846 = vadd.f32 %v652, %v836
        %v847 = vadd.f32 %v654, %v838
        %v848 = vld [vmem:[%s3] sm:$0xff]
        %v849 = vld [vmem:[%s3 + $0x8] sm:$0xff]
        %v850 = vld [vmem:[%s3 + $0x10] sm:$0xff]
        %v851 = vld [vmem:[%s3 + $0x18] sm:$0xff]
        %853 = vset.pattern.permute.xlu0 0
        %854 = vperm.xlu0 %853, %v848
        %v855 = vpop.permute.xlu0 %854
        %858 = vset.pattern.permute.xlu0 0
        %859 = vperm.xlu0 %858, %v849
        %v860 = vpop.permute.xlu0 %859
        %863 = vset.pattern.permute.xlu0 0
        %864 = vperm.xlu0 %863, %v850
        %v865 = vpop.permute.xlu0 %864
        %868 = vset.pattern.permute.xlu0 0
        %869 = vperm.xlu0 %868, %v851
        %v870 = vpop.permute.xlu0 %869
        %v872 = vadd.f32 %v840, %v855
        %v873 = vadd.f32 %v841, %v855
        %v874 = vadd.f32 %v842, %v860
        %v875 = vadd.f32 %v843, %v860
        %v876 = vadd.f32 %v844, %v865
        %v877 = vadd.f32 %v845, %v865
        %v878 = vadd.f32 %v846, %v870
        %v879 = vadd.f32 %v847, %v870
        %v880 = vmax.f32 %v872, 0.0
        %v881 = vmax.f32 %v873, 0.0
        %v882 = vmax.f32 %v874, 0.0
        %v883 = vmax.f32 %v875, 0.0
        %v884 = vmax.f32 %v876, 0.0
        %v885 = vmax.f32 %v877, 0.0
        %v886 = vmax.f32 %v878, 0.0
        %v887 = vmax.f32 %v879, 0.0
        %888 = vst [vmem:[#allocation3 + $0x8] sm:$0xff] %v880
        %889 = vst [vmem:[#allocation3 + $0x10] sm:$0xff] %v881
        %890 = vst [vmem:[#allocation3 + $0x28] sm:$0xff] %v882
        %891 = vst [vmem:[#allocation3 + $0x30] sm:$0xff] %v883
        %892 = vst [vmem:[#allocation3 + $0x48] sm:$0xff] %v884
        %893 = vst [vmem:[#allocation3 + $0x50] sm:$0xff] %v885
        %894 = vst [vmem:[#allocation3 + $0x68] sm:$0xff] %v886
        %895 = vst [vmem:[#allocation3 + $0x70] sm:$0xff] %v887
        %v896 = vld [vmem:[#allocation3] sm:$0xff]
        %v897 = vld [vmem:[#allocation3 + $0x8] sm:$0xff]
        %v898 = vld [vmem:[#allocation3 + $0x10] sm:$0xff]
        %v899 = vld [vmem:[#allocation3 + $0x20] sm:$0xff]
        %v900 = vld [vmem:[#allocation3 + $0x28] sm:$0xff]
        %v901 = vld [vmem:[#allocation3 + $0x30] sm:$0xff]
        %v902 = vld [vmem:[#allocation3 + $0x40] sm:$0xff]
        %v903 = vld [vmem:[#allocation3 + $0x48] sm:$0xff]
        %v904 = vld [vmem:[#allocation3 + $0x50] sm:$0xff]
        %v905 = vld [vmem:[#allocation3 + $0x60] sm:$0xff]
        %v906 = vld [vmem:[#allocation3 + $0x68] sm:$0xff]
        %v907 = vld [vmem:[#allocation3 + $0x70] sm:$0xff]
        %v908 = vld [vmem:[%s1] ss:$2 sm:$0x3]
        %v910 = vlaneseq
        %v911 = vshrl.u32 %v910, 7
        %v912 = vsub.s32 0, %v911
        %v913 = vrot.slane %v908, %v912
        %v914 = vlaneseq
        %v915 = vshrl.u32 %v914, 7
        %v916 = vsub.s32 1, %v915
        %v917 = vrot.slane %v908, %v916
        %918 = vrot.lane.b32.xlu0 %v913, 111
        %v919 = vpop.permute.xlu0 %918
        %920 = vrot.lane.b32.xlu0 %v917, 111
        %v921 = vpop.permute.xlu0 %920
        %v922 = vsel %vm285, %v919, %v921
        %v926 = vmul.f32 %v896, %v919
        %v927 = vmul.f32 %v897, %v922
        %v928 = vmul.f32 %v898, %v921
        %v929 = vmul.f32 %v899, %v919
        %v930 = vmul.f32 %v900, %v922
        %v931 = vmul.f32 %v901, %v921
        %v932 = vmul.f32 %v902, %v919
        %v933 = vmul.f32 %v903, %v922
        %v934 = vmul.f32 %v904, %v921
        %v935 = vmul.f32 %v905, %v919
        %v936 = vmul.f32 %v906, %v922
        %v937 = vmul.f32 %v907, %v921
        %v938 = vld [vmem:[%s4] sm:$0xff]
        %s939 = scalar_lea.vmem %s4, 8
        %v940 = vld [vmem:[%s939] sm:$0xff]
        %953 = vrot.lane.b32.xlu0 %v896, 16
        %v954 = vpop.permute.xlu0 %953
        %955 = vrot.lane.b32.xlu0 %v897, 16
        %v956 = vpop.permute.xlu0 %955
        %957 = vrot.lane.b32.xlu0 %v898, 16
        %v958 = vpop.permute.xlu0 %957
        %959 = vrot.lane.b32.xlu0 %v899, 16
        %v960 = vpop.permute.xlu0 %959
        %961 = vrot.lane.b32.xlu0 %v900, 16
        %v962 = vpop.permute.xlu0 %961
        %963 = vrot.lane.b32.xlu0 %v901, 16
        %v964 = vpop.permute.xlu0 %963
        %965 = vrot.lane.b32.xlu0 %v902, 16
        %v966 = vpop.permute.xlu0 %965
        %967 = vrot.lane.b32.xlu0 %v903, 16
        %v968 = vpop.permute.xlu0 %967
        %969 = vrot.lane.b32.xlu0 %v904, 16
        %v970 = vpop.permute.xlu0 %969
        %971 = vrot.lane.b32.xlu0 %v905, 16
        %v972 = vpop.permute.xlu0 %971
        %973 = vrot.lane.b32.xlu0 %v906, 16
        %v974 = vpop.permute.xlu0 %973
        %975 = vrot.lane.b32.xlu0 %v907, 16
        %v976 = vpop.permute.xlu0 %975
        %vm977 = vcmask 130048
        %v978 = vsel %vm977, %v954, %v956
        %v979 = vsel %vm977, %v956, %v958
        %v980 = vsel %vm977, %v960, %v962
        %v981 = vsel %vm977, %v962, %v964
        %v982 = vsel %vm977, %v966, %v968
        %v983 = vsel %vm977, %v968, %v970
        %v984 = vsel %vm977, %v972, %v974
        %v985 = vsel %vm977, %v974, %v976
        %vm994 = vcmask 261120
        %v996 = vsel %vm994, %v940, 0
        %998 = vmatprep.subr.mxu0 %v979
        %999 = vmatpush1.msra.mxu0 %v978
        %1000 = vmatprep.subr.mxu0 %v981
        %1001 = vmatpush1.msra.mxu0 %v980
        %1002 = vmatprep.subr.mxu0 %v983
        %1003 = vmatpush1.msra.mxu0 %v982
        %1004 = vmatprep.subr.mxu0 %v985
        %1005 = vmatpush1.msra.mxu0 %v984
        %1006 = vmatprep.subr.mxu0 0.0
        %1007 = vmatpush1.msra.mxu0 0.0
        %1008 = vmatprep.subr.mxu0 0.0
        %1009 = vmatpush1.msra.mxu0 0.0
        %1010 = vmatprep.subr.mxu0 0.0
        %1011 = vmatpush1.msra.mxu0 0.0
        %1012 = vmatprep.subr.mxu0 0.0
        %1013 = vmatpush1.msra.mxu0 0.0
        %1014 = vmatprep.subr.mxu0 0.0
        %1015 = vmatpush1.msra.mxu0 0.0
        %1016 = vmatprep.subr.mxu0 0.0
        %1017 = vmatpush1.msra.mxu0 0.0
        %1018 = vmatprep.subr.mxu0 0.0
        %1019 = vmatpush1.msra.mxu0 0.0
        %1020 = vmatprep.subr.mxu0 0.0
        %1021 = vmatpush1.msra.mxu0 0.0
        %1022 = vmatprep.subr.mxu0 0.0
        %1023 = vmatpush1.msra.mxu0 0.0
        %1024 = vmatprep.subr.mxu0 0.0
        %1025 = vmatpush1.msra.mxu0 0.0
        %1026 = vmatprep.subr.mxu0 0.0
        %1027 = vmatpush1.msra.mxu0 0.0
        %1028 = vmatprep.subr.mxu0 0.0
        %1029 = vmatpush1.msra.mxu0 0.0
        %1030 = vmatprep.subr.mxu0 0.0
        %1031 = vmatpush1.msra.mxu0 0.0
        %1032 = vmatprep.subr.mxu0 0.0
        %1033 = vmatpush1.msra.mxu0 0.0
        %1034 = vmatprep.subr.mxu0 0.0
        %1035 = vmatpush1.msra.mxu0 0.0
        %1036 = vmatprep.subr.mxu0 0.0
        %1037 = vmatpush1.msra.mxu0 0.0
        %1038 = vmatprep.subr.mxu0 0.0
        %1039 = vmatpush1.msra.mxu0 0.0
        %1040 = vmatprep.subr.mxu0 0.0
        %1041 = vmatpush1.msra.mxu0 0.0
        %1042 = vmatprep.subr.mxu0 0.0
        %1043 = vmatpush1.msra.mxu0 0.0
        %1044 = vmatprep.subr.mxu0 0.0
        %1045 = vmatpush1.msra.mxu0 0.0
        %1046 = vmatprep.subr.mxu0 0.0
        %1047 = vmatpush1.msra.mxu0 0.0
        %1048 = vmatprep.subr.mxu0 0.0
        %1049 = vmatpush1.msra.mxu0 0.0
        %1050 = vmatprep.subr.mxu0 0.0
        %1051 = vmatpush1.msra.mxu0 0.0
        %1052 = vmatprep.subr.mxu0 0.0
        %1053 = vmatpush1.msra.mxu0 0.0
        %1054 = vmatprep.subr.mxu0 0.0
        %1055 = vmatpush1.msra.mxu0 0.0
        %1056 = vmatprep.subr.mxu0 0.0
        %1057 = vmatpush1.msra.mxu0 0.0
        %1058 = vmatprep.subr.mxu0 0.0
        %1059 = vmatpush1.msra.mxu0 0.0
        %1060 = vmatprep.subr.mxu0 0.0
        %1061 = vmatpush1.msra.mxu0 0.0
        %1062 = vmatprep.mubr.f32.mxu0 0.0
        %1063 = vmatmul.mubr.f32.gmra.mrb[0].mxu0 %v996
        %v1064 = vpop.f32.mrb[0].mxu0
        %v1065 = vadd.f32 0.0, %v1064
        %v1066 = vpop.f32.mrb[0].mxu0
        %v1067 = vadd.f32 0.0, %v1066
        %1068 = vdwg.mxu0
        %1081 = vrot.lane.b32.xlu0 %v926, 17
        %v1082 = vpop.permute.xlu0 %1081
        %1083 = vrot.lane.b32.xlu0 %v927, 17
        %v1084 = vpop.permute.xlu0 %1083
        %1085 = vrot.lane.b32.xlu0 %v928, 17
        %v1086 = vpop.permute.xlu0 %1085
        %1087 = vrot.lane.b32.xlu0 %v929, 17
        %v1088 = vpop.permute.xlu0 %1087
        %1089 = vrot.lane.b32.xlu0 %v930, 17
        %v1090 = vpop.permute.xlu0 %1089
        %1091 = vrot.lane.b32.xlu0 %v931, 17
        %v1092 = vpop.permute.xlu0 %1091
        %1093 = vrot.lane.b32.xlu0 %v932, 17
        %v1094 = vpop.permute.xlu0 %1093
        %1095 = vrot.lane.b32.xlu0 %v933, 17
        %v1096 = vpop.permute.xlu0 %1095
        %1097 = vrot.lane.b32.xlu0 %v934, 17
        %v1098 = vpop.permute.xlu0 %1097
        %1099 = vrot.lane.b32.xlu0 %v935, 17
        %v1100 = vpop.permute.xlu0 %1099
        %1101 = vrot.lane.b32.xlu0 %v936, 17
        %v1102 = vpop.permute.xlu0 %1101
        %1103 = vrot.lane.b32.xlu0 %v937, 17
        %v1104 = vpop.permute.xlu0 %1103
        %v1105 = vsel %vm542, %v1082, %v1084
        %v1106 = vsel %vm542, %v1084, %v1086
        %v1107 = vsel %vm542, %v1088, %v1090
        %v1108 = vsel %vm542, %v1090, %v1092
        %v1109 = vsel %vm542, %v1094, %v1096
        %v1110 = vsel %vm542, %v1096, %v1098
        %v1111 = vsel %vm542, %v1100, %v1102
        %v1112 = vsel %vm542, %v1102, %v1104
        %v1122 = vsel %vm994, %v938, 0
        %1124 = vmatprep.subr.mxu0 %v1106
        %1125 = vmatpush1.msra.mxu0 %v1105
        %1126 = vmatprep.subr.mxu0 %v1108
        %1127 = vmatpush1.msra.mxu0 %v1107
        %1128 = vmatprep.subr.mxu0 %v1110
        %1129 = vmatpush1.msra.mxu0 %v1109
        %1130 = vmatprep.subr.mxu0 %v1112
        %1131 = vmatpush1.msra.mxu0 %v1111
        %1132 = vmatprep.subr.mxu0 0.0
        %1133 = vmatpush1.msra.mxu0 0.0
        %1134 = vmatprep.subr.mxu0 0.0
        %1135 = vmatpush1.msra.mxu0 0.0
        %1136 = vmatprep.subr.mxu0 0.0
        %1137 = vmatpush1.msra.mxu0 0.0
        %1138 = vmatprep.subr.mxu0 0.0
        %1139 = vmatpush1.msra.mxu0 0.0
        %1140 = vmatprep.subr.mxu0 0.0
        %1141 = vmatpush1.msra.mxu0 0.0
        %1142 = vmatprep.subr.mxu0 0.0
        %1143 = vmatpush1.msra.mxu0 0.0
        %1144 = vmatprep.subr.mxu0 0.0
        %1145 = vmatpush1.msra.mxu0 0.0
        %1146 = vmatprep.subr.mxu0 0.0
        %1147 = vmatpush1.msra.mxu0 0.0
        %1148 = vmatprep.subr.mxu0 0.0
        %1149 = vmatpush1.msra.mxu0 0.0
        %1150 = vmatprep.subr.mxu0 0.0
        %1151 = vmatpush1.msra.mxu0 0.0
        %1152 = vmatprep.subr.mxu0 0.0
        %1153 = vmatpush1.msra.mxu0 0.0
        %1154 = vmatprep.subr.mxu0 0.0
        %1155 = vmatpush1.msra.mxu0 0.0
        %1156 = vmatprep.subr.mxu0 0.0
        %1157 = vmatpush1.msra.mxu0 0.0
        %1158 = vmatprep.subr.mxu0 0.0
        %1159 = vmatpush1.msra.mxu0 0.0
        %1160 = vmatprep.subr.mxu0 0.0
        %1161 = vmatpush1.msra.mxu0 0.0
        %1162 = vmatprep.subr.mxu0 0.0
        %1163 = vmatpush1.msra.mxu0 0.0
        %1164 = vmatprep.subr.mxu0 0.0
        %1165 = vmatpush1.msra.mxu0 0.0
        %1166 = vmatprep.subr.mxu0 0.0
        %1167 = vmatpush1.msra.mxu0 0.0
        %1168 = vmatprep.subr.mxu0 0.0
        %1169 = vmatpush1.msra.mxu0 0.0
        %1170 = vmatprep.subr.mxu0 0.0
        %1171 = vmatpush1.msra.mxu0 0.0
        %1172 = vmatprep.subr.mxu0 0.0
        %1173 = vmatpush1.msra.mxu0 0.0
        %1174 = vmatprep.subr.mxu0 0.0
        %1175 = vmatpush1.msra.mxu0 0.0
        %1176 = vmatprep.subr.mxu0 0.0
        %1177 = vmatpush1.msra.mxu0 0.0
        %1178 = vmatprep.subr.mxu0 0.0
        %1179 = vmatpush1.msra.mxu0 0.0
        %1180 = vmatprep.subr.mxu0 0.0
        %1181 = vmatpush1.msra.mxu0 0.0
        %1182 = vmatprep.subr.mxu0 0.0
        %1183 = vmatpush1.msra.mxu0 0.0
        %1184 = vmatprep.subr.mxu0 0.0
        %1185 = vmatpush1.msra.mxu0 0.0
        %1186 = vmatprep.subr.mxu0 0.0
        %1187 = vmatpush1.msra.mxu0 0.0
        %1188 = vmatprep.mubr.f32.mxu0 0.0
        %1189 = vmatmul.mubr.f32.gmra.mrb[0].mxu0 %v1122
        %v1190 = vpop.f32.mrb[0].mxu0
        %v1191 = vadd.f32 %v1065, %v1190
        %v1192 = vpop.f32.mrb[0].mxu0
        %v1193 = vadd.f32 %v1067, %v1192
        %1194 = vdwg.mxu0
        %v1195 = vld [vmem:[%s293] ss:$2 sm:$0x3]
        %v1197 = vlaneseq
        %v1198 = vshrl.u32 %v1197, 7
        %v1199 = vsub.s32 0, %v1198
        %v1200 = vrot.slane %v1195, %v1199
        %v1201 = vlaneseq
        %v1202 = vshrl.u32 %v1201, 7
        %v1203 = vsub.s32 1, %v1202
        %v1204 = vrot.slane %v1195, %v1203
        %1205 = vrot.lane.b32.xlu0 %v1200, 113
        %v1206 = vpop.permute.xlu0 %1205
        %1207 = vrot.lane.b32.xlu0 %v1204, 113
        %v1208 = vpop.permute.xlu0 %1207
        %v1209 = vsel %vm308, %v1206, %v1208
        %v1213 = vmul.f32 %v896, %v1206
        %v1214 = vmul.f32 %v897, %v1209
        %v1215 = vmul.f32 %v898, %v1208
        %v1216 = vmul.f32 %v899, %v1206
        %v1217 = vmul.f32 %v900, %v1209
        %v1218 = vmul.f32 %v901, %v1208
        %v1219 = vmul.f32 %v902, %v1206
        %v1220 = vmul.f32 %v903, %v1209
        %v1221 = vmul.f32 %v904, %v1208
        %v1222 = vmul.f32 %v905, %v1206
        %v1223 = vmul.f32 %v906, %v1209
        %v1224 = vmul.f32 %v907, %v1208
        %s1225 = scalar_lea.vmem %s4, 16
        %v1226 = vld [vmem:[%s1225] sm:$0xff]
        %1239 = vrot.lane.b32.xlu0 %v1213, 15
        %v1240 = vpop.permute.xlu0 %1239
        %1241 = vrot.lane.b32.xlu0 %v1214, 15
        %v1242 = vpop.permute.xlu0 %1241
        %1243 = vrot.lane.b32.xlu0 %v1215, 15
        %v1244 = vpop.permute.xlu0 %1243
        %1245 = vrot.lane.b32.xlu0 %v1216, 15
        %v1246 = vpop.permute.xlu0 %1245
        %1247 = vrot.lane.b32.xlu0 %v1217, 15
        %v1248 = vpop.permute.xlu0 %1247
        %1249 = vrot.lane.b32.xlu0 %v1218, 15
        %v1250 = vpop.permute.xlu0 %1249
        %1251 = vrot.lane.b32.xlu0 %v1219, 15
        %v1252 = vpop.permute.xlu0 %1251
        %1253 = vrot.lane.b32.xlu0 %v1220, 15
        %v1254 = vpop.permute.xlu0 %1253
        %1255 = vrot.lane.b32.xlu0 %v1221, 15
        %v1256 = vpop.permute.xlu0 %1255
        %1257 = vrot.lane.b32.xlu0 %v1222, 15
        %v1258 = vpop.permute.xlu0 %1257
        %1259 = vrot.lane.b32.xlu0 %v1223, 15
        %v1260 = vpop.permute.xlu0 %1259
        %1261 = vrot.lane.b32.xlu0 %v1224, 15
        %v1262 = vpop.permute.xlu0 %1261
        %v1263 = vsel %vm660, %v1240, %v1242
        %v1264 = vsel %vm660, %v1242, %v1244
        %v1265 = vsel %vm660, %v1246, %v1248
        %v1266 = vsel %vm660, %v1248, %v1250
        %v1267 = vsel %vm660, %v1252, %v1254
        %v1268 = vsel %vm660, %v1254, %v1256
        %v1269 = vsel %vm660, %v1258, %v1260
        %v1270 = vsel %vm660, %v1260, %v1262
        %v1280 = vsel %vm994, %v1226, 0
        %1282 = vmatprep.subr.mxu0 %v1264
        %1283 = vmatpush1.msra.mxu0 %v1263
        %1284 = vmatprep.subr.mxu0 %v1266
        %1285 = vmatpush1.msra.mxu0 %v1265
        %1286 = vmatprep.subr.mxu0 %v1268
        %1287 = vmatpush1.msra.mxu0 %v1267
        %1288 = vmatprep.subr.mxu0 %v1270
        %1289 = vmatpush1.msra.mxu0 %v1269
        %1290 = vmatprep.subr.mxu0 0.0
        %1291 = vmatpush1.msra.mxu0 0.0
        %1292 = vmatprep.subr.mxu0 0.0
        %1293 = vmatpush1.msra.mxu0 0.0
        %1294 = vmatprep.subr.mxu0 0.0
        %1295 = vmatpush1.msra.mxu0 0.0
        %1296 = vmatprep.subr.mxu0 0.0
        %1297 = vmatpush1.msra.mxu0 0.0
        %1298 = vmatprep.subr.mxu0 0.0
        %1299 = vmatpush1.msra.mxu0 0.0
        %1300 = vmatprep.subr.mxu0 0.0
        %1301 = vmatpush1.msra.mxu0 0.0
        %1302 = vmatprep.subr.mxu0 0.0
        %1303 = vmatpush1.msra.mxu0 0.0
        %1304 = vmatprep.subr.mxu0 0.0
        %1305 = vmatpush1.msra.mxu0 0.0
        %1306 = vmatprep.subr.mxu0 0.0
        %1307 = vmatpush1.msra.mxu0 0.0
        %1308 = vmatprep.subr.mxu0 0.0
        %1309 = vmatpush1.msra.mxu0 0.0
        %1310 = vmatprep.subr.mxu0 0.0
        %1311 = vmatpush1.msra.mxu0 0.0
        %1312 = vmatprep.subr.mxu0 0.0
        %1313 = vmatpush1.msra.mxu0 0.0
        %1314 = vmatprep.subr.mxu0 0.0
        %1315 = vmatpush1.msra.mxu0 0.0
        %1316 = vmatprep.subr.mxu0 0.0
        %1317 = vmatpush1.msra.mxu0 0.0
        %1318 = vmatprep.subr.mxu0 0.0
        %1319 = vmatpush1.msra.mxu0 0.0
        %1320 = vmatprep.subr.mxu0 0.0
        %1321 = vmatpush1.msra.mxu0 0.0
        %1322 = vmatprep.subr.mxu0 0.0
        %1323 = vmatpush1.msra.mxu0 0.0
        %1324 = vmatprep.subr.mxu0 0.0
        %1325 = vmatpush1.msra.mxu0 0.0
        %1326 = vmatprep.subr.mxu0 0.0
        %1327 = vmatpush1.msra.mxu0 0.0
        %1328 = vmatprep.subr.mxu0 0.0
        %1329 = vmatpush1.msra.mxu0 0.0
        %1330 = vmatprep.subr.mxu0 0.0
        %1331 = vmatpush1.msra.mxu0 0.0
        %1332 = vmatprep.subr.mxu0 0.0
        %1333 = vmatpush1.msra.mxu0 0.0
        %1334 = vmatprep.subr.mxu0 0.0
        %1335 = vmatpush1.msra.mxu0 0.0
        %1336 = vmatprep.subr.mxu0 0.0
        %1337 = vmatpush1.msra.mxu0 0.0
        %1338 = vmatprep.subr.mxu0 0.0
        %1339 = vmatpush1.msra.mxu0 0.0
        %1340 = vmatprep.subr.mxu0 0.0
        %1341 = vmatpush1.msra.mxu0 0.0
        %1342 = vmatprep.subr.mxu0 0.0
        %1343 = vmatpush1.msra.mxu0 0.0
        %1344 = vmatprep.subr.mxu0 0.0
        %1345 = vmatpush1.msra.mxu0 0.0
        %1346 = vmatprep.mubr.f32.mxu0 0.0
        %1347 = vmatmul.mubr.f32.gmra.mrb[0].mxu0 %v1280
        %v1348 = vpop.f32.mrb[0].mxu0
        %v1349 = vadd.f32 0.0, %v1348
        %v1350 = vpop.f32.mrb[0].mxu0
        %v1351 = vadd.f32 0.0, %v1350
        %1352 = vdwg.mxu0
        %v1353 = vadd.f32 %v1191, %v1349
        %v1354 = vadd.f32 %v1193, %v1351
        %1355 = vrot.lane.b32.xlu0 %v913, 127
        %v1356 = vpop.permute.xlu0 %1355
        %1357 = vrot.lane.b32.xlu0 %v917, 127
        %v1358 = vpop.permute.xlu0 %1357
        %v1359 = vsel %vm325, %v1356, %v1358
        %v1363 = vmul.f32 %v896, %v1356
        %v1364 = vmul.f32 %v897, %v1359
        %v1365 = vmul.f32 %v898, %v1358
        %v1366 = vmul.f32 %v899, %v1356
        %v1367 = vmul.f32 %v900, %v1359
        %v1368 = vmul.f32 %v901, %v1358
        %v1369 = vmul.f32 %v902, %v1356
        %v1370 = vmul.f32 %v903, %v1359
        %v1371 = vmul.f32 %v904, %v1358
        %v1372 = vmul.f32 %v905, %v1356
        %v1373 = vmul.f32 %v906, %v1359
        %v1374 = vmul.f32 %v907, %v1358
        %s1375 = scalar_lea.vmem %s4, 24
        %v1376 = vld [vmem:[%s1375] sm:$0xff]
        %1389 = vrot.lane.b32.xlu0 %v1363, 1
        %v1390 = vpop.permute.xlu0 %1389
        %1391 = vrot.lane.b32.xlu0 %v1364, 1
        %v1392 = vpop.permute.xlu0 %1391
        %1393 = vrot.lane.b32.xlu0 %v1365, 1
        %v1394 = vpop.permute.xlu0 %1393
        %1395 = vrot.lane.b32.xlu0 %v1366, 1
        %v1396 = vpop.permute.xlu0 %1395
        %1397 = vrot.lane.b32.xlu0 %v1367, 1
        %v1398 = vpop.permute.xlu0 %1397
        %1399 = vrot.lane.b32.xlu0 %v1368, 1
        %v1400 = vpop.permute.xlu0 %1399
        %1401 = vrot.lane.b32.xlu0 %v1369, 1
        %v1402 = vpop.permute.xlu0 %1401
        %1403 = vrot.lane.b32.xlu0 %v1370, 1
        %v1404 = vpop.permute.xlu0 %1403
        %1405 = vrot.lane.b32.xlu0 %v1371, 1
        %v1406 = vpop.permute.xlu0 %1405
        %1407 = vrot.lane.b32.xlu0 %v1372, 1
        %v1408 = vpop.permute.xlu0 %1407
        %1409 = vrot.lane.b32.xlu0 %v1373, 1
        %v1410 = vpop.permute.xlu0 %1409
        %1411 = vrot.lane.b32.xlu0 %v1374, 1
        %v1412 = vpop.permute.xlu0 %1411
        %v1413 = vsel %vm362, %v1390, %v1392
        %v1414 = vsel %vm362, %v1392, %v1394
        %v1415 = vsel %vm362, %v1396, %v1398
        %v1416 = vsel %vm362, %v1398, %v1400
        %v1417 = vsel %vm362, %v1402, %v1404
        %v1418 = vsel %vm362, %v1404, %v1406
        %v1419 = vsel %vm362, %v1408, %v1410
        %v1420 = vsel %vm362, %v1410, %v1412
        %v1430 = vsel %vm994, %v1376, 0
        %1432 = vmatprep.subr.mxu0 %v1414
        %1433 = vmatpush1.msra.mxu0 %v1413
        %1434 = vmatprep.subr.mxu0 %v1416
        %1435 = vmatpush1.msra.mxu0 %v1415
        %1436 = vmatprep.subr.mxu0 %v1418
        %1437 = vmatpush1.msra.mxu0 %v1417
        %1438 = vmatprep.subr.mxu0 %v1420
        %1439 = vmatpush1.msra.mxu0 %v1419
        %1440 = vmatprep.subr.mxu0 0.0
        %1441 = vmatpush1.msra.mxu0 0.0
        %1442 = vmatprep.subr.mxu0 0.0
        %1443 = vmatpush1.msra.mxu0 0.0
        %1444 = vmatprep.subr.mxu0 0.0
        %1445 = vmatpush1.msra.mxu0 0.0
        %1446 = vmatprep.subr.mxu0 0.0
        %1447 = vmatpush1.msra.mxu0 0.0
        %1448 = vmatprep.subr.mxu0 0.0
        %1449 = vmatpush1.msra.mxu0 0.0
        %1450 = vmatprep.subr.mxu0 0.0
        %1451 = vmatpush1.msra.mxu0 0.0
        %1452 = vmatprep.subr.mxu0 0.0
        %1453 = vmatpush1.msra.mxu0 0.0
        %1454 = vmatprep.subr.mxu0 0.0
        %1455 = vmatpush1.msra.mxu0 0.0
        %1456 = vmatprep.subr.mxu0 0.0
        %1457 = vmatpush1.msra.mxu0 0.0
        %1458 = vmatprep.subr.mxu0 0.0
        %1459 = vmatpush1.msra.mxu0 0.0
        %1460 = vmatprep.subr.mxu0 0.0
        %1461 = vmatpush1.msra.mxu0 0.0
        %1462 = vmatprep.subr.mxu0 0.0
        %1463 = vmatpush1.msra.mxu0 0.0
        %1464 = vmatprep.subr.mxu0 0.0
        %1465 = vmatpush1.msra.mxu0 0.0
        %1466 = vmatprep.subr.mxu0 0.0
        %1467 = vmatpush1.msra.mxu0 0.0
        %1468 = vmatprep.subr.mxu0 0.0
        %1469 = vmatpush1.msra.mxu0 0.0
        %1470 = vmatprep.subr.mxu0 0.0
        %1471 = vmatpush1.msra.mxu0 0.0
        %1472 = vmatprep.subr.mxu0 0.0
        %1473 = vmatpush1.msra.mxu0 0.0
        %1474 = vmatprep.subr.mxu0 0.0
        %1475 = vmatpush1.msra.mxu0 0.0
        %1476 = vmatprep.subr.mxu0 0.0
        %1477 = vmatpush1.msra.mxu0 0.0
        %1478 = vmatprep.subr.mxu0 0.0
        %1479 = vmatpush1.msra.mxu0 0.0
        %1480 = vmatprep.subr.mxu0 0.0
        %1481 = vmatpush1.msra.mxu0 0.0
        %1482 = vmatprep.subr.mxu0 0.0
        %1483 = vmatpush1.msra.mxu0 0.0
        %1484 = vmatprep.subr.mxu0 0.0
        %1485 = vmatpush1.msra.mxu0 0.0
        %1486 = vmatprep.subr.mxu0 0.0
        %1487 = vmatpush1.msra.mxu0 0.0
        %1488 = vmatprep.subr.mxu0 0.0
        %1489 = vmatpush1.msra.mxu0 0.0
        %1490 = vmatprep.subr.mxu0 0.0
        %1491 = vmatpush1.msra.mxu0 0.0
        %1492 = vmatprep.subr.mxu0 0.0
        %1493 = vmatpush1.msra.mxu0 0.0
        %1494 = vmatprep.subr.mxu0 0.0
        %1495 = vmatpush1.msra.mxu0 0.0
        %1496 = vmatprep.mubr.f32.mxu0 0.0
        %1497 = vmatmul.mubr.f32.gmra.mrb[0].mxu0 %v1430
        %v1498 = vpop.f32.mrb[0].mxu0
        %v1499 = vadd.f32 0.0, %v1498
        %v1500 = vpop.f32.mrb[0].mxu0
        %v1501 = vadd.f32 0.0, %v1500
        %1502 = vdwg.mxu0
        %v1503 = vadd.f32 %v1353, %v1499
        %v1504 = vadd.f32 %v1354, %v1501
        %s1505 = scalar_lea.vmem %s4, 32
        %v1506 = vld [vmem:[%s1505] sm:$0xff]
        %v1508 = vsel %vm994, %v1506, 0
        %1510 = vmatprep.subr.mxu0 %v898
        %1511 = vmatpush1.msra.mxu0 %v897
        %1512 = vmatprep.subr.mxu0 %v901
        %1513 = vmatpush1.msra.mxu0 %v900
        %1514 = vmatprep.subr.mxu0 %v904
        %1515 = vmatpush1.msra.mxu0 %v903
        %1516 = vmatprep.subr.mxu0 %v907
        %1517 = vmatpush1.msra.mxu0 %v906
        %1518 = vmatprep.subr.mxu0 0.0
        %1519 = vmatpush1.msra.mxu0 0.0
        %1520 = vmatprep.subr.mxu0 0.0
        %1521 = vmatpush1.msra.mxu0 0.0
        %1522 = vmatprep.subr.mxu0 0.0
        %1523 = vmatpush1.msra.mxu0 0.0
        %1524 = vmatprep.subr.mxu0 0.0
        %1525 = vmatpush1.msra.mxu0 0.0
        %1526 = vmatprep.subr.mxu0 0.0
        %1527 = vmatpush1.msra.mxu0 0.0
        %1528 = vmatprep.subr.mxu0 0.0
        %1529 = vmatpush1.msra.mxu0 0.0
        %1530 = vmatprep.subr.mxu0 0.0
        %1531 = vmatpush1.msra.mxu0 0.0
        %1532 = vmatprep.subr.mxu0 0.0
        %1533 = vmatpush1.msra.mxu0 0.0
        %1534 = vmatprep.subr.mxu0 0.0
        %1535 = vmatpush1.msra.mxu0 0.0
        %1536 = vmatprep.subr.mxu0 0.0
        %1537 = vmatpush1.msra.mxu0 0.0
        %1538 = vmatprep.subr.mxu0 0.0
        %1539 = vmatpush1.msra.mxu0 0.0
        %1540 = vmatprep.subr.mxu0 0.0
        %1541 = vmatpush1.msra.mxu0 0.0
        %1542 = vmatprep.subr.mxu0 0.0
        %1543 = vmatpush1.msra.mxu0 0.0
        %1544 = vmatprep.subr.mxu0 0.0
        %1545 = vmatpush1.msra.mxu0 0.0
        %1546 = vmatprep.subr.mxu0 0.0
        %1547 = vmatpush1.msra.mxu0 0.0
        %1548 = vmatprep.subr.mxu0 0.0
        %1549 = vmatpush1.msra.mxu0 0.0
        %1550 = vmatprep.subr.mxu0 0.0
        %1551 = vmatpush1.msra.mxu0 0.0
        %1552 = vmatprep.subr.mxu0 0.0
        %1553 = vmatpush1.msra.mxu0 0.0
        %1554 = vmatprep.subr.mxu0 0.0
        %1555 = vmatpush1.msra.mxu0 0.0
        %1556 = vmatprep.subr.mxu0 0.0
        %1557 = vmatpush1.msra.mxu0 0.0
        %1558 = vmatprep.subr.mxu0 0.0
        %1559 = vmatpush1.msra.mxu0 0.0
        %1560 = vmatprep.subr.mxu0 0.0
        %1561 = vmatpush1.msra.mxu0 0.0
        %1562 = vmatprep.subr.mxu0 0.0
        %1563 = vmatpush1.msra.mxu0 0.0
        %1564 = vmatprep.subr.mxu0 0.0
        %1565 = vmatpush1.msra.mxu0 0.0
        %1566 = vmatprep.subr.mxu0 0.0
        %1567 = vmatpush1.msra.mxu0 0.0
        %1568 = vmatprep.subr.mxu0 0.0
        %1569 = vmatpush1.msra.mxu0 0.0
        %1570 = vmatprep.subr.mxu0 0.0
        %1571 = vmatpush1.msra.mxu0 0.0
        %1572 = vmatprep.subr.mxu0 0.0
        %1573 = vmatpush1.msra.mxu0 0.0
        %1574 = vmatprep.mubr.f32.mxu0 0.0
        %1575 = vmatmul.mubr.f32.gmra.mrb[0].mxu0 %v1508
        %v1576 = vpop.f32.mrb[0].mxu0
        %v1577 = vadd.f32 0.0, %v1576
        %v1578 = vpop.f32.mrb[0].mxu0
        %v1579 = vadd.f32 0.0, %v1578
        %1580 = vdwg.mxu0
        %v1581 = vadd.f32 %v1503, %v1577
        %v1582 = vadd.f32 %v1504, %v1579
        %v1583 = vld [vmem:[#allocation3 + $0x8] sm:$0xff]
        %v1584 = vld [vmem:[#allocation3 + $0x10] sm:$0xff]
        %v1585 = vld [vmem:[#allocation3 + $0x18] sm:$0xff]
        %v1586 = vld [vmem:[#allocation3 + $0x28] sm:$0xff]
        %v1587 = vld [vmem:[#allocation3 + $0x30] sm:$0xff]
        %v1588 = vld [vmem:[#allocation3 + $0x38] sm:$0xff]
        %v1589 = vld [vmem:[#allocation3 + $0x48] sm:$0xff]
        %v1590 = vld [vmem:[#allocation3 + $0x50] sm:$0xff]
        %v1591 = vld [vmem:[#allocation3 + $0x58] sm:$0xff]
        %v1592 = vld [vmem:[#allocation3 + $0x68] sm:$0xff]
        %v1593 = vld [vmem:[#allocation3 + $0x70] sm:$0xff]
        %v1594 = vld [vmem:[#allocation3 + $0x78] sm:$0xff]
        %1595 = vrot.lane.b32.xlu0 %v1200, 1
        %v1596 = vpop.permute.xlu0 %1595
        %1597 = vrot.lane.b32.xlu0 %v1204, 1
        %v1598 = vpop.permute.xlu0 %1597
        %v1599 = vsel %vm362, %v1596, %v1598
        %v1603 = vmul.f32 %v1583, %v1596
        %v1604 = vmul.f32 %v1584, %v1599
        %v1605 = vmul.f32 %v1585, %v1598
        %v1606 = vmul.f32 %v1586, %v1596
        %v1607 = vmul.f32 %v1587, %v1599
        %v1608 = vmul.f32 %v1588, %v1598
        %v1609 = vmul.f32 %v1589, %v1596
        %v1610 = vmul.f32 %v1590, %v1599
        %v1611 = vmul.f32 %v1591, %v1598
        %v1612 = vmul.f32 %v1592, %v1596
        %v1613 = vmul.f32 %v1593, %v1599
        %v1614 = vmul.f32 %v1594, %v1598
        %s1615 = scalar_lea.vmem %s4, 40
        %v1616 = vld [vmem:[%s1615] sm:$0xff]
        %1629 = vrot.lane.b32.xlu0 %v1603, 127
        %v1630 = vpop.permute.xlu0 %1629
        %1631 = vrot.lane.b32.xlu0 %v1604, 127
        %v1632 = vpop.permute.xlu0 %1631
        %1633 = vrot.lane.b32.xlu0 %v1605, 127
        %v1634 = vpop.permute.xlu0 %1633
        %1635 = vrot.lane.b32.xlu0 %v1606, 127
        %v1636 = vpop.permute.xlu0 %1635
        %1637 = vrot.lane.b32.xlu0 %v1607, 127
        %v1638 = vpop.permute.xlu0 %1637
        %1639 = vrot.lane.b32.xlu0 %v1608, 127
        %v1640 = vpop.permute.xlu0 %1639
        %1641 = vrot.lane.b32.xlu0 %v1609, 127
        %v1642 = vpop.permute.xlu0 %1641
        %1643 = vrot.lane.b32.xlu0 %v1610, 127
        %v1644 = vpop.permute.xlu0 %1643
        %1645 = vrot.lane.b32.xlu0 %v1611, 127
        %v1646 = vpop.permute.xlu0 %1645
        %1647 = vrot.lane.b32.xlu0 %v1612, 127
        %v1648 = vpop.permute.xlu0 %1647
        %1649 = vrot.lane.b32.xlu0 %v1613, 127
        %v1650 = vpop.permute.xlu0 %1649
        %1651 = vrot.lane.b32.xlu0 %v1614, 127
        %v1652 = vpop.permute.xlu0 %1651
        %v1653 = vsel %vm325, %v1630, %v1632
        %v1654 = vsel %vm325, %v1632, %v1634
        %v1655 = vsel %vm325, %v1636, %v1638
        %v1656 = vsel %vm325, %v1638, %v1640
        %v1657 = vsel %vm325, %v1642, %v1644
        %v1658 = vsel %vm325, %v1644, %v1646
        %v1659 = vsel %vm325, %v1648, %v1650
        %v1660 = vsel %vm325, %v1650, %v1652
        %v1670 = vsel %vm994, %v1616, 0
        %1672 = vmatprep.subr.mxu0 %v1654
        %1673 = vmatpush1.msra.mxu0 %v1653
        %1674 = vmatprep.subr.mxu0 %v1656
        %1675 = vmatpush1.msra.mxu0 %v1655
        %1676 = vmatprep.subr.mxu0 %v1658
        %1677 = vmatpush1.msra.mxu0 %v1657
        %1678 = vmatprep.subr.mxu0 %v1660
        %1679 = vmatpush1.msra.mxu0 %v1659
        %1680 = vmatprep.subr.mxu0 0.0
        %1681 = vmatpush1.msra.mxu0 0.0
        %1682 = vmatprep.subr.mxu0 0.0
        %1683 = vmatpush1.msra.mxu0 0.0
        %1684 = vmatprep.subr.mxu0 0.0
        %1685 = vmatpush1.msra.mxu0 0.0
        %1686 = vmatprep.subr.mxu0 0.0
        %1687 = vmatpush1.msra.mxu0 0.0
        %1688 = vmatprep.subr.mxu0 0.0
        %1689 = vmatpush1.msra.mxu0 0.0
        %1690 = vmatprep.subr.mxu0 0.0
        %1691 = vmatpush1.msra.mxu0 0.0
        %1692 = vmatprep.subr.mxu0 0.0
        %1693 = vmatpush1.msra.mxu0 0.0
        %1694 = vmatprep.subr.mxu0 0.0
        %1695 = vmatpush1.msra.mxu0 0.0
        %1696 = vmatprep.subr.mxu0 0.0
        %1697 = vmatpush1.msra.mxu0 0.0
        %1698 = vmatprep.subr.mxu0 0.0
        %1699 = vmatpush1.msra.mxu0 0.0
        %1700 = vmatprep.subr.mxu0 0.0
        %1701 = vmatpush1.msra.mxu0 0.0
        %1702 = vmatprep.subr.mxu0 0.0
        %1703 = vmatpush1.msra.mxu0 0.0
        %1704 = vmatprep.subr.mxu0 0.0
        %1705 = vmatpush1.msra.mxu0 0.0
        %1706 = vmatprep.subr.mxu0 0.0
        %1707 = vmatpush1.msra.mxu0 0.0
        %1708 = vmatprep.subr.mxu0 0.0
        %1709 = vmatpush1.msra.mxu0 0.0
        %1710 = vmatprep.subr.mxu0 0.0
        %1711 = vmatpush1.msra.mxu0 0.0
        %1712 = vmatprep.subr.mxu0 0.0
        %1713 = vmatpush1.msra.mxu0 0.0
        %1714 = vmatprep.subr.mxu0 0.0
        %1715 = vmatpush1.msra.mxu0 0.0
        %1716 = vmatprep.subr.mxu0 0.0
        %1717 = vmatpush1.msra.mxu0 0.0
        %1718 = vmatprep.subr.mxu0 0.0
        %1719 = vmatpush1.msra.mxu0 0.0
        %1720 = vmatprep.subr.mxu0 0.0
        %1721 = vmatpush1.msra.mxu0 0.0
        %1722 = vmatprep.subr.mxu0 0.0
        %1723 = vmatpush1.msra.mxu0 0.0
        %1724 = vmatprep.subr.mxu0 0.0
        %1725 = vmatpush1.msra.mxu0 0.0
        %1726 = vmatprep.subr.mxu0 0.0
        %1727 = vmatpush1.msra.mxu0 0.0
        %1728 = vmatprep.subr.mxu0 0.0
        %1729 = vmatpush1.msra.mxu0 0.0
        %1730 = vmatprep.subr.mxu0 0.0
        %1731 = vmatpush1.msra.mxu0 0.0
        %1732 = vmatprep.subr.mxu0 0.0
        %1733 = vmatpush1.msra.mxu0 0.0
        %1734 = vmatprep.subr.mxu0 0.0
        %1735 = vmatpush1.msra.mxu0 0.0
        %1736 = vmatprep.mubr.f32.mxu0 0.0
        %1737 = vmatmul.mubr.f32.gmra.mrb[0].mxu0 %v1670
        %v1738 = vpop.f32.mrb[0].mxu0
        %v1739 = vadd.f32 0.0, %v1738
        %v1740 = vpop.f32.mrb[0].mxu0
        %v1741 = vadd.f32 0.0, %v1740
        %1742 = vdwg.mxu0
        %v1743 = vadd.f32 %v1581, %v1739
        %v1744 = vadd.f32 %v1582, %v1741
        %1745 = vrot.lane.b32.xlu0 %v913, 15
        %v1746 = vpop.permute.xlu0 %1745
        %1747 = vrot.lane.b32.xlu0 %v917, 15
        %v1748 = vpop.permute.xlu0 %1747
        %v1749 = vsel %vm660, %v1746, %v1748
        %v1753 = vmul.f32 %v1583, %v1746
        %v1754 = vmul.f32 %v1584, %v1749
        %v1755 = vmul.f32 %v1585, %v1748
        %v1756 = vmul.f32 %v1586, %v1746
        %v1757 = vmul.f32 %v1587, %v1749
        %v1758 = vmul.f32 %v1588, %v1748
        %v1759 = vmul.f32 %v1589, %v1746
        %v1760 = vmul.f32 %v1590, %v1749
        %v1761 = vmul.f32 %v1591, %v1748
        %v1762 = vmul.f32 %v1592, %v1746
        %v1763 = vmul.f32 %v1593, %v1749
        %v1764 = vmul.f32 %v1594, %v1748
        %s1765 = scalar_lea.vmem %s4, 48
        %v1766 = vld [vmem:[%s1765] sm:$0xff]
        %1779 = vrot.lane.b32.xlu0 %v1753, 113
        %v1780 = vpop.permute.xlu0 %1779
        %1781 = vrot.lane.b32.xlu0 %v1754, 113
        %v1782 = vpop.permute.xlu0 %1781
        %1783 = vrot.lane.b32.xlu0 %v1755, 113
        %v1784 = vpop.permute.xlu0 %1783
        %1785 = vrot.lane.b32.xlu0 %v1756, 113
        %v1786 = vpop.permute.xlu0 %1785
        %1787 = vrot.lane.b32.xlu0 %v1757, 113
        %v1788 = vpop.permute.xlu0 %1787
        %1789 = vrot.lane.b32.xlu0 %v1758, 113
        %v1790 = vpop.permute.xlu0 %1789
        %1791 = vrot.lane.b32.xlu0 %v1759, 113
        %v1792 = vpop.permute.xlu0 %1791
        %1793 = vrot.lane.b32.xlu0 %v1760, 113
        %v1794 = vpop.permute.xlu0 %1793
        %1795 = vrot.lane.b32.xlu0 %v1761, 113
        %v1796 = vpop.permute.xlu0 %1795
        %1797 = vrot.lane.b32.xlu0 %v1762, 113
        %v1798 = vpop.permute.xlu0 %1797
        %1799 = vrot.lane.b32.xlu0 %v1763, 113
        %v1800 = vpop.permute.xlu0 %1799
        %1801 = vrot.lane.b32.xlu0 %v1764, 113
        %v1802 = vpop.permute.xlu0 %1801
        %v1803 = vsel %vm308, %v1780, %v1782
        %v1804 = vsel %vm308, %v1782, %v1784
        %v1805 = vsel %vm308, %v1786, %v1788
        %v1806 = vsel %vm308, %v1788, %v1790
        %v1807 = vsel %vm308, %v1792, %v1794
        %v1808 = vsel %vm308, %v1794, %v1796
        %v1809 = vsel %vm308, %v1798, %v1800
        %v1810 = vsel %vm308, %v1800, %v1802
        %v1820 = vsel %vm994, %v1766, 0
        %1822 = vmatprep.subr.mxu0 %v1804
        %1823 = vmatpush1.msra.mxu0 %v1803
        %1824 = vmatprep.subr.mxu0 %v1806
        %1825 = vmatpush1.msra.mxu0 %v1805
        %1826 = vmatprep.subr.mxu0 %v1808
        %1827 = vmatpush1.msra.mxu0 %v1807
        %1828 = vmatprep.subr.mxu0 %v1810
        %1829 = vmatpush1.msra.mxu0 %v1809
        %1830 = vmatprep.subr.mxu0 0.0
        %1831 = vmatpush1.msra.mxu0 0.0
        %1832 = vmatprep.subr.mxu0 0.0
        %1833 = vmatpush1.msra.mxu0 0.0
        %1834 = vmatprep.subr.mxu0 0.0
        %1835 = vmatpush1.msra.mxu0 0.0
        %1836 = vmatprep.subr.mxu0 0.0
        %1837 = vmatpush1.msra.mxu0 0.0
        %1838 = vmatprep.subr.mxu0 0.0
        %1839 = vmatpush1.msra.mxu0 0.0
        %1840 = vmatprep.subr.mxu0 0.0
        %1841 = vmatpush1.msra.mxu0 0.0
        %1842 = vmatprep.subr.mxu0 0.0
        %1843 = vmatpush1.msra.mxu0 0.0
        %1844 = vmatprep.subr.mxu0 0.0
        %1845 = vmatpush1.msra.mxu0 0.0
        %1846 = vmatprep.subr.mxu0 0.0
        %1847 = vmatpush1.msra.mxu0 0.0
        %1848 = vmatprep.subr.mxu0 0.0
        %1849 = vmatpush1.msra.mxu0 0.0
        %1850 = vmatprep.subr.mxu0 0.0
        %1851 = vmatpush1.msra.mxu0 0.0
        %1852 = vmatprep.subr.mxu0 0.0
        %1853 = vmatpush1.msra.mxu0 0.0
        %1854 = vmatprep.subr.mxu0 0.0
        %1855 = vmatpush1.msra.mxu0 0.0
        %1856 = vmatprep.subr.mxu0 0.0
        %1857 = vmatpush1.msra.mxu0 0.0
        %1858 = vmatprep.subr.mxu0 0.0
        %1859 = vmatpush1.msra.mxu0 0.0
        %1860 = vmatprep.subr.mxu0 0.0
        %1861 = vmatpush1.msra.mxu0 0.0
        %1862 = vmatprep.subr.mxu0 0.0
        %1863 = vmatpush1.msra.mxu0 0.0
        %1864 = vmatprep.subr.mxu0 0.0
        %1865 = vmatpush1.msra.mxu0 0.0
        %1866 = vmatprep.subr.mxu0 0.0
        %1867 = vmatpush1.msra.mxu0 0.0
        %1868 = vmatprep.subr.mxu0 0.0
        %1869 = vmatpush1.msra.mxu0 0.0
        %1870 = vmatprep.subr.mxu0 0.0
        %1871 = vmatpush1.msra.mxu0 0.0
        %1872 = vmatprep.subr.mxu0 0.0
        %1873 = vmatpush1.msra.mxu0 0.0
        %1874 = vmatprep.subr.mxu0 0.0
        %1875 = vmatpush1.msra.mxu0 0.0
        %1876 = vmatprep.subr.mxu0 0.0
        %1877 = vmatpush1.msra.mxu0 0.0
        %1878 = vmatprep.subr.mxu0 0.0
        %1879 = vmatpush1.msra.mxu0 0.0
        %1880 = vmatprep.subr.mxu0 0.0
        %1881 = vmatpush1.msra.mxu0 0.0
        %1882 = vmatprep.subr.mxu0 0.0
        %1883 = vmatpush1.msra.mxu0 0.0
        %1884 = vmatprep.subr.mxu0 0.0
        %1885 = vmatpush1.msra.mxu0 0.0
        %1886 = vmatprep.mubr.f32.mxu0 0.0
        %1887 = vmatmul.mubr.f32.gmra.mrb[0].mxu0 %v1820
        %v1888 = vpop.f32.mrb[0].mxu0
        %v1889 = vadd.f32 0.0, %v1888
        %v1890 = vpop.f32.mrb[0].mxu0
        %v1891 = vadd.f32 0.0, %v1890
        %1892 = vdwg.mxu0
        %v1893 = vadd.f32 %v1743, %v1889
        %v1894 = vadd.f32 %v1744, %v1891
        %s1895 = scalar_lea.vmem %s4, 56
        %v1896 = vld [vmem:[%s1895] sm:$0xff]
        %1909 = vrot.lane.b32.xlu0 %v1583, 112
        %v1910 = vpop.permute.xlu0 %1909
        %1911 = vrot.lane.b32.xlu0 %v1584, 112
        %v1912 = vpop.permute.xlu0 %1911
        %1913 = vrot.lane.b32.xlu0 %v1585, 112
        %v1914 = vpop.permute.xlu0 %1913
        %1915 = vrot.lane.b32.xlu0 %v1586, 112
        %v1916 = vpop.permute.xlu0 %1915
        %1917 = vrot.lane.b32.xlu0 %v1587, 112
        %v1918 = vpop.permute.xlu0 %1917
        %1919 = vrot.lane.b32.xlu0 %v1588, 112
        %v1920 = vpop.permute.xlu0 %1919
        %1921 = vrot.lane.b32.xlu0 %v1589, 112
        %v1922 = vpop.permute.xlu0 %1921
        %1923 = vrot.lane.b32.xlu0 %v1590, 112
        %v1924 = vpop.permute.xlu0 %1923
        %1925 = vrot.lane.b32.xlu0 %v1591, 112
        %v1926 = vpop.permute.xlu0 %1925
        %1927 = vrot.lane.b32.xlu0 %v1592, 112
        %v1928 = vpop.permute.xlu0 %1927
        %1929 = vrot.lane.b32.xlu0 %v1593, 112
        %v1930 = vpop.permute.xlu0 %1929
        %1931 = vrot.lane.b32.xlu0 %v1594, 112
        %v1932 = vpop.permute.xlu0 %1931
        %vm1933 = vcmask 916480
        %v1934 = vsel %vm1933, %v1910, %v1912
        %v1935 = vsel %vm1933, %v1912, %v1914
        %v1936 = vsel %vm1933, %v1916, %v1918
        %v1937 = vsel %vm1933, %v1918, %v1920
        %v1938 = vsel %vm1933, %v1922, %v1924
        %v1939 = vsel %vm1933, %v1924, %v1926
        %v1940 = vsel %vm1933, %v1928, %v1930
        %v1941 = vsel %vm1933, %v1930, %v1932
        %v1951 = vsel %vm994, %v1896, 0
        %1953 = vmatprep.subr.mxu0 %v1935
        %1954 = vmatpush1.msra.mxu0 %v1934
        %1955 = vmatprep.subr.mxu0 %v1937
        %1956 = vmatpush1.msra.mxu0 %v1936
        %1957 = vmatprep.subr.mxu0 %v1939
        %1958 = vmatpush1.msra.mxu0 %v1938
        %1959 = vmatprep.subr.mxu0 %v1941
        %1960 = vmatpush1.msra.mxu0 %v1940
        %1961 = vmatprep.subr.mxu0 0.0
        %1962 = vmatpush1.msra.mxu0 0.0
        %1963 = vmatprep.subr.mxu0 0.0
        %1964 = vmatpush1.msra.mxu0 0.0
        %1965 = vmatprep.subr.mxu0 0.0
        %1966 = vmatpush1.msra.mxu0 0.0
        %1967 = vmatprep.subr.mxu0 0.0
        %1968 = vmatpush1.msra.mxu0 0.0
        %1969 = vmatprep.subr.mxu0 0.0
        %1970 = vmatpush1.msra.mxu0 0.0
        %1971 = vmatprep.subr.mxu0 0.0
        %1972 = vmatpush1.msra.mxu0 0.0
        %1973 = vmatprep.subr.mxu0 0.0
        %1974 = vmatpush1.msra.mxu0 0.0
        %1975 = vmatprep.subr.mxu0 0.0
        %1976 = vmatpush1.msra.mxu0 0.0
        %1977 = vmatprep.subr.mxu0 0.0
        %1978 = vmatpush1.msra.mxu0 0.0
        %1979 = vmatprep.subr.mxu0 0.0
        %1980 = vmatpush1.msra.mxu0 0.0
        %1981 = vmatprep.subr.mxu0 0.0
        %1982 = vmatpush1.msra.mxu0 0.0
        %1983 = vmatprep.subr.mxu0 0.0
        %1984 = vmatpush1.msra.mxu0 0.0
        %1985 = vmatprep.subr.mxu0 0.0
        %1986 = vmatpush1.msra.mxu0 0.0
        %1987 = vmatprep.subr.mxu0 0.0
        %1988 = vmatpush1.msra.mxu0 0.0
        %1989 = vmatprep.subr.mxu0 0.0
        %1990 = vmatpush1.msra.mxu0 0.0
        %1991 = vmatprep.subr.mxu0 0.0
        %1992 = vmatpush1.msra.mxu0 0.0
        %1993 = vmatprep.subr.mxu0 0.0
        %1994 = vmatpush1.msra.mxu0 0.0
        %1995 = vmatprep.subr.mxu0 0.0
        %1996 = vmatpush1.msra.mxu0 0.0
        %1997 = vmatprep.subr.mxu0 0.0
        %1998 = vmatpush1.msra.mxu0 0.0
        %1999 = vmatprep.subr.mxu0 0.0
        %2000 = vmatpush1.msra.mxu0 0.0
        %2001 = vmatprep.subr.mxu0 0.0
        %2002 = vmatpush1.msra.mxu0 0.0
        %2003 = vmatprep.subr.mxu0 0.0
        %2004 = vmatpush1.msra.mxu0 0.0
        %2005 = vmatprep.subr.mxu0 0.0
        %2006 = vmatpush1.msra.mxu0 0.0
        %2007 = vmatprep.subr.mxu0 0.0
        %2008 = vmatpush1.msra.mxu0 0.0
        %2009 = vmatprep.subr.mxu0 0.0
        %2010 = vmatpush1.msra.mxu0 0.0
        %2011 = vmatprep.subr.mxu0 0.0
        %2012 = vmatpush1.msra.mxu0 0.0
        %2013 = vmatprep.subr.mxu0 0.0
        %2014 = vmatpush1.msra.mxu0 0.0
        %2015 = vmatprep.subr.mxu0 0.0
        %2016 = vmatpush1.msra.mxu0 0.0
        %2017 = vmatprep.mubr.f32.mxu0 0.0
        %2018 = vmatmul.mubr.f32.gmra.mrb[0].mxu0 %v1951
        %v2019 = vpop.f32.mrb[0].mxu0
        %v2020 = vadd.f32 0.0, %v2019
        %v2021 = vpop.f32.mrb[0].mxu0
        %v2022 = vadd.f32 0.0, %v2021
        %2023 = vdwg.mxu0
        %v2024 = vadd.f32 %v1893, %v2020
        %v2025 = vadd.f32 %v1894, %v2022
        %2026 = vrot.lane.b32.xlu0 %v1200, 17
        %v2027 = vpop.permute.xlu0 %2026
        %2028 = vrot.lane.b32.xlu0 %v1204, 17
        %v2029 = vpop.permute.xlu0 %2028
        %v2030 = vsel %vm542, %v2027, %v2029
        %v2034 = vmul.f32 %v1583, %v2027
        %v2035 = vmul.f32 %v1584, %v2030
        %v2036 = vmul.f32 %v1585, %v2029
        %v2037 = vmul.f32 %v1586, %v2027
        %v2038 = vmul.f32 %v1587, %v2030
        %v2039 = vmul.f32 %v1588, %v2029
        %v2040 = vmul.f32 %v1589, %v2027
        %v2041 = vmul.f32 %v1590, %v2030
        %v2042 = vmul.f32 %v1591, %v2029
        %v2043 = vmul.f32 %v1592, %v2027
        %v2044 = vmul.f32 %v1593, %v2030
        %v2045 = vmul.f32 %v1594, %v2029
        %s2046 = scalar_lea.vmem %s4, 64
        %v2047 = vld [vmem:[%s2046] sm:$0xff]
        %2060 = vrot.lane.b32.xlu0 %v2034, 111
        %v2061 = vpop.permute.xlu0 %2060
        %2062 = vrot.lane.b32.xlu0 %v2035, 111
        %v2063 = vpop.permute.xlu0 %2062
        %2064 = vrot.lane.b32.xlu0 %v2036, 111
        %v2065 = vpop.permute.xlu0 %2064
        %2066 = vrot.lane.b32.xlu0 %v2037, 111
        %v2067 = vpop.permute.xlu0 %2066
        %2068 = vrot.lane.b32.xlu0 %v2038, 111
        %v2069 = vpop.permute.xlu0 %2068
        %2070 = vrot.lane.b32.xlu0 %v2039, 111
        %v2071 = vpop.permute.xlu0 %2070
        %2072 = vrot.lane.b32.xlu0 %v2040, 111
        %v2073 = vpop.permute.xlu0 %2072
        %2074 = vrot.lane.b32.xlu0 %v2041, 111
        %v2075 = vpop.permute.xlu0 %2074
        %2076 = vrot.lane.b32.xlu0 %v2042, 111
        %v2077 = vpop.permute.xlu0 %2076
        %2078 = vrot.lane.b32.xlu0 %v2043, 111
        %v2079 = vpop.permute.xlu0 %2078
        %2080 = vrot.lane.b32.xlu0 %v2044, 111
        %v2081 = vpop.permute.xlu0 %2080
        %2082 = vrot.lane.b32.xlu0 %v2045, 111
        %v2083 = vpop.permute.xlu0 %2082
        %v2084 = vsel %vm285, %v2061, %v2063
        %v2085 = vsel %vm285, %v2063, %v2065
        %v2086 = vsel %vm285, %v2067, %v2069
        %v2087 = vsel %vm285, %v2069, %v2071
        %v2088 = vsel %vm285, %v2073, %v2075
        %v2089 = vsel %vm285, %v2075, %v2077
        %v2090 = vsel %vm285, %v2079, %v2081
        %v2091 = vsel %vm285, %v2081, %v2083
        %v2101 = vsel %vm994, %v2047, 0
        %2103 = vmatprep.subr.mxu0 %v2085
        %2104 = vmatpush1.msra.mxu0 %v2084
        %2105 = vmatprep.subr.mxu0 %v2087
        %2106 = vmatpush1.msra.mxu0 %v2086
        %2107 = vmatprep.subr.mxu0 %v2089
        %2108 = vmatpush1.msra.mxu0 %v2088
        %2109 = vmatprep.subr.mxu0 %v2091
        %2110 = vmatpush1.msra.mxu0 %v2090
        %2111 = vmatprep.subr.mxu0 0.0
        %2112 = vmatpush1.msra.mxu0 0.0
        %2113 = vmatprep.subr.mxu0 0.0
        %2114 = vmatpush1.msra.mxu0 0.0
        %2115 = vmatprep.subr.mxu0 0.0
        %2116 = vmatpush1.msra.mxu0 0.0
        %2117 = vmatprep.subr.mxu0 0.0
        %2118 = vmatpush1.msra.mxu0 0.0
        %2119 = vmatprep.subr.mxu0 0.0
        %2120 = vmatpush1.msra.mxu0 0.0
        %2121 = vmatprep.subr.mxu0 0.0
        %2122 = vmatpush1.msra.mxu0 0.0
        %2123 = vmatprep.subr.mxu0 0.0
        %2124 = vmatpush1.msra.mxu0 0.0
        %2125 = vmatprep.subr.mxu0 0.0
        %2126 = vmatpush1.msra.mxu0 0.0
        %2127 = vmatprep.subr.mxu0 0.0
        %2128 = vmatpush1.msra.mxu0 0.0
        %2129 = vmatprep.subr.mxu0 0.0
        %2130 = vmatpush1.msra.mxu0 0.0
        %2131 = vmatprep.subr.mxu0 0.0
        %2132 = vmatpush1.msra.mxu0 0.0
        %2133 = vmatprep.subr.mxu0 0.0
        %2134 = vmatpush1.msra.mxu0 0.0
        %2135 = vmatprep.subr.mxu0 0.0
        %2136 = vmatpush1.msra.mxu0 0.0
        %2137 = vmatprep.subr.mxu0 0.0
        %2138 = vmatpush1.msra.mxu0 0.0
        %2139 = vmatprep.subr.mxu0 0.0
        %2140 = vmatpush1.msra.mxu0 0.0
        %2141 = vmatprep.subr.mxu0 0.0
        %2142 = vmatpush1.msra.mxu0 0.0
        %2143 = vmatprep.subr.mxu0 0.0
        %2144 = vmatpush1.msra.mxu0 0.0
        %2145 = vmatprep.subr.mxu0 0.0
        %2146 = vmatpush1.msra.mxu0 0.0
        %2147 = vmatprep.subr.mxu0 0.0
        %2148 = vmatpush1.msra.mxu0 0.0
        %2149 = vmatprep.subr.mxu0 0.0
        %2150 = vmatpush1.msra.mxu0 0.0
        %2151 = vmatprep.subr.mxu0 0.0
        %2152 = vmatpush1.msra.mxu0 0.0
        %2153 = vmatprep.subr.mxu0 0.0
        %2154 = vmatpush1.msra.mxu0 0.0
        %2155 = vmatprep.subr.mxu0 0.0
        %2156 = vmatpush1.msra.mxu0 0.0
        %2157 = vmatprep.subr.mxu0 0.0
        %2158 = vmatpush1.msra.mxu0 0.0
        %2159 = vmatprep.subr.mxu0 0.0
        %2160 = vmatpush1.msra.mxu0 0.0
        %2161 = vmatprep.subr.mxu0 0.0
        %2162 = vmatpush1.msra.mxu0 0.0
        %2163 = vmatprep.subr.mxu0 0.0
        %2164 = vmatpush1.msra.mxu0 0.0
        %2165 = vmatprep.subr.mxu0 0.0
        %2166 = vmatpush1.msra.mxu0 0.0
        %2167 = vmatprep.mubr.f32.mxu0 0.0
        %2168 = vmatmul.mubr.f32.gmra.mrb[0].mxu0 %v2101
        %v2169 = vpop.f32.mrb[0].mxu0
        %v2170 = vadd.f32 0.0, %v2169
        %v2171 = vpop.f32.mrb[0].mxu0
        %v2172 = vadd.f32 0.0, %v2171
        %2173 = vdwg.mxu0
        %v2174 = vadd.f32 %v2024, %v2170
        %v2175 = vadd.f32 %v2025, %v2172
        %v2176 = vld [vmem:[%s5] sm:$0xff]
        %2178 = vset.pattern.permute.xlu0 0
        %2179 = vperm.xlu0 %2178, %v2176
        %v2180 = vpop.permute.xlu0 %2179
        %v2182 = vadd.f32 %v2174, %v2180
        %v2183 = vadd.f32 %v2175, %v2180
        %2184 = vst [vmem:[%s244] sm:$0xff] %v2182
        %2185 = vst [vmem:[%s244 + $0x8] sm:$0xff] %v2183
        %s2186 = sand.u32 %s159, 1
        %s2187 = scalar_lea.sflag [#allocation5], %s2186
        %s2188 = sand.u32 %s159, 1
        %s2189 = smul.addr %s2188, 16
        %s2190 = scalar_lea.vmem [#allocation4], %s2189
        // Predicated region
        $region45: #{tpu_custom_call.1} parent=43 // pred_check
          %p2191 = pneg %p169
        $region46: #{tpu_custom_call.1} parent=43 // pred_check_branch
          %2193 = sbr.rel (%p2191) target = $region48
        $region47: #{tpu_custom_call.1} parent=43 // pred_region
          %s2195 = ssub.s32 256, 256
          %2196 = vsyncadd %s2187, %s2195
          %s2197 = smul.addr %s20, 2
          %s2198 = smul.addr %s2197, 128
          %s2199 = scalar_lea.hbm %s6, %s2198
          %s2201 = sshll.u32 %s2190, 4
          %s2202 = int_to_ptr.vmem [resolvable:$true] %s2201
          %2204 = dma.vmem_to_hbm [thread:$0]  %s2202, 256, %s2199, %s2187
        $region48: #{tpu_custom_call.1} parent=43 // pred_fallthru
          _
      $region44: #{tpu_custom_call.1} parent=5 // pred_fallthru
        _
      %p2205 = scmp.le.s32.totalorder 2, %s15
      // Predicated region
      $region49: #{tpu_custom_call.1} parent=5 // pred_check
        %p2206 = pneg %p2205
      $region50: #{tpu_custom_call.1} parent=5 // pred_check_branch
        %2208 = sbr.rel (%p2206) target = $region52
      $region51: #{tpu_custom_call.1} parent=5 // pred_region
        %s2209 = ssub.s32 %s15, 2
        // Predicated region
        $region53: #{tpu_custom_call.1} parent=51 // pred_check
          %p2210 = pneg %p175
        $region54: #{tpu_custom_call.1} parent=51 // pred_check_branch
          %2212 = sbr.rel (%p2210) target = $region56
        $region55: #{tpu_custom_call.1} parent=51 // pred_region
          %s2213 = sand.u32 %s160, 1
          %s2214 = scalar_lea.sflag [#allocation5], %s2213
          %s2215 = sand.u32 %s160, 1
          %s2216 = smul.addr %s2215, 16
          %s2217 = scalar_lea.vmem [#allocation4], %s2216
          %2218 = dma.done %s2214, 256
        $region56: #{tpu_custom_call.1} parent=51 // pred_fallthru
          _
      $region52: #{tpu_custom_call.1} parent=5 // pred_fallthru
        _
    $region6: #{tpu_custom_call.1} parent=1 // loop_footer
      %s19 = sadd.s32 1, %s15
    $region7: #{tpu_custom_call.1} parent=1 // loop_footer_branch
      %14 = sbr.rel target = $region3
    $region8: #{tpu_custom_call.1} parent=1 // loop_exit
      _
    %2219 = vsyncpa [#allocation5], 1
    %s2220 = scalar_lea.sflag [#allocation5], 1
    %2221 = vsyncpa %s2220, 1

</llo_original>
